<compile_context>
chip_gen: v7x
topology: tpu7x:2x2x1
jax: 0.10.0
libtpu: 0.0.40
codegen_flags: <defaults>
</compile_context>

<pallas_src>
import jax
import jax.numpy as jnp
from jax.experimental import pallas as pl
from jax.experimental.pallas import tpu as pltpu


# --------------------------------------------------------------------------
# Fused kernel factory (all sizes static Python ints)
# --------------------------------------------------------------------------
def _make_fused_kernel(*, nb, K, PH2, HC, Hfc,
                       R1, RB, R2, RC, L1, L2, CH=128):
    f32 = jnp.float32
    bf16 = jnp.bfloat16

    def conv_even_odd(src_ref, we_ref, wo_ref, dst_ref, rows_total, lanes_out):
        # Valid conv along h via K shifted row reads; the horizontal (1x2) half
        # of the max-pool is an elementwise max of the even/odd output columns.
        for r0 in range(0, rows_total, CH):
            rows = min(CH, rows_total - r0)
            acc_e = jnp.zeros((rows, lanes_out), f32)
            acc_o = jnp.zeros((rows, lanes_out), f32)
            for kh in range(K):
                tap = src_ref[pl.ds(r0 + kh, rows), :].astype(bf16)
                acc_e = acc_e + jnp.dot(tap, we_ref[kh],
                                        preferred_element_type=f32)
                acc_o = acc_o + jnp.dot(tap, wo_ref[kh],
                                        preferred_element_type=f32)
            dst_ref[pl.ds(r0, rows), :] = jnp.maximum(acc_e, acc_o)

    def vpool_bias_relu(src_ref, bias_ref, dst_ref, rows_total):
        # Vertical (2x1) half of the pool via stride-2 sublane reads; bias is a
        # per-channel constant so adding it after the max equals torch's
        # relu(max_pool(conv(x)+b)).
        for r0 in range(0, rows_total, CH):
            rows = min(CH, rows_total - r0)
            a = src_ref[pl.ds(2 * r0, rows, stride=2), :]
            b = src_ref[pl.ds(2 * r0 + 1, rows, stride=2), :]
            dst_ref[pl.ds(r0, rows), :] = jnp.maximum(
                jnp.maximum(a, b) + bias_ref[...], 0.0)

    def kernel(x_ref, w1e_ref, w1o_ref, b1_ref, w2e_ref, w2o_ref, b2_ref,
               wf1_ref, bf1_ref, wf2_ref, bf2_ref,
               logp_ref, x1_ref, s1, p1, s2, p2):
        # conv1 (+ horizontal pool) -> s1 (row space A)
        conv_even_odd(x_ref, w1e_ref, w1o_ref, s1, R1, L1)
        # vertical pool + bias + ReLU -> p1 (compact row space B)
        vpool_bias_relu(s1, b1_ref, p1, RB)
        # conv2 (Dropout2d = identity at inference) + horizontal pool -> s2
        conv_even_odd(p1, w2e_ref, w2o_ref, s2, R2, L2)
        # vertical pool + bias + ReLU -> p2 (compact row space C)
        vpool_bias_relu(s2, b2_ref, p2, RC)

        # ---- fc1 + ReLU: PH2 stride-HC batch-row gathers, one MXU dot each ---
        h1 = jnp.zeros((nb, Hfc), f32)
        for hp in range(PH2):
            if nb > 1:
                gather = p2[pl.ds(hp, nb, stride=HC), :]
            else:
                gather = p2[pl.ds(hp, 1), :]
            h1 = h1 + jnp.dot(gather.astype(bf16), wf1_ref[hp],
                              preferred_element_type=f32)
        h1 = jnp.maximum(h1 + bf1_ref[...], 0.0)
        x1_ref[...] = h1                      # FedProto proto = relu(fc1(.))

        # F.dropout(x1, training=False) -> identity; fc2 + log_softmax(dim=1)
        logits = jnp.dot(h1.astype(bf16), wf2_ref[...],
                         preferred_element_type=f32) + bf2_ref[...]
        z = logits - jnp.max(logits, axis=-1, keepdims=True)
        lse = jnp.log(jnp.sum(jnp.exp(z), axis=-1, keepdims=True))
        logp_ref[...] = z - lse

    return kernel


# --------------------------------------------------------------------------
# Wrapper: layout prep (cheap, no data amplification) + pallas_call
# --------------------------------------------------------------------------
def cnn_mnist_forward(x_nchw, params, *, block_batch=16):
    N, Cin, H, W = x_nchw.shape
    K = params["w1"].shape[0]
    C1 = params["w1"].shape[-1]
    C2 = params["w2"].shape[-1]
    Hfc = params["fc1_w"].shape[-1]
    Ncls = params["fc2_w"].shape[-1]

    OH1, OW1 = H - K + 1, W - K + 1
    PH1, PW1 = OH1 // 2, OW1 // 2
    OH2, OW2 = PH1 - K + 1, PW1 - K + 1
    PH2, PW2 = OH2 // 2, OW2 // 2
    assert OH1 % 2 == 0 and OW1 % 2 == 0 and OH2 % 2 == 0 and OW2 % 2 == 0, (
        "2x2 max-pool decomposition requires even conv output sizes")
    assert H % 4 == 0, "stride-2 row pooling needs H divisible by 4"
    assert params["fc1_w"].shape[0] == C2 * PH2 * PW2
    HB, HC = H // 2, H // 4
    assert PH1 <= HB and PH2 <= HC

    L0, L1, L2 = W * Cin, PW1 * C1, PW2 * C2

    # Fixed-size batch tile; >=2 tiles whenever N>=2 so the "parallel" grid
    # axis can span both TensorCores on v7x.
    nb = max(1, min(block_batch, -(-N // 2)))
    ntiles = -(-N // nb)
    npad = ntiles * nb

    def up8(v):
        return -(-v // 8) * 8

    # Cascaded row counts: every shifted / strided VMEM read in the kernel is
    # in-bounds and reads rows written this step (extra rows are finite garbage
    # because the padded input rows are zero-filled).
    RC = up8(nb * HC)            # pool2 rows  (valid: n*HC + hp2, hp2 < PH2)
    R2 = up8(2 * RC)             # conv2 rows  (row space B)
    RB = up8(R2 + K - 1)         # pool1 rows  (conv2 taps read RB >= R2+K-1)
    R1 = up8(2 * RB)             # conv1 rows  (row space A)
    RIN = up8(R1 + K - 1)        # zero-padded per-tile input rows

    # ---- input: NCHW -> (tiles, n*H + h, w*Cin) bf16, zero row padding ------
    x = jnp.transpose(x_nchw, (0, 2, 3, 1)).reshape(N, H, L0)
    if npad != N:
        x = jnp.concatenate([x, jnp.zeros((npad - N, H, L0), x.dtype)], axis=0)
    x = x.reshape(ntiles, nb * H, L0)
    x = jnp.pad(x, ((0, 0), (0, RIN - nb * H), (0, 0))).astype(jnp.bfloat16)

    # ---- weights: Toeplitz-expand the conv kernels over the dense lane axis;
    # split output columns into even/odd w so the horizontal pool is a max ----
    f32, bf16 = jnp.float32, jnp.bfloat16
    W1 = params["w1"].astype(f32)                      # (K, K, Cin, C1)
    W2 = params["w2"].astype(f32)                      # (K, K, C1,  C2)
    kwi = jnp.arange(K)

    def toeplitz(in_idx, out_idx, wmat, parity):
        # S[k, i, o] = 1 where input column i == 2*o + parity + k
        S = (in_idx[None, :, None] ==
             (2 * out_idx[None, None, :] + parity + kwi[:, None, None])
             ).astype(f32)
        out = jnp.einsum('kio,hkcd->hicod', S, wmat)
        kd, id_, cd, od, dd = out.shape
        return out.reshape(kd, id_ * cd, od * dd).astype(bf16)

    w1e = toeplitz(jnp.arange(W), jnp.arange(PW1), W1, 0)    # (K, W*Cin, L1)
    w1o = toeplitz(jnp.arange(W), jnp.arange(PW1), W1, 1)
    w2e = toeplitz(jnp.arange(PW1), jnp.arange(PW2), W2, 0)  # (K, L1, L2)
    w2o = toeplitz(jnp.arange(PW1), jnp.arange(PW2), W2, 1)

    # Per-channel biases broadcast across the lane layout (lane = w*C + c).
    b1l = jnp.tile(params["b1"].reshape(1, C1).astype(f32), (1, PW1))
    b2l = jnp.tile(params["b2"].reshape(1, C2).astype(f32), (1, PW2))

    # fc1 in torch NCHW-flatten order (f = c*PH2*PW2 + h*PW2 + w) folded into
    # the (hp2, wq*C2 + c2) activation layout.
    wf1 = (params["fc1_w"].reshape(C2, PH2, PW2, Hfc)
           .transpose(1, 2, 0, 3).reshape(PH2, L2, Hfc).astype(bf16))
    bf1 = params["fc1_b"].reshape(1, Hfc).astype(f32)
    wf2 = params["fc2_w"].astype(bf16)
    bf2 = params["fc2_b"].reshape(1, Ncls).astype(f32)

    kernel = _make_fused_kernel(nb=nb, K=K, PH2=PH2, HC=HC, Hfc=Hfc,
                                R1=R1, RB=RB, R2=R2, RC=RC, L1=L1, L2=L2)

    logp, x1 = pl.pallas_call(
        kernel,
        out_shape=(jax.ShapeDtypeStruct((ntiles, nb, Ncls), jnp.float32),
                   jax.ShapeDtypeStruct((ntiles, nb, Hfc), jnp.float32)),
        grid=(ntiles,),
        in_specs=[
            pl.BlockSpec((None, RIN, L0), lambda i: (i, 0, 0)),
            pl.BlockSpec((K, L0, L1), lambda i: (0, 0, 0)),
            pl.BlockSpec((K, L0, L1), lambda i: (0, 0, 0)),
            pl.BlockSpec((1, L1), lambda i: (0, 0)),
            pl.BlockSpec((K, L1, L2), lambda i: (0, 0, 0)),
            pl.BlockSpec((K, L1, L2), lambda i: (0, 0, 0)),
            pl.BlockSpec((1, L2), lambda i: (0, 0)),
            pl.BlockSpec((PH2, L2, Hfc), lambda i: (0, 0, 0)),
            pl.BlockSpec((1, Hfc), lambda i: (0, 0)),
            pl.BlockSpec((Hfc, Ncls), lambda i: (0, 0)),
            pl.BlockSpec((1, Ncls), lambda i: (0, 0)),
        ],
        out_specs=(pl.BlockSpec((None, nb, Ncls), lambda i: (i, 0, 0)),
                   pl.BlockSpec((None, nb, Hfc), lambda i: (i, 0, 0))),
        scratch_shapes=[pltpu.VMEM((R1, L1), jnp.float32),   # conv1 + h-pool
                        pltpu.VMEM((RB, L1), jnp.float32),   # pool1 (space B)
                        pltpu.VMEM((R2, L2), jnp.float32),   # conv2 + h-pool
                        pltpu.VMEM((RC, L2), jnp.float32)],  # pool2 (space C)
        compiler_params=pltpu.CompilerParams(
            dimension_semantics=("parallel",),
            vmem_limit_bytes=32 * 1024 * 1024),
    )(x, w1e, w1o, b1l, w2e, w2o, b2l, wf1, bf1, wf2, bf2)

    return logp.reshape(npad, Ncls)[:N], x1.reshape(npad, Hfc)[:N]


# --------------------------------------------------------------------------
# Params + plain-XLA reference (numerical cross-check)
# --------------------------------------------------------------------------
def init_params(key, num_channels, out_channels, num_classes):
    ks = jax.random.split(key, 8)
    f = 16 * out_channels  # = int(320 / 20 * out_channels)
    init = lambda k, shape: 0.1 * jax.random.normal(k, shape, jnp.float32)
    return {
        "w1": init(ks[0], (5, 5, num_channels, 10)),   # (K, K, Cin, Cout)
        "b1": init(ks[1], (1, 10)),
        "w2": init(ks[2], (5, 5, 10, out_channels)),
        "b2": init(ks[3], (1, out_channels)),
        "fc1_w": init(ks[4], (f, 50)),                 # (in, out)
        "fc1_b": init(ks[5], (1, 50)),
        "fc2_w": init(ks[6], (50, num_classes)),
        "fc2_b": init(ks[7], (1, num_classes)),
    }


def reference_forward(x_nchw, params):
    """Pure-XLA reference using the same bf16-rounded weights as the kernel."""
    f32 = jnp.float32
    rd = lambda w: w.astype(jnp.bfloat16).astype(f32)

    def conv(x, w):
        return jax.lax.conv_general_dilated(
            x, w, window_strides=(1, 1), padding="VALID",
            dimension_numbers=("NCHW", "HWIO", "NCHW"))

    def maxpool(x):
        return jax.lax.reduce_window(x, -jnp.inf, jax.lax.max,
                                     (1, 1, 2, 2), (1, 1, 2, 2), "VALID")

    x = x_nchw.astype(f32)
    y = conv(x, rd(params["w1"])) + params["b1"].astype(f32).reshape(1, -1, 1, 1)
    y = jnp.maximum(maxpool(y), 0.0)
    y = conv(y, rd(params["w2"])) + params["b2"].astype(f32).reshape(1, -1, 1, 1)
    y = jnp.maximum(maxpool(y), 0.0)
    feat = y.reshape(y.shape[0], -1)                         # NCHW flatten
    x1 = jnp.maximum(feat @ rd(params["fc1_w"]) + params["fc1_b"].astype(f32), 0.0)
    logits = x1 @ rd(params["fc2_w"]) + params["fc2_b"].astype(f32)
    return jax.nn.log_softmax(logits, axis=-1), x1


if __name__ == "__main__":
    key = jax.random.PRNGKey(0)
    kx, kp = jax.random.split(key)
    num_channels, out_channels, num_classes = 1, 8, 10
    # MNIST-sized spatial dims (28x28) are pinned by fc1's in-features.
    x = jax.random.normal(kx, (2, num_channels, 28, 28), jnp.float32)
    params = init_params(kp, num_channels, out_channels, num_classes)

    logp, x1 = jax.jit(cnn_mnist_forward)(x, params)
    jax.block_until_ready((logp, x1))

    assert logp.shape == (2, num_classes), logp.shape
    assert x1.shape == (2, 50), x1.shape
    assert bool(jnp.all(jnp.isfinite(logp))) and bool(jnp.all(jnp.isfinite(x1)))
    # log_softmax rows must exponentiate-sum to 1
    assert bool(jnp.allclose(jnp.exp(logp).sum(-1), 1.0, atol=1e-4))

    # Cross-check against a plain-XLA reference (same bf16-rounded weights;
    # loose tolerance covers the kernel's bf16 MXU activation rounding).
    ref_logp, ref_x1 = reference_forward(x, params)
    err_lp = float(jnp.max(jnp.abs(logp - ref_logp)))
    err_x1 = float(jnp.max(jnp.abs(x1 - ref_x1)))
    assert err_lp < 1e-1 and err_x1 < 1e-1, (err_lp, err_x1)

    print("KERNEL_OK")
</pallas_src>

<mosaic_0001>
module attributes {stable_mosaic.version = 11 : i64} {
  func.func @kernel(%arg0: i32, %arg1: memref<1x56x28xbf16, #tpu.memory_space<vmem>>, %arg2: memref<5x28x120xbf16, #tpu.memory_space<vmem>>, %arg3: memref<5x28x120xbf16, #tpu.memory_space<vmem>>, %arg4: memref<1x120xf32, #tpu.memory_space<vmem>>, %arg5: memref<5x120x32xbf16, #tpu.memory_space<vmem>>, %arg6: memref<5x120x32xbf16, #tpu.memory_space<vmem>>, %arg7: memref<1x32xf32, #tpu.memory_space<vmem>>, %arg8: memref<4x32x50xbf16, #tpu.memory_space<vmem>>, %arg9: memref<1x50xf32, #tpu.memory_space<vmem>>, %arg10: memref<50x10xbf16, #tpu.memory_space<vmem>>, %arg11: memref<1x10xf32, #tpu.memory_space<vmem>>, %arg12: memref<1x1x10xf32, #tpu.memory_space<vmem>>, %arg13: memref<1x1x50xf32, #tpu.memory_space<vmem>>, %arg14: memref<48x120xf32, #tpu.memory_space<vmem>>, %arg15: memref<24x120xf32, #tpu.memory_space<vmem>>, %arg16: memref<16x32xf32, #tpu.memory_space<vmem>>, %arg17: memref<8x32xf32, #tpu.memory_space<vmem>>) attributes {dimension_semantics = [#tpu.dimension_semantics<parallel>], iteration_bounds = array<i64: 2>, scalar_prefetch = 0 : i64, scratch_operands = 4 : i64, tpu.core_type = #tpu.core_type<tc>, window_params = [{transform_indices = @transform_0, window_bounds = array<i64: 1, 56, 28>}, {pipeline_mode = #tpu.pipeline_mode<synchronous>, transform_indices = @transform_1, window_bounds = array<i64: 5, 28, 120>}, {pipeline_mode = #tpu.pipeline_mode<synchronous>, transform_indices = @transform_2, window_bounds = array<i64: 5, 28, 120>}, {pipeline_mode = #tpu.pipeline_mode<synchronous>, transform_indices = @transform_3, window_bounds = array<i64: 1, 120>}, {pipeline_mode = #tpu.pipeline_mode<synchronous>, transform_indices = @transform_4, window_bounds = array<i64: 5, 120, 32>}, {pipeline_mode = #tpu.pipeline_mode<synchronous>, transform_indices = @transform_5, window_bounds = array<i64: 5, 120, 32>}, {pipeline_mode = #tpu.pipeline_mode<synchronous>, transform_indices = @transform_6, window_bounds = array<i64: 1, 32>}, {pipeline_mode = #tpu.pipeline_mode<synchronous>, transform_indices = @transform_7, window_bounds = array<i64: 4, 32, 50>}, {pipeline_mode = #tpu.pipeline_mode<synchronous>, transform_indices = @transform_8, window_bounds = array<i64: 1, 50>}, {pipeline_mode = #tpu.pipeline_mode<synchronous>, transform_indices = @transform_9, window_bounds = array<i64: 50, 10>}, {pipeline_mode = #tpu.pipeline_mode<synchronous>, transform_indices = @transform_10, window_bounds = array<i64: 1, 10>}, {transform_indices = @transform_11, window_bounds = array<i64: 1, 1, 10>}, {transform_indices = @transform_12, window_bounds = array<i64: 1, 1, 50>}]} {
    %cst = arith.constant 0.000000e+00 : f32
    %0 = vector.broadcast %cst : f32 to vector<48x120xf32>
    %cst_0 = arith.constant 0.000000e+00 : f32
    %1 = vector.broadcast %cst_0 : f32 to vector<48x120xf32>
    %c0 = arith.constant 0 : index
    %c0_1 = arith.constant 0 : index
    %c0_2 = arith.constant 0 : index
    %2 = vector.load %arg1[%c0, %c0_1, %c0_2] : memref<1x56x28xbf16, #tpu.memory_space<vmem>>, vector<1x48x28xbf16>
    %3 = vector.shape_cast %2 : vector<1x48x28xbf16> to vector<48x28xbf16>
    %c0_3 = arith.constant 0 : index
    %c0_4 = arith.constant 0 : index
    %c0_5 = arith.constant 0 : index
    %4 = vector.load %arg2[%c0_3, %c0_4, %c0_5] : memref<5x28x120xbf16, #tpu.memory_space<vmem>>, vector<1x28x120xbf16>
    %5 = vector.shape_cast %4 : vector<1x28x120xbf16> to vector<28x120xbf16>
    %cst_6 = arith.constant dense<0.000000e+00> : vector<48x120xf32>
    %6 = tpu.matmul %3, %5, %cst_6 {dimension_numbers = #tpu.dot_dimension_numbers<[1], [0], [0], [1], [0, 0, 1, 1], [], []>} : vector<48x28xbf16>, vector<28x120xbf16>, vector<48x120xf32> -> vector<48x120xf32>
    %7 = arith.addf %0, %6 : vector<48x120xf32>
    %c0_7 = arith.constant 0 : index
    %c0_8 = arith.constant 0 : index
    %c0_9 = arith.constant 0 : index
    %8 = vector.load %arg3[%c0_7, %c0_8, %c0_9] : memref<5x28x120xbf16, #tpu.memory_space<vmem>>, vector<1x28x120xbf16>
    %9 = vector.shape_cast %8 : vector<1x28x120xbf16> to vector<28x120xbf16>
    %cst_10 = arith.constant dense<0.000000e+00> : vector<48x120xf32>
    %10 = tpu.matmul %3, %9, %cst_10 {dimension_numbers = #tpu.dot_dimension_numbers<[1], [0], [0], [1], [0, 0, 1, 1], [], []>} : vector<48x28xbf16>, vector<28x120xbf16>, vector<48x120xf32> -> vector<48x120xf32>
    %11 = arith.addf %1, %10 : vector<48x120xf32>
    %c0_11 = arith.constant 0 : index
    %c1 = arith.constant 1 : index
    %c0_12 = arith.constant 0 : index
    %12 = vector.load %arg1[%c0_11, %c1, %c0_12] : memref<1x56x28xbf16, #tpu.memory_space<vmem>>, vector<1x48x28xbf16>
    %13 = vector.shape_cast %12 : vector<1x48x28xbf16> to vector<48x28xbf16>
    %c1_13 = arith.constant 1 : index
    %c0_14 = arith.constant 0 : index
    %c0_15 = arith.constant 0 : index
    %14 = vector.load %arg2[%c1_13, %c0_14, %c0_15] : memref<5x28x120xbf16, #tpu.memory_space<vmem>>, vector<1x28x120xbf16>
    %15 = vector.shape_cast %14 : vector<1x28x120xbf16> to vector<28x120xbf16>
    %cst_16 = arith.constant dense<0.000000e+00> : vector<48x120xf32>
    %16 = tpu.matmul %13, %15, %cst_16 {dimension_numbers = #tpu.dot_dimension_numbers<[1], [0], [0], [1], [0, 0, 1, 1], [], []>} : vector<48x28xbf16>, vector<28x120xbf16>, vector<48x120xf32> -> vector<48x120xf32>
    %17 = arith.addf %7, %16 : vector<48x120xf32>
    %c1_17 = arith.constant 1 : index
    %c0_18 = arith.constant 0 : index
    %c0_19 = arith.constant 0 : index
    %18 = vector.load %arg3[%c1_17, %c0_18, %c0_19] : memref<5x28x120xbf16, #tpu.memory_space<vmem>>, vector<1x28x120xbf16>
    %19 = vector.shape_cast %18 : vector<1x28x120xbf16> to vector<28x120xbf16>
    %cst_20 = arith.constant dense<0.000000e+00> : vector<48x120xf32>
    %20 = tpu.matmul %13, %19, %cst_20 {dimension_numbers = #tpu.dot_dimension_numbers<[1], [0], [0], [1], [0, 0, 1, 1], [], []>} : vector<48x28xbf16>, vector<28x120xbf16>, vector<48x120xf32> -> vector<48x120xf32>
    %21 = arith.addf %11, %20 : vector<48x120xf32>
    %c0_21 = arith.constant 0 : index
    %c2 = arith.constant 2 : index
    %c0_22 = arith.constant 0 : index
    %22 = vector.load %arg1[%c0_21, %c2, %c0_22] : memref<1x56x28xbf16, #tpu.memory_space<vmem>>, vector<1x48x28xbf16>
    %23 = vector.shape_cast %22 : vector<1x48x28xbf16> to vector<48x28xbf16>
    %c2_23 = arith.constant 2 : index
    %c0_24 = arith.constant 0 : index
    %c0_25 = arith.constant 0 : index
    %24 = vector.load %arg2[%c2_23, %c0_24, %c0_25] : memref<5x28x120xbf16, #tpu.memory_space<vmem>>, vector<1x28x120xbf16>
    %25 = vector.shape_cast %24 : vector<1x28x120xbf16> to vector<28x120xbf16>
    %cst_26 = arith.constant dense<0.000000e+00> : vector<48x120xf32>
    %26 = tpu.matmul %23, %25, %cst_26 {dimension_numbers = #tpu.dot_dimension_numbers<[1], [0], [0], [1], [0, 0, 1, 1], [], []>} : vector<48x28xbf16>, vector<28x120xbf16>, vector<48x120xf32> -> vector<48x120xf32>
    %27 = arith.addf %17, %26 : vector<48x120xf32>
    %c2_27 = arith.constant 2 : index
    %c0_28 = arith.constant 0 : index
    %c0_29 = arith.constant 0 : index
    %28 = vector.load %arg3[%c2_27, %c0_28, %c0_29] : memref<5x28x120xbf16, #tpu.memory_space<vmem>>, vector<1x28x120xbf16>
    %29 = vector.shape_cast %28 : vector<1x28x120xbf16> to vector<28x120xbf16>
    %cst_30 = arith.constant dense<0.000000e+00> : vector<48x120xf32>
    %30 = tpu.matmul %23, %29, %cst_30 {dimension_numbers = #tpu.dot_dimension_numbers<[1], [0], [0], [1], [0, 0, 1, 1], [], []>} : vector<48x28xbf16>, vector<28x120xbf16>, vector<48x120xf32> -> vector<48x120xf32>
    %31 = arith.addf %21, %30 : vector<48x120xf32>
    %c0_31 = arith.constant 0 : index
    %c3 = arith.constant 3 : index
    %c0_32 = arith.constant 0 : index
    %32 = vector.load %arg1[%c0_31, %c3, %c0_32] : memref<1x56x28xbf16, #tpu.memory_space<vmem>>, vector<1x48x28xbf16>
    %33 = vector.shape_cast %32 : vector<1x48x28xbf16> to vector<48x28xbf16>
    %c3_33 = arith.constant 3 : index
    %c0_34 = arith.constant 0 : index
    %c0_35 = arith.constant 0 : index
    %34 = vector.load %arg2[%c3_33, %c0_34, %c0_35] : memref<5x28x120xbf16, #tpu.memory_space<vmem>>, vector<1x28x120xbf16>
    %35 = vector.shape_cast %34 : vector<1x28x120xbf16> to vector<28x120xbf16>
    %cst_36 = arith.constant dense<0.000000e+00> : vector<48x120xf32>
    %36 = tpu.matmul %33, %35, %cst_36 {dimension_numbers = #tpu.dot_dimension_numbers<[1], [0], [0], [1], [0, 0, 1, 1], [], []>} : vector<48x28xbf16>, vector<28x120xbf16>, vector<48x120xf32> -> vector<48x120xf32>
    %37 = arith.addf %27, %36 : vector<48x120xf32>
    %c3_37 = arith.constant 3 : index
    %c0_38 = arith.constant 0 : index
    %c0_39 = arith.constant 0 : index
    %38 = vector.load %arg3[%c3_37, %c0_38, %c0_39] : memref<5x28x120xbf16, #tpu.memory_space<vmem>>, vector<1x28x120xbf16>
    %39 = vector.shape_cast %38 : vector<1x28x120xbf16> to vector<28x120xbf16>
    %cst_40 = arith.constant dense<0.000000e+00> : vector<48x120xf32>
    %40 = tpu.matmul %33, %39, %cst_40 {dimension_numbers = #tpu.dot_dimension_numbers<[1], [0], [0], [1], [0, 0, 1, 1], [], []>} : vector<48x28xbf16>, vector<28x120xbf16>, vector<48x120xf32> -> vector<48x120xf32>
    %41 = arith.addf %31, %40 : vector<48x120xf32>
    %c0_41 = arith.constant 0 : index
    %c4 = arith.constant 4 : index
    %c0_42 = arith.constant 0 : index
    %42 = vector.load %arg1[%c0_41, %c4, %c0_42] : memref<1x56x28xbf16, #tpu.memory_space<vmem>>, vector<1x48x28xbf16>
    %43 = vector.shape_cast %42 : vector<1x48x28xbf16> to vector<48x28xbf16>
    %c4_43 = arith.constant 4 : index
    %c0_44 = arith.constant 0 : index
    %c0_45 = arith.constant 0 : index
    %44 = vector.load %arg2[%c4_43, %c0_44, %c0_45] : memref<5x28x120xbf16, #tpu.memory_space<vmem>>, vector<1x28x120xbf16>
    %45 = vector.shape_cast %44 : vector<1x28x120xbf16> to vector<28x120xbf16>
    %cst_46 = arith.constant dense<0.000000e+00> : vector<48x120xf32>
    %46 = tpu.matmul %43, %45, %cst_46 {dimension_numbers = #tpu.dot_dimension_numbers<[1], [0], [0], [1], [0, 0, 1, 1], [], []>} : vector<48x28xbf16>, vector<28x120xbf16>, vector<48x120xf32> -> vector<48x120xf32>
    %47 = arith.addf %37, %46 : vector<48x120xf32>
    %c4_47 = arith.constant 4 : index
    %c0_48 = arith.constant 0 : index
    %c0_49 = arith.constant 0 : index
    %48 = vector.load %arg3[%c4_47, %c0_48, %c0_49] : memref<5x28x120xbf16, #tpu.memory_space<vmem>>, vector<1x28x120xbf16>
    %49 = vector.shape_cast %48 : vector<1x28x120xbf16> to vector<28x120xbf16>
    %cst_50 = arith.constant dense<0.000000e+00> : vector<48x120xf32>
    %50 = tpu.matmul %43, %49, %cst_50 {dimension_numbers = #tpu.dot_dimension_numbers<[1], [0], [0], [1], [0, 0, 1, 1], [], []>} : vector<48x28xbf16>, vector<28x120xbf16>, vector<48x120xf32> -> vector<48x120xf32>
    %51 = arith.addf %41, %50 : vector<48x120xf32>
    %52 = arith.maximumf %47, %51 : vector<48x120xf32>
    %c0_51 = arith.constant 0 : index
    %c0_52 = arith.constant 0 : index
    %53 = vector.load %arg14[%c0_51, %c0_52] : memref<48x120xf32, #tpu.memory_space<vmem>>, vector<48x120xf32>
    tpu.vector_store %arg14[%c0_51, %c0_52], %52 {strides = array<i32>} : memref<48x120xf32, #tpu.memory_space<vmem>>, vector<48x120xf32>,
    %c0_53 = arith.constant 0 : index
    %c0_54 = arith.constant 0 : index
    %54 = tpu.strided_load %arg14[%c0_53, %c0_54] {strides = array<i32: 2, 1>} : memref<48x120xf32, #tpu.memory_space<vmem>>, vector<24x120xf32>
    %c1_55 = arith.constant 1 : index
    %c0_56 = arith.constant 0 : index
    %55 = tpu.strided_load %arg14[%c1_55, %c0_56] {strides = array<i32: 2, 1>} : memref<48x120xf32, #tpu.memory_space<vmem>>, vector<24x120xf32>
    %56 = arith.maximumf %54, %55 : vector<24x120xf32>
    %c0_57 = arith.constant 0 : index
    %c0_58 = arith.constant 0 : index
    %57 = vector.load %arg4[%c0_57, %c0_58] : memref<1x120xf32, #tpu.memory_space<vmem>>, vector<1x120xf32>
    %58 = vector.broadcast %57 : vector<1x120xf32> to vector<24x120xf32>
    %59 = arith.addf %56, %58 : vector<24x120xf32>
    %cst_59 = arith.constant 0.000000e+00 : f32
    %60 = vector.broadcast %cst_59 : f32 to vector<24x120xf32>
    %61 = arith.maximumf %59, %60 : vector<24x120xf32>
    %c0_60 = arith.constant 0 : index
    %c0_61 = arith.constant 0 : index
    %62 = vector.load %arg15[%c0_60, %c0_61] : memref<24x120xf32, #tpu.memory_space<vmem>>, vector<24x120xf32>
    tpu.vector_store %arg15[%c0_60, %c0_61], %61 {strides = array<i32>} : memref<24x120xf32, #tpu.memory_space<vmem>>, vector<24x120xf32>,
    %cst_62 = arith.constant 0.000000e+00 : f32
    %63 = vector.broadcast %cst_62 : f32 to vector<16x32xf32>
    %cst_63 = arith.constant 0.000000e+00 : f32
    %64 = vector.broadcast %cst_63 : f32 to vector<16x32xf32>
    %c0_64 = arith.constant 0 : index
    %c0_65 = arith.constant 0 : index
    %65 = vector.load %arg15[%c0_64, %c0_65] : memref<24x120xf32, #tpu.memory_space<vmem>>, vector<16x120xf32>
    %66 = arith.truncf %65 : vector<16x120xf32> to vector<16x120xbf16>
    %c0_66 = arith.constant 0 : index
    %c0_67 = arith.constant 0 : index
    %c0_68 = arith.constant 0 : index
    %67 = vector.load %arg5[%c0_66, %c0_67, %c0_68] : memref<5x120x32xbf16, #tpu.memory_space<vmem>>, vector<1x120x32xbf16>
    %68 = vector.shape_cast %67 : vector<1x120x32xbf16> to vector<120x32xbf16>
    %cst_69 = arith.constant dense<0.000000e+00> : vector<16x32xf32>
    %69 = tpu.matmul %66, %68, %cst_69 {dimension_numbers = #tpu.dot_dimension_numbers<[1], [0], [0], [1], [0, 0, 1, 1], [], []>} : vector<16x120xbf16>, vector<120x32xbf16>, vector<16x32xf32> -> vector<16x32xf32>
    %70 = arith.addf %63, %69 : vector<16x32xf32>
    %c0_70 = arith.constant 0 : index
    %c0_71 = arith.constant 0 : index
    %c0_72 = arith.constant 0 : index
    %71 = vector.load %arg6[%c0_70, %c0_71, %c0_72] : memref<5x120x32xbf16, #tpu.memory_space<vmem>>, vector<1x120x32xbf16>
    %72 = vector.shape_cast %71 : vector<1x120x32xbf16> to vector<120x32xbf16>
    %cst_73 = arith.constant dense<0.000000e+00> : vector<16x32xf32>
    %73 = tpu.matmul %66, %72, %cst_73 {dimension_numbers = #tpu.dot_dimension_numbers<[1], [0], [0], [1], [0, 0, 1, 1], [], []>} : vector<16x120xbf16>, vector<120x32xbf16>, vector<16x32xf32> -> vector<16x32xf32>
    %74 = arith.addf %64, %73 : vector<16x32xf32>
    %c1_74 = arith.constant 1 : index
    %c0_75 = arith.constant 0 : index
    %75 = vector.load %arg15[%c1_74, %c0_75] : memref<24x120xf32, #tpu.memory_space<vmem>>, vector<16x120xf32>
    %76 = arith.truncf %75 : vector<16x120xf32> to vector<16x120xbf16>
    %c1_76 = arith.constant 1 : index
    %c0_77 = arith.constant 0 : index
    %c0_78 = arith.constant 0 : index
    %77 = vector.load %arg5[%c1_76, %c0_77, %c0_78] : memref<5x120x32xbf16, #tpu.memory_space<vmem>>, vector<1x120x32xbf16>
    %78 = vector.shape_cast %77 : vector<1x120x32xbf16> to vector<120x32xbf16>
    %cst_79 = arith.constant dense<0.000000e+00> : vector<16x32xf32>
    %79 = tpu.matmul %76, %78, %cst_79 {dimension_numbers = #tpu.dot_dimension_numbers<[1], [0], [0], [1], [0, 0, 1, 1], [], []>} : vector<16x120xbf16>, vector<120x32xbf16>, vector<16x32xf32> -> vector<16x32xf32>
    %80 = arith.addf %70, %79 : vector<16x32xf32>
    %c1_80 = arith.constant 1 : index
    %c0_81 = arith.constant 0 : index
    %c0_82 = arith.constant 0 : index
    %81 = vector.load %arg6[%c1_80, %c0_81, %c0_82] : memref<5x120x32xbf16, #tpu.memory_space<vmem>>, vector<1x120x32xbf16>
    %82 = vector.shape_cast %81 : vector<1x120x32xbf16> to vector<120x32xbf16>
    %cst_83 = arith.constant dense<0.000000e+00> : vector<16x32xf32>
    %83 = tpu.matmul %76, %82, %cst_83 {dimension_numbers = #tpu.dot_dimension_numbers<[1], [0], [0], [1], [0, 0, 1, 1], [], []>} : vector<16x120xbf16>, vector<120x32xbf16>, vector<16x32xf32> -> vector<16x32xf32>
    %84 = arith.addf %74, %83 : vector<16x32xf32>
    %c2_84 = arith.constant 2 : index
    %c0_85 = arith.constant 0 : index
    %85 = vector.load %arg15[%c2_84, %c0_85] : memref<24x120xf32, #tpu.memory_space<vmem>>, vector<16x120xf32>
    %86 = arith.truncf %85 : vector<16x120xf32> to vector<16x120xbf16>
    %c2_86 = arith.constant 2 : index
    %c0_87 = arith.constant 0 : index
    %c0_88 = arith.constant 0 : index
    %87 = vector.load %arg5[%c2_86, %c0_87, %c0_88] : memref<5x120x32xbf16, #tpu.memory_space<vmem>>, vector<1x120x32xbf16>
    %88 = vector.shape_cast %87 : vector<1x120x32xbf16> to vector<120x32xbf16>
    %cst_89 = arith.constant dense<0.000000e+00> : vector<16x32xf32>
    %89 = tpu.matmul %86, %88, %cst_89 {dimension_numbers = #tpu.dot_dimension_numbers<[1], [0], [0], [1], [0, 0, 1, 1], [], []>} : vector<16x120xbf16>, vector<120x32xbf16>, vector<16x32xf32> -> vector<16x32xf32>
    %90 = arith.addf %80, %89 : vector<16x32xf32>
    %c2_90 = arith.constant 2 : index
    %c0_91 = arith.constant 0 : index
    %c0_92 = arith.constant 0 : index
    %91 = vector.load %arg6[%c2_90, %c0_91, %c0_92] : memref<5x120x32xbf16, #tpu.memory_space<vmem>>, vector<1x120x32xbf16>
    %92 = vector.shape_cast %91 : vector<1x120x32xbf16> to vector<120x32xbf16>
    %cst_93 = arith.constant dense<0.000000e+00> : vector<16x32xf32>
    %93 = tpu.matmul %86, %92, %cst_93 {dimension_numbers = #tpu.dot_dimension_numbers<[1], [0], [0], [1], [0, 0, 1, 1], [], []>} : vector<16x120xbf16>, vector<120x32xbf16>, vector<16x32xf32> -> vector<16x32xf32>
    %94 = arith.addf %84, %93 : vector<16x32xf32>
    %c3_94 = arith.constant 3 : index
    %c0_95 = arith.constant 0 : index
    %95 = vector.load %arg15[%c3_94, %c0_95] : memref<24x120xf32, #tpu.memory_space<vmem>>, vector<16x120xf32>
    %96 = arith.truncf %95 : vector<16x120xf32> to vector<16x120xbf16>
    %c3_96 = arith.constant 3 : index
    %c0_97 = arith.constant 0 : index
    %c0_98 = arith.constant 0 : index
    %97 = vector.load %arg5[%c3_96, %c0_97, %c0_98] : memref<5x120x32xbf16, #tpu.memory_space<vmem>>, vector<1x120x32xbf16>
    %98 = vector.shape_cast %97 : vector<1x120x32xbf16> to vector<120x32xbf16>
    %cst_99 = arith.constant dense<0.000000e+00> : vector<16x32xf32>
    %99 = tpu.matmul %96, %98, %cst_99 {dimension_numbers = #tpu.dot_dimension_numbers<[1], [0], [0], [1], [0, 0, 1, 1], [], []>} : vector<16x120xbf16>, vector<120x32xbf16>, vector<16x32xf32> -> vector<16x32xf32>
    %100 = arith.addf %90, %99 : vector<16x32xf32>
    %c3_100 = arith.constant 3 : index
    %c0_101 = arith.constant 0 : index
    %c0_102 = arith.constant 0 : index
    %101 = vector.load %arg6[%c3_100, %c0_101, %c0_102] : memref<5x120x32xbf16, #tpu.memory_space<vmem>>, vector<1x120x32xbf16>
    %102 = vector.shape_cast %101 : vector<1x120x32xbf16> to vector<120x32xbf16>
    %cst_103 = arith.constant dense<0.000000e+00> : vector<16x32xf32>
    %103 = tpu.matmul %96, %102, %cst_103 {dimension_numbers = #tpu.dot_dimension_numbers<[1], [0], [0], [1], [0, 0, 1, 1], [], []>} : vector<16x120xbf16>, vector<120x32xbf16>, vector<16x32xf32> -> vector<16x32xf32>
    %104 = arith.addf %94, %103 : vector<16x32xf32>
    %c4_104 = arith.constant 4 : index
    %c0_105 = arith.constant 0 : index
    %105 = vector.load %arg15[%c4_104, %c0_105] : memref<24x120xf32, #tpu.memory_space<vmem>>, vector<16x120xf32>
    %106 = arith.truncf %105 : vector<16x120xf32> to vector<16x120xbf16>
    %c4_106 = arith.constant 4 : index
    %c0_107 = arith.constant 0 : index
    %c0_108 = arith.constant 0 : index
    %107 = vector.load %arg5[%c4_106, %c0_107, %c0_108] : memref<5x120x32xbf16, #tpu.memory_space<vmem>>, vector<1x120x32xbf16>
    %108 = vector.shape_cast %107 : vector<1x120x32xbf16> to vector<120x32xbf16>
    %cst_109 = arith.constant dense<0.000000e+00> : vector<16x32xf32>
    %109 = tpu.matmul %106, %108, %cst_109 {dimension_numbers = #tpu.dot_dimension_numbers<[1], [0], [0], [1], [0, 0, 1, 1], [], []>} : vector<16x120xbf16>, vector<120x32xbf16>, vector<16x32xf32> -> vector<16x32xf32>
    %110 = arith.addf %100, %109 : vector<16x32xf32>
    %c4_110 = arith.constant 4 : index
    %c0_111 = arith.constant 0 : index
    %c0_112 = arith.constant 0 : index
    %111 = vector.load %arg6[%c4_110, %c0_111, %c0_112] : memref<5x120x32xbf16, #tpu.memory_space<vmem>>, vector<1x120x32xbf16>
    %112 = vector.shape_cast %111 : vector<1x120x32xbf16> to vector<120x32xbf16>
    %cst_113 = arith.constant dense<0.000000e+00> : vector<16x32xf32>
    %113 = tpu.matmul %106, %112, %cst_113 {dimension_numbers = #tpu.dot_dimension_numbers<[1], [0], [0], [1], [0, 0, 1, 1], [], []>} : vector<16x120xbf16>, vector<120x32xbf16>, vector<16x32xf32> -> vector<16x32xf32>
    %114 = arith.addf %104, %113 : vector<16x32xf32>
    %115 = arith.maximumf %110, %114 : vector<16x32xf32>
    %c0_114 = arith.constant 0 : index
    %c0_115 = arith.constant 0 : index
    %116 = vector.load %arg16[%c0_114, %c0_115] : memref<16x32xf32, #tpu.memory_space<vmem>>, vector<16x32xf32>
    tpu.vector_store %arg16[%c0_114, %c0_115], %115 {strides = array<i32>} : memref<16x32xf32, #tpu.memory_space<vmem>>, vector<16x32xf32>,
    %c0_116 = arith.constant 0 : index
    %c0_117 = arith.constant 0 : index
    %117 = tpu.strided_load %arg16[%c0_116, %c0_117] {strides = array<i32: 2, 1>} : memref<16x32xf32, #tpu.memory_space<vmem>>, vector<8x32xf32>
    %c1_118 = arith.constant 1 : index
    %c0_119 = arith.constant 0 : index
    %118 = tpu.strided_load %arg16[%c1_118, %c0_119] {strides = array<i32: 2, 1>} : memref<16x32xf32, #tpu.memory_space<vmem>>, vector<8x32xf32>
    %119 = arith.maximumf %117, %118 : vector<8x32xf32>
    %c0_120 = arith.constant 0 : index
    %c0_121 = arith.constant 0 : index
    %120 = vector.load %arg7[%c0_120, %c0_121] : memref<1x32xf32, #tpu.memory_space<vmem>>, vector<1x32xf32>
    %121 = vector.broadcast %120 : vector<1x32xf32> to vector<8x32xf32>
    %122 = arith.addf %119, %121 : vector<8x32xf32>
    %cst_122 = arith.constant 0.000000e+00 : f32
    %123 = vector.broadcast %cst_122 : f32 to vector<8x32xf32>
    %124 = arith.maximumf %122, %123 : vector<8x32xf32>
    %c0_123 = arith.constant 0 : index
    %c0_124 = arith.constant 0 : index
    %125 = vector.load %arg17[%c0_123, %c0_124] : memref<8x32xf32, #tpu.memory_space<vmem>>, vector<8x32xf32>
    tpu.vector_store %arg17[%c0_123, %c0_124], %124 {strides = array<i32>} : memref<8x32xf32, #tpu.memory_space<vmem>>, vector<8x32xf32>,
    %cst_125 = arith.constant 0.000000e+00 : f32
    %126 = vector.broadcast %cst_125 : f32 to vector<1x50xf32>
    %c0_126 = arith.constant 0 : index
    %c0_127 = arith.constant 0 : index
    %127 = vector.load %arg17[%c0_126, %c0_127] : memref<8x32xf32, #tpu.memory_space<vmem>>, vector<1x32xf32>
    %128 = arith.truncf %127 : vector<1x32xf32> to vector<1x32xbf16>
    %c0_128 = arith.constant 0 : index
    %c0_129 = arith.constant 0 : index
    %c0_130 = arith.constant 0 : index
    %129 = vector.load %arg8[%c0_128, %c0_129, %c0_130] : memref<4x32x50xbf16, #tpu.memory_space<vmem>>, vector<1x32x50xbf16>
    %130 = vector.shape_cast %129 : vector<1x32x50xbf16> to vector<32x50xbf16>
    %cst_131 = arith.constant dense<0.000000e+00> : vector<1x50xf32>
    %131 = tpu.matmul %128, %130, %cst_131 {dimension_numbers = #tpu.dot_dimension_numbers<[1], [0], [0], [1], [0, 0, 1, 1], [], []>} : vector<1x32xbf16>, vector<32x50xbf16>, vector<1x50xf32> -> vector<1x50xf32>
    %132 = arith.addf %126, %131 : vector<1x50xf32>
    %c1_132 = arith.constant 1 : index
    %c0_133 = arith.constant 0 : index
    %133 = vector.load %arg17[%c1_132, %c0_133] : memref<8x32xf32, #tpu.memory_space<vmem>>, vector<1x32xf32>
    %134 = arith.truncf %133 : vector<1x32xf32> to vector<1x32xbf16>
    %c1_134 = arith.constant 1 : index
    %c0_135 = arith.constant 0 : index
    %c0_136 = arith.constant 0 : index
    %135 = vector.load %arg8[%c1_134, %c0_135, %c0_136] : memref<4x32x50xbf16, #tpu.memory_space<vmem>>, vector<1x32x50xbf16>
    %136 = vector.shape_cast %135 : vector<1x32x50xbf16> to vector<32x50xbf16>
    %cst_137 = arith.constant dense<0.000000e+00> : vector<1x50xf32>
    %137 = tpu.matmul %134, %136, %cst_137 {dimension_numbers = #tpu.dot_dimension_numbers<[1], [0], [0], [1], [0, 0, 1, 1], [], []>} : vector<1x32xbf16>, vector<32x50xbf16>, vector<1x50xf32> -> vector<1x50xf32>
    %138 = arith.addf %132, %137 : vector<1x50xf32>
    %c2_138 = arith.constant 2 : index
    %c0_139 = arith.constant 0 : index
    %139 = vector.load %arg17[%c2_138, %c0_139] : memref<8x32xf32, #tpu.memory_space<vmem>>, vector<1x32xf32>
    %140 = arith.truncf %139 : vector<1x32xf32> to vector<1x32xbf16>
    %c2_140 = arith.constant 2 : index
    %c0_141 = arith.constant 0 : index
    %c0_142 = arith.constant 0 : index
    %141 = vector.load %arg8[%c2_140, %c0_141, %c0_142] : memref<4x32x50xbf16, #tpu.memory_space<vmem>>, vector<1x32x50xbf16>
    %142 = vector.shape_cast %141 : vector<1x32x50xbf16> to vector<32x50xbf16>
    %cst_143 = arith.constant dense<0.000000e+00> : vector<1x50xf32>
    %143 = tpu.matmul %140, %142, %cst_143 {dimension_numbers = #tpu.dot_dimension_numbers<[1], [0], [0], [1], [0, 0, 1, 1], [], []>} : vector<1x32xbf16>, vector<32x50xbf16>, vector<1x50xf32> -> vector<1x50xf32>
    %144 = arith.addf %138, %143 : vector<1x50xf32>
    %c3_144 = arith.constant 3 : index
    %c0_145 = arith.constant 0 : index
    %145 = vector.load %arg17[%c3_144, %c0_145] : memref<8x32xf32, #tpu.memory_space<vmem>>, vector<1x32xf32>
    %146 = arith.truncf %145 : vector<1x32xf32> to vector<1x32xbf16>
    %c3_146 = arith.constant 3 : index
    %c0_147 = arith.constant 0 : index
    %c0_148 = arith.constant 0 : index
    %147 = vector.load %arg8[%c3_146, %c0_147, %c0_148] : memref<4x32x50xbf16, #tpu.memory_space<vmem>>, vector<1x32x50xbf16>
    %148 = vector.shape_cast %147 : vector<1x32x50xbf16> to vector<32x50xbf16>
    %cst_149 = arith.constant dense<0.000000e+00> : vector<1x50xf32>
    %149 = tpu.matmul %146, %148, %cst_149 {dimension_numbers = #tpu.dot_dimension_numbers<[1], [0], [0], [1], [0, 0, 1, 1], [], []>} : vector<1x32xbf16>, vector<32x50xbf16>, vector<1x50xf32> -> vector<1x50xf32>
    %150 = arith.addf %144, %149 : vector<1x50xf32>
    %c0_150 = arith.constant 0 : index
    %c0_151 = arith.constant 0 : index
    %151 = vector.load %arg9[%c0_150, %c0_151] : memref<1x50xf32, #tpu.memory_space<vmem>>, vector<1x50xf32>
    %152 = arith.addf %150, %151 : vector<1x50xf32>
    %cst_152 = arith.constant 0.000000e+00 : f32
    %153 = vector.broadcast %cst_152 : f32 to vector<1x50xf32>
    %154 = arith.maximumf %152, %153 : vector<1x50xf32>
    %c0_153 = arith.constant 0 : index
    %c0_154 = arith.constant 0 : index
    %c0_155 = arith.constant 0 : index
    %155 = vector.load %arg13[%c0_153, %c0_154, %c0_155] : memref<1x1x50xf32, #tpu.memory_space<vmem>>, vector<1x1x50xf32>
    %156 = vector.shape_cast %155 : vector<1x1x50xf32> to vector<1x50xf32>
    %157 = vector.shape_cast %154 : vector<1x50xf32> to vector<1x1x50xf32>
    tpu.vector_store %arg13[%c0_153, %c0_154, %c0_155], %157 {strides = array<i32>} : memref<1x1x50xf32, #tpu.memory_space<vmem>>, vector<1x1x50xf32>,
    %158 = arith.truncf %154 : vector<1x50xf32> to vector<1x50xbf16>
    %c0_156 = arith.constant 0 : index
    %c0_157 = arith.constant 0 : index
    %159 = vector.load %arg10[%c0_156, %c0_157] : memref<50x10xbf16, #tpu.memory_space<vmem>>, vector<50x10xbf16>
    %cst_158 = arith.constant dense<0.000000e+00> : vector<1x10xf32>
    %160 = tpu.matmul %158, %159, %cst_158 {dimension_numbers = #tpu.dot_dimension_numbers<[1], [0], [0], [1], [0, 0, 1, 1], [], []>} : vector<1x50xbf16>, vector<50x10xbf16>, vector<1x10xf32> -> vector<1x10xf32>
    %c0_159 = arith.constant 0 : index
    %c0_160 = arith.constant 0 : index
    %161 = vector.load %arg11[%c0_159, %c0_160] : memref<1x10xf32, #tpu.memory_space<vmem>>, vector<1x10xf32>
    %162 = arith.addf %160, %161 : vector<1x10xf32>
    %cst_161 = arith.constant dense<0xFF800000> : vector<1xf32>
    %163 = vector.multi_reduction <maximumf>, %162, %cst_161 [1] : vector<1x10xf32> to vector<1xf32>
    %164 = vector.shape_cast %163 : vector<1xf32> to vector<1x1xf32>
    %165 = vector.broadcast %164 : vector<1x1xf32> to vector<1x10xf32>
    %166 = arith.subf %162, %165 : vector<1x10xf32>
    %167 = math.exp %166 : vector<1x10xf32>
    %cst_162 = arith.constant dense<0.000000e+00> : vector<1xf32>
    %168 = vector.multi_reduction <add>, %167, %cst_162 [1] : vector<1x10xf32> to vector<1xf32>
    %169 = vector.shape_cast %168 : vector<1xf32> to vector<1x1xf32>
    %170 = math.log %169 : vector<1x1xf32>
    %171 = vector.broadcast %170 : vector<1x1xf32> to vector<1x10xf32>
    %172 = arith.subf %166, %171 : vector<1x10xf32>
    %c0_163 = arith.constant 0 : index
    %c0_164 = arith.constant 0 : index
    %c0_165 = arith.constant 0 : index
    %173 = vector.load %arg12[%c0_163, %c0_164, %c0_165] : memref<1x1x10xf32, #tpu.memory_space<vmem>>, vector<1x1x10xf32>
    %174 = vector.shape_cast %173 : vector<1x1x10xf32> to vector<1x10xf32>
    %175 = vector.shape_cast %172 : vector<1x10xf32> to vector<1x1x10xf32>
    tpu.vector_store %arg12[%c0_163, %c0_164, %c0_165], %175 {strides = array<i32>} : memref<1x1x10xf32, #tpu.memory_space<vmem>>, vector<1x1x10xf32>,
    return
  }
  func.func @transform_0(%arg0: i32) -> (i32, i32, i32) {
    %c0_i32 = arith.constant 0 : i32
    %c0_i32_0 = arith.constant 0 : i32
    %c0_i32_1 = arith.constant 0 : i32
    return %arg0, %c0_i32, %c0_i32_0 : i32, i32, i32
  }
  func.func @transform_1(%arg0: i32) -> (i32, i32, i32) {
    %c0_i32 = arith.constant 0 : i32
    %c0_i32_0 = arith.constant 0 : i32
    %c0_i32_1 = arith.constant 0 : i32
    %c0_i32_2 = arith.constant 0 : i32
    return %c0_i32, %c0_i32_0, %c0_i32_1 : i32, i32, i32
  }
  func.func @transform_2(%arg0: i32) -> (i32, i32, i32) {
    %c0_i32 = arith.constant 0 : i32
    %c0_i32_0 = arith.constant 0 : i32
    %c0_i32_1 = arith.constant 0 : i32
    %c0_i32_2 = arith.constant 0 : i32
    return %c0_i32, %c0_i32_0, %c0_i32_1 : i32, i32, i32
  }
  func.func @transform_3(%arg0: i32) -> (i32, i32) {
    %c0_i32 = arith.constant 0 : i32
    %c0_i32_0 = arith.constant 0 : i32
    %c0_i32_1 = arith.constant 0 : i32
    return %c0_i32, %c0_i32_0 : i32, i32
  }
  func.func @transform_4(%arg0: i32) -> (i32, i32, i32) {
    %c0_i32 = arith.constant 0 : i32
    %c0_i32_0 = arith.constant 0 : i32
    %c0_i32_1 = arith.constant 0 : i32
    %c0_i32_2 = arith.constant 0 : i32
    return %c0_i32, %c0_i32_0, %c0_i32_1 : i32, i32, i32
  }
  func.func @transform_5(%arg0: i32) -> (i32, i32, i32) {
    %c0_i32 = arith.constant 0 : i32
    %c0_i32_0 = arith.constant 0 : i32
    %c0_i32_1 = arith.constant 0 : i32
    %c0_i32_2 = arith.constant 0 : i32
    return %c0_i32, %c0_i32_0, %c0_i32_1 : i32, i32, i32
  }
  func.func @transform_6(%arg0: i32) -> (i32, i32) {
    %c0_i32 = arith.constant 0 : i32
    %c0_i32_0 = arith.constant 0 : i32
    %c0_i32_1 = arith.constant 0 : i32
    return %c0_i32, %c0_i32_0 : i32, i32
  }
  func.func @transform_7(%arg0: i32) -> (i32, i32, i32) {
    %c0_i32 = arith.constant 0 : i32
    %c0_i32_0 = arith.constant 0 : i32
    %c0_i32_1 = arith.constant 0 : i32
    %c0_i32_2 = arith.constant 0 : i32
    return %c0_i32, %c0_i32_0, %c0_i32_1 : i32, i32, i32
  }
  func.func @transform_8(%arg0: i32) -> (i32, i32) {
    %c0_i32 = arith.constant 0 : i32
    %c0_i32_0 = arith.constant 0 : i32
    %c0_i32_1 = arith.constant 0 : i32
    return %c0_i32, %c0_i32_0 : i32, i32
  }
  func.func @transform_9(%arg0: i32) -> (i32, i32) {
    %c0_i32 = arith.constant 0 : i32
    %c0_i32_0 = arith.constant 0 : i32
    %c0_i32_1 = arith.constant 0 : i32
    return %c0_i32, %c0_i32_0 : i32, i32
  }
  func.func @transform_10(%arg0: i32) -> (i32, i32) {
    %c0_i32 = arith.constant 0 : i32
    %c0_i32_0 = arith.constant 0 : i32
    %c0_i32_1 = arith.constant 0 : i32
    return %c0_i32, %c0_i32_0 : i32, i32
  }
  func.func @transform_11(%arg0: i32) -> (i32, i32, i32) {
    %c0_i32 = arith.constant 0 : i32
    %c0_i32_0 = arith.constant 0 : i32
    %c0_i32_1 = arith.constant 0 : i32
    return %arg0, %c0_i32, %c0_i32_0 : i32, i32, i32
  }
  func.func @transform_12(%arg0: i32) -> (i32, i32, i32) {
    %c0_i32 = arith.constant 0 : i32
    %c0_i32_0 = arith.constant 0 : i32
    %c0_i32_1 = arith.constant 0 : i32
    return %arg0, %c0_i32, %c0_i32_0 : i32, i32, i32
  }
}

</mosaic_0001>

<llo_original>
// kernel: cnn_mnist_forward.1
$region0: #{cnn_mnist_forward.1}
  #allocation0 [shape = 'u32[]', space=smem, size = 0x4, offset = 0x4, fixed_abs, tag = 'smem constant byte address 0x4 - core index']
  #allocation1 [shape = 'u32[144,128]{1,0:T(1,128)}', space=vmem, size = 0x12000, scoped, tag = 'internal scratch']
  #allocation2 [shape = 'f32[48,120]{1,0:T(8,128)}', space=vmem, size = 0x6000, scoped, tag = 'scratch operand']
  #allocation3 [shape = 'f32[24,120]{1,0:T(8,128)}', space=vmem, size = 0x3000, scoped, tag = 'scratch operand']
  #allocation4 [shape = 'f32[16,32]{1,0:T(8,128)}', space=vmem, size = 0x2000, scoped, tag = 'scratch operand']
  #allocation5 [shape = 'f32[8,32]{1,0:T(8,128)}', space=vmem, size = 0x1000, scoped, tag = 'scratch operand']
  %s0 = inlined_call_operand.vmem [shape: bf16[2,56,28], index: 0, kind: input, shape index: {}]
  %s1 = inlined_call_operand.vmem [shape: bf16[5,28,120], index: 1, kind: input, shape index: {}]
  %s2 = inlined_call_operand.vmem [shape: bf16[5,28,120], index: 2, kind: input, shape index: {}]
  %s3 = inlined_call_operand.vmem [shape: f32[1,120], index: 3, kind: input, shape index: {}]
  %s4 = inlined_call_operand.vmem [shape: bf16[5,120,32], index: 4, kind: input, shape index: {}]
  %s5 = inlined_call_operand.vmem [shape: bf16[5,120,32], index: 5, kind: input, shape index: {}]
  %s6 = inlined_call_operand.vmem [shape: f32[1,32], index: 6, kind: input, shape index: {}]
  %s7 = inlined_call_operand.vmem [shape: bf16[4,32,50], index: 7, kind: input, shape index: {}]
  %s8 = inlined_call_operand.vmem [shape: f32[1,50], index: 8, kind: input, shape index: {}]
  %s9 = inlined_call_operand.vmem [shape: bf16[50,10], index: 9, kind: input, shape index: {}]
  %s10 = inlined_call_operand.vmem [shape: f32[1,10], index: 10, kind: input, shape index: {}]
  %s11 = inlined_call_operand.hbm [shape: f32[2,1,10], index: 11, kind: output, shape index: {0}]
  %s12 = inlined_call_operand.hbm [shape: f32[2,1,50], index: 12, kind: output, shape index: {1}]
  %13 = xla_tuple %s11, %s12
  %s14 = sld [smem:[#allocation0]]
  $region85: #{cnn_mnist_forward.1} parent=0
    _
  %s16 = ssub.s32 1, %s14
  %s17 = scalar_select 0, %s16, %s14
  $region1: #{cnn_mnist_forward.1} parent=0
    #allocation6 [shape = 'u8[1024]{0}', space=vmem, size = 0x400, scoped, tag = 'output window, operand 0']
    #allocation7 [shape = 's32[2]{0}', space=sflag, size = 0x8, scoped, tag = 'scoped memory for cnn_mnist_forward.1']
    #allocation8 [shape = 'u8[1024]{0}', space=vmem, size = 0x400, scoped, tag = 'output window, operand 1']
    #allocation9 [shape = 's32[2]{0}', space=sflag, size = 0x8, scoped, tag = 'scoped memory for cnn_mnist_forward.1']
    %18 = vsyncpa [#allocation7], 0
    %s19 = scalar_lea.sflag [#allocation7], 1
    %20 = vsyncpa %s19, 0
    %21 = vsyncpa [#allocation9], 0
    %s22 = scalar_lea.sflag [#allocation9], 1
    %23 = vsyncpa %s22, 0
    loop: start=0, step=1, limit=4
    $region2: #{cnn_mnist_forward.1} parent=1 // loop_pre_header
      _
    $region3: #{cnn_mnist_forward.1} parent=1 // loop_header
      %s25 = sphi 0, %s29
      %p26 = scmp.ge.s32.totalorder %s25, 4
      %s35 = sphi 0, %s37
      %s38 = sphi 0, %s35
      %s39 = sphi 0, %s38
      %s55 = sphi 0, %s39
      %s59 = sphi 0, %s59
      %s61 = sphi 0, %s59
      %s62 = sphi 0, %s61
      %s76 = sphi 0, %s62
      %s80 = sphi 0, %s80
      %s82 = sphi 0, %s80
      %s83 = sphi 0, %s82
      %s97 = sphi 0, %s83
      %s101 = sphi 0, %s101
      %s103 = sphi 0, %s101
      %s104 = sphi 0, %s103
      %s118 = sphi 0, %s104
      %s122 = sphi 0, %s122
      %s124 = sphi 0, %s122
      %s125 = sphi 0, %s124
      %s139 = sphi 0, %s125
      %s143 = sphi 0, %s143
      %s145 = sphi 0, %s143
      %s146 = sphi 0, %s145
      %s160 = sphi 0, %s146
      %s164 = sphi 0, %s164
      %s166 = sphi 0, %s164
      %s167 = sphi 0, %s166
      %s181 = sphi 0, %s167
      %s185 = sphi 0, %s185
      %s187 = sphi 0, %s185
      %s188 = sphi 0, %s187
      %s202 = sphi 0, %s188
      %s206 = sphi 0, %s206
      %s208 = sphi 0, %s206
      %s209 = sphi 0, %s208
      %s223 = sphi 0, %s209
      %s227 = sphi 0, %s227
      %s229 = sphi 0, %s227
      %s230 = sphi 0, %s229
      %s244 = sphi 0, %s230
      %s248 = sphi 0, %s248
      %s250 = sphi 0, %s248
      %s251 = sphi 0, %s250
      %s265 = sphi 0, %s251
      %s271 = sphi 0, %s273
      %s274 = sphi 0, %s271
      %s275 = sphi 0, %s274
      %s291 = sphi 0, %s275
      %s297 = sphi 0, %s299
      %s300 = sphi 0, %s297
      %s301 = sphi 0, %s300
      %s317 = sphi 0, %s301
    $region4: #{cnn_mnist_forward.1} parent=1 // loop_header_branch
      %28 = sbr.rel (%p26) target = $region8
    $region5: #{cnn_mnist_forward.1} parent=1 // loop_body
      %s30 = ssub.s32 %s25, 1
      %s31 = ssub.s32 %s25, 2
      %s32 = sadd.s32 %s25, 1
      %s33 = ssub.s32 %s25, %s32
      %p34 = scmp.eq.s32.totalorder %s33, 0
      %s36 = sadd.s32 %s35, 1
      %s37 = scalar_select %p34, %s35, %s36
      %p40 = pneg %p34
      %p41 = scmp.eq.s32.totalorder %s25, 1
      %p42 = por %p40, %p41
      %p43 = scmp.ne.s32.totalorder %s35, %s38
      %p44 = scmp.eq.s32.totalorder %s25, 0
      %p45 = por %p43, %p44
      %p46 = scmp.ne.s32.totalorder %s35, %s38
      %p47 = scmp.eq.s32.totalorder %s30, 1
      %p48 = por %p46, %p47
      %p49 = scmp.ne.s32.totalorder %s38, %s39
      %p50 = scmp.eq.s32.totalorder %s30, 0
      %p51 = por %p49, %p50
      %p52 = scmp.ne.s32.totalorder %s38, %s39
      %p53 = scmp.eq.s32.totalorder %s31, 1
      %p54 = por %p52, %p53
      %p56 = scmp.ne.s32.totalorder %s39, %s55
      %p57 = scmp.eq.s32.totalorder %s31, 0
      %p58 = por %p56, %p57
      %s60 = sadd.s32 %s59, 1
      %p63 = scmp.eq.s32.totalorder %s25, 1
      %p64 = scmp.ne.s32.totalorder %s59, %s61
      %p65 = scmp.eq.s32.totalorder %s25, 0
      %p66 = por %p64, %p65
      %p67 = scmp.ne.s32.totalorder %s59, %s61
      %p68 = scmp.eq.s32.totalorder %s30, 1
      %p69 = por %p67, %p68
      %p70 = scmp.ne.s32.totalorder %s61, %s62
      %p71 = scmp.eq.s32.totalorder %s30, 0
      %p72 = por %p70, %p71
      %p73 = scmp.ne.s32.totalorder %s61, %s62
      %p74 = scmp.eq.s32.totalorder %s31, 1
      %p75 = por %p73, %p74
      %p77 = scmp.ne.s32.totalorder %s62, %s76
      %p78 = scmp.eq.s32.totalorder %s31, 0
      %p79 = por %p77, %p78
      %s81 = sadd.s32 %s80, 1
      %p84 = scmp.eq.s32.totalorder %s25, 1
      %p85 = scmp.ne.s32.totalorder %s80, %s82
      %p86 = scmp.eq.s32.totalorder %s25, 0
      %p87 = por %p85, %p86
      %p88 = scmp.ne.s32.totalorder %s80, %s82
      %p89 = scmp.eq.s32.totalorder %s30, 1
      %p90 = por %p88, %p89
      %p91 = scmp.ne.s32.totalorder %s82, %s83
      %p92 = scmp.eq.s32.totalorder %s30, 0
      %p93 = por %p91, %p92
      %p94 = scmp.ne.s32.totalorder %s82, %s83
      %p95 = scmp.eq.s32.totalorder %s31, 1
      %p96 = por %p94, %p95
      %p98 = scmp.ne.s32.totalorder %s83, %s97
      %p99 = scmp.eq.s32.totalorder %s31, 0
      %p100 = por %p98, %p99
      %s102 = sadd.s32 %s101, 1
      %p105 = scmp.eq.s32.totalorder %s25, 1
      %p106 = scmp.ne.s32.totalorder %s101, %s103
      %p107 = scmp.eq.s32.totalorder %s25, 0
      %p108 = por %p106, %p107
      %p109 = scmp.ne.s32.totalorder %s101, %s103
      %p110 = scmp.eq.s32.totalorder %s30, 1
      %p111 = por %p109, %p110
      %p112 = scmp.ne.s32.totalorder %s103, %s104
      %p113 = scmp.eq.s32.totalorder %s30, 0
      %p114 = por %p112, %p113
      %p115 = scmp.ne.s32.totalorder %s103, %s104
      %p116 = scmp.eq.s32.totalorder %s31, 1
      %p117 = por %p115, %p116
      %p119 = scmp.ne.s32.totalorder %s104, %s118
      %p120 = scmp.eq.s32.totalorder %s31, 0
      %p121 = por %p119, %p120
      %s123 = sadd.s32 %s122, 1
      %p126 = scmp.eq.s32.totalorder %s25, 1
      %p127 = scmp.ne.s32.totalorder %s122, %s124
      %p128 = scmp.eq.s32.totalorder %s25, 0
      %p129 = por %p127, %p128
      %p130 = scmp.ne.s32.totalorder %s122, %s124
      %p131 = scmp.eq.s32.totalorder %s30, 1
      %p132 = por %p130, %p131
      %p133 = scmp.ne.s32.totalorder %s124, %s125
      %p134 = scmp.eq.s32.totalorder %s30, 0
      %p135 = por %p133, %p134
      %p136 = scmp.ne.s32.totalorder %s124, %s125
      %p137 = scmp.eq.s32.totalorder %s31, 1
      %p138 = por %p136, %p137
      %p140 = scmp.ne.s32.totalorder %s125, %s139
      %p141 = scmp.eq.s32.totalorder %s31, 0
      %p142 = por %p140, %p141
      %s144 = sadd.s32 %s143, 1
      %p147 = scmp.eq.s32.totalorder %s25, 1
      %p148 = scmp.ne.s32.totalorder %s143, %s145
      %p149 = scmp.eq.s32.totalorder %s25, 0
      %p150 = por %p148, %p149
      %p151 = scmp.ne.s32.totalorder %s143, %s145
      %p152 = scmp.eq.s32.totalorder %s30, 1
      %p153 = por %p151, %p152
      %p154 = scmp.ne.s32.totalorder %s145, %s146
      %p155 = scmp.eq.s32.totalorder %s30, 0
      %p156 = por %p154, %p155
      %p157 = scmp.ne.s32.totalorder %s145, %s146
      %p158 = scmp.eq.s32.totalorder %s31, 1
      %p159 = por %p157, %p158
      %p161 = scmp.ne.s32.totalorder %s146, %s160
      %p162 = scmp.eq.s32.totalorder %s31, 0
      %p163 = por %p161, %p162
      %s165 = sadd.s32 %s164, 1
      %p168 = scmp.eq.s32.totalorder %s25, 1
      %p169 = scmp.ne.s32.totalorder %s164, %s166
      %p170 = scmp.eq.s32.totalorder %s25, 0
      %p171 = por %p169, %p170
      %p172 = scmp.ne.s32.totalorder %s164, %s166
      %p173 = scmp.eq.s32.totalorder %s30, 1
      %p174 = por %p172, %p173
      %p175 = scmp.ne.s32.totalorder %s166, %s167
      %p176 = scmp.eq.s32.totalorder %s30, 0
      %p177 = por %p175, %p176
      %p178 = scmp.ne.s32.totalorder %s166, %s167
      %p179 = scmp.eq.s32.totalorder %s31, 1
      %p180 = por %p178, %p179
      %p182 = scmp.ne.s32.totalorder %s167, %s181
      %p183 = scmp.eq.s32.totalorder %s31, 0
      %p184 = por %p182, %p183
      %s186 = sadd.s32 %s185, 1
      %p189 = scmp.eq.s32.totalorder %s25, 1
      %p190 = scmp.ne.s32.totalorder %s185, %s187
      %p191 = scmp.eq.s32.totalorder %s25, 0
      %p192 = por %p190, %p191
      %p193 = scmp.ne.s32.totalorder %s185, %s187
      %p194 = scmp.eq.s32.totalorder %s30, 1
      %p195 = por %p193, %p194
      %p196 = scmp.ne.s32.totalorder %s187, %s188
      %p197 = scmp.eq.s32.totalorder %s30, 0
      %p198 = por %p196, %p197
      %p199 = scmp.ne.s32.totalorder %s187, %s188
      %p200 = scmp.eq.s32.totalorder %s31, 1
      %p201 = por %p199, %p200
      %p203 = scmp.ne.s32.totalorder %s188, %s202
      %p204 = scmp.eq.s32.totalorder %s31, 0
      %p205 = por %p203, %p204
      %s207 = sadd.s32 %s206, 1
      %p210 = scmp.eq.s32.totalorder %s25, 1
      %p211 = scmp.ne.s32.totalorder %s206, %s208
      %p212 = scmp.eq.s32.totalorder %s25, 0
      %p213 = por %p211, %p212
      %p214 = scmp.ne.s32.totalorder %s206, %s208
      %p215 = scmp.eq.s32.totalorder %s30, 1
      %p216 = por %p214, %p215
      %p217 = scmp.ne.s32.totalorder %s208, %s209
      %p218 = scmp.eq.s32.totalorder %s30, 0
      %p219 = por %p217, %p218
      %p220 = scmp.ne.s32.totalorder %s208, %s209
      %p221 = scmp.eq.s32.totalorder %s31, 1
      %p222 = por %p220, %p221
      %p224 = scmp.ne.s32.totalorder %s209, %s223
      %p225 = scmp.eq.s32.totalorder %s31, 0
      %p226 = por %p224, %p225
      %s228 = sadd.s32 %s227, 1
      %p231 = scmp.eq.s32.totalorder %s25, 1
      %p232 = scmp.ne.s32.totalorder %s227, %s229
      %p233 = scmp.eq.s32.totalorder %s25, 0
      %p234 = por %p232, %p233
      %p235 = scmp.ne.s32.totalorder %s227, %s229
      %p236 = scmp.eq.s32.totalorder %s30, 1
      %p237 = por %p235, %p236
      %p238 = scmp.ne.s32.totalorder %s229, %s230
      %p239 = scmp.eq.s32.totalorder %s30, 0
      %p240 = por %p238, %p239
      %p241 = scmp.ne.s32.totalorder %s229, %s230
      %p242 = scmp.eq.s32.totalorder %s31, 1
      %p243 = por %p241, %p242
      %p245 = scmp.ne.s32.totalorder %s230, %s244
      %p246 = scmp.eq.s32.totalorder %s31, 0
      %p247 = por %p245, %p246
      %s249 = sadd.s32 %s248, 1
      %p252 = scmp.eq.s32.totalorder %s25, 1
      %p253 = scmp.ne.s32.totalorder %s248, %s250
      %p254 = scmp.eq.s32.totalorder %s25, 0
      %p255 = por %p253, %p254
      %p256 = scmp.ne.s32.totalorder %s248, %s250
      %p257 = scmp.eq.s32.totalorder %s30, 1
      %p258 = por %p256, %p257
      %p259 = scmp.ne.s32.totalorder %s250, %s251
      %p260 = scmp.eq.s32.totalorder %s30, 0
      %p261 = por %p259, %p260
      %p262 = scmp.ne.s32.totalorder %s250, %s251
      %p263 = scmp.eq.s32.totalorder %s31, 1
      %p264 = por %p262, %p263
      %p266 = scmp.ne.s32.totalorder %s251, %s265
      %p267 = scmp.eq.s32.totalorder %s31, 0
      %p268 = por %p266, %p267
      %s269 = ssub.s32 %s25, %s32
      %p270 = scmp.eq.s32.totalorder %s269, 0
      %s272 = sadd.s32 %s271, 1
      %s273 = scalar_select %p270, %s271, %s272
      %p276 = pneg %p270
      %p277 = scmp.eq.s32.totalorder %s25, 1
      %p278 = por %p276, %p277
      %p279 = scmp.ne.s32.totalorder %s271, %s274
      %p280 = scmp.eq.s32.totalorder %s25, 0
      %p281 = por %p279, %p280
      %p282 = scmp.ne.s32.totalorder %s271, %s274
      %p283 = scmp.eq.s32.totalorder %s30, 1
      %p284 = por %p282, %p283
      %p285 = scmp.ne.s32.totalorder %s274, %s275
      %p286 = scmp.eq.s32.totalorder %s30, 0
      %p287 = por %p285, %p286
      %p288 = scmp.ne.s32.totalorder %s274, %s275
      %p289 = scmp.eq.s32.totalorder %s31, 1
      %p290 = por %p288, %p289
      %p292 = scmp.ne.s32.totalorder %s275, %s291
      %p293 = scmp.eq.s32.totalorder %s31, 0
      %p294 = por %p292, %p293
      %s295 = ssub.s32 %s25, %s32
      %p296 = scmp.eq.s32.totalorder %s295, 0
      %s298 = sadd.s32 %s297, 1
      %s299 = scalar_select %p296, %s297, %s298
      %p302 = pneg %p296
      %p303 = scmp.eq.s32.totalorder %s25, 1
      %p304 = por %p302, %p303
      %p305 = scmp.ne.s32.totalorder %s297, %s300
      %p306 = scmp.eq.s32.totalorder %s25, 0
      %p307 = por %p305, %p306
      %p308 = scmp.ne.s32.totalorder %s297, %s300
      %p309 = scmp.eq.s32.totalorder %s30, 1
      %p310 = por %p308, %p309
      %p311 = scmp.ne.s32.totalorder %s300, %s301
      %p312 = scmp.eq.s32.totalorder %s30, 0
      %p313 = por %p311, %p312
      %p314 = scmp.ne.s32.totalorder %s300, %s301
      %p315 = scmp.eq.s32.totalorder %s31, 1
      %p316 = por %p314, %p315
      %p318 = scmp.ne.s32.totalorder %s301, %s317
      %p319 = scmp.eq.s32.totalorder %s31, 0
      %p320 = por %p318, %p319
      %p321 = scmp.le.s32.totalorder 1, %s25
      %p322 = scmp.lt.s32.totalorder %s25, 3
      %p323 = pnand %p321, %p322
      %p324 = pneg %p323
      // Predicated region
      $region9: #{cnn_mnist_forward.1} parent=5 // pred_check
        _
      $region10: #{cnn_mnist_forward.1} parent=5 // pred_check_branch
        %326 = sbr.rel (%p323) target = $region12
      $region11: #{cnn_mnist_forward.1} parent=5 // pred_region
        %s327 = ssub.s32 %s25, 1
        // Predicated region
        $region13: #{cnn_mnist_forward.1} parent=11 // pred_check
          %p328 = pneg %p72
        $region14: #{cnn_mnist_forward.1} parent=11 // pred_check_branch
          %330 = sbr.rel (%p328) target = $region16
        $region15: #{cnn_mnist_forward.1} parent=11 // pred_region
          _
        $region16: #{cnn_mnist_forward.1} parent=11 // pred_fallthru
          _
        // Predicated region
        $region17: #{cnn_mnist_forward.1} parent=11 // pred_check
          %p331 = pneg %p93
        $region18: #{cnn_mnist_forward.1} parent=11 // pred_check_branch
          %333 = sbr.rel (%p331) target = $region20
        $region19: #{cnn_mnist_forward.1} parent=11 // pred_region
          _
        $region20: #{cnn_mnist_forward.1} parent=11 // pred_fallthru
          _
        // Predicated region
        $region21: #{cnn_mnist_forward.1} parent=11 // pred_check
          %p334 = pneg %p114
        $region22: #{cnn_mnist_forward.1} parent=11 // pred_check_branch
          %336 = sbr.rel (%p334) target = $region24
        $region23: #{cnn_mnist_forward.1} parent=11 // pred_region
          _
        $region24: #{cnn_mnist_forward.1} parent=11 // pred_fallthru
          _
        // Predicated region
        $region25: #{cnn_mnist_forward.1} parent=11 // pred_check
          %p337 = pneg %p135
        $region26: #{cnn_mnist_forward.1} parent=11 // pred_check_branch
          %339 = sbr.rel (%p337) target = $region28
        $region27: #{cnn_mnist_forward.1} parent=11 // pred_region
          _
        $region28: #{cnn_mnist_forward.1} parent=11 // pred_fallthru
          _
        // Predicated region
        $region29: #{cnn_mnist_forward.1} parent=11 // pred_check
          %p340 = pneg %p156
        $region30: #{cnn_mnist_forward.1} parent=11 // pred_check_branch
          %342 = sbr.rel (%p340) target = $region32
        $region31: #{cnn_mnist_forward.1} parent=11 // pred_region
          _
        $region32: #{cnn_mnist_forward.1} parent=11 // pred_fallthru
          _
        // Predicated region
        $region33: #{cnn_mnist_forward.1} parent=11 // pred_check
          %p343 = pneg %p177
        $region34: #{cnn_mnist_forward.1} parent=11 // pred_check_branch
          %345 = sbr.rel (%p343) target = $region36
        $region35: #{cnn_mnist_forward.1} parent=11 // pred_region
          _
        $region36: #{cnn_mnist_forward.1} parent=11 // pred_fallthru
          _
        // Predicated region
        $region37: #{cnn_mnist_forward.1} parent=11 // pred_check
          %p346 = pneg %p198
        $region38: #{cnn_mnist_forward.1} parent=11 // pred_check_branch
          %348 = sbr.rel (%p346) target = $region40
        $region39: #{cnn_mnist_forward.1} parent=11 // pred_region
          _
        $region40: #{cnn_mnist_forward.1} parent=11 // pred_fallthru
          _
        // Predicated region
        $region41: #{cnn_mnist_forward.1} parent=11 // pred_check
          %p349 = pneg %p219
        $region42: #{cnn_mnist_forward.1} parent=11 // pred_check_branch
          %351 = sbr.rel (%p349) target = $region44
        $region43: #{cnn_mnist_forward.1} parent=11 // pred_region
          _
        $region44: #{cnn_mnist_forward.1} parent=11 // pred_fallthru
          _
        // Predicated region
        $region45: #{cnn_mnist_forward.1} parent=11 // pred_check
          %p352 = pneg %p240
        $region46: #{cnn_mnist_forward.1} parent=11 // pred_check_branch
          %354 = sbr.rel (%p352) target = $region48
        $region47: #{cnn_mnist_forward.1} parent=11 // pred_region
          _
        $region48: #{cnn_mnist_forward.1} parent=11 // pred_fallthru
          _
        // Predicated region
        $region49: #{cnn_mnist_forward.1} parent=11 // pred_check
          %p355 = pneg %p261
        $region50: #{cnn_mnist_forward.1} parent=11 // pred_check_branch
          %357 = sbr.rel (%p355) target = $region52
        $region51: #{cnn_mnist_forward.1} parent=11 // pred_region
          _
        $region52: #{cnn_mnist_forward.1} parent=11 // pred_fallthru
          _
      $region12: #{cnn_mnist_forward.1} parent=5 // pred_fallthru
        _
      %p358 = scmp.lt.s32.totalorder %s25, 2
      // Predicated region
      $region53: #{cnn_mnist_forward.1} parent=5 // pred_check
        %p359 = pneg %p358
      $region54: #{cnn_mnist_forward.1} parent=5 // pred_check_branch
        %361 = sbr.rel (%p359) target = $region56
      $region55: #{cnn_mnist_forward.1} parent=5 // pred_region
        // Predicated region
        $region57: #{cnn_mnist_forward.1} parent=55 // pred_check
          %p362 = pneg %p45
        $region58: #{cnn_mnist_forward.1} parent=55 // pred_check_branch
          %364 = sbr.rel (%p362) target = $region60
        $region59: #{cnn_mnist_forward.1} parent=55 // pred_region
          %p365 = scmp.lt.s32.totalorder %s25, 1
          %s366 = scalar_select %p365, %s25, 1
          %s367 = smul.addr %s366, 7
          %s368 = smul.addr %s367, 4
          %s369 = scalar_lea.vmem %s0, %s368
        $region60: #{cnn_mnist_forward.1} parent=55 // pred_fallthru
          _
      $region56: #{cnn_mnist_forward.1} parent=5 // pred_fallthru
        _
      %p370 = scmp.le.s32.totalorder 1, %s25
      %p371 = scmp.lt.s32.totalorder %s25, 3
      %p372 = pnand %p370, %p371
      %p373 = pneg %p372
      // Predicated region
      $region61: #{cnn_mnist_forward.1} parent=5 // pred_check
        _
      $region62: #{cnn_mnist_forward.1} parent=5 // pred_check_branch
        %375 = sbr.rel (%p372) target = $region64
      $region63: #{cnn_mnist_forward.1} parent=5 // pred_region
        %s376 = ssub.s32 %s25, 1
        %p377 = scmp.lt.s32.totalorder %s30, 1
        %s378 = scalar_select %p377, %s30, 1
        %s379 = smul.addr %s378, 7
        %s380 = smul.addr %s379, 4
        %s381 = scalar_lea.vmem %s0, %s380
        %p382 = pneg %p51
        %p383 = pneg %p48
        %p384 = pneg %p72
        %p385 = pneg %p69
        %p386 = pneg %p93
        %p387 = pneg %p90
        %p388 = pneg %p114
        %p389 = pneg %p111
        %p390 = pneg %p135
        %p391 = pneg %p132
        %p392 = pneg %p156
        %p393 = pneg %p153
        %p394 = pneg %p177
        %p395 = pneg %p174
        %p396 = pneg %p198
        %p397 = pneg %p195
        %p398 = pneg %p219
        %p399 = pneg %p216
        %p400 = pneg %p240
        %p401 = pneg %p237
        %p402 = pneg %p261
        %p403 = pneg %p258
        %p404 = pneg %p287
        %p405 = pneg %p284
        %s406 = sand.u32 %s274, 1
        %s407 = scalar_lea.sflag [#allocation7], %s406
        %s408 = sand.u32 %s274, 1
        %s409 = scalar_lea.vmem [#allocation6], %s408
        %p410 = pneg %p313
        %p411 = pneg %p310
        %s412 = sand.u32 %s300, 1
        %s413 = scalar_lea.sflag [#allocation9], %s412
        %s414 = sand.u32 %s300, 1
        %s415 = scalar_lea.vmem [#allocation8], %s414
        %p416 = scmp.lt.s32.totalorder %s30, 1
        %s417 = scalar_select %p416, %s30, 1
        %s418 = smul.addr %s417, 7
        %s419 = smul.addr %s418, 4
        %s420 = scalar_lea.vmem %s0, %s419
        %v422 = vld [vmem:[%s420] sm:$0xf]
        %v423 = vld [vmem:[%s420 + $0x4] sm:$0xf]
        %v424 = vld [vmem:[%s420 + $0x8] sm:$0xf]
        %v425 = vld [vmem:[%s420 + $0xc] sm:$0xf]
        %v426 = vld [vmem:[%s420 + $0x10] sm:$0xf]
        %v427 = vld [vmem:[%s420 + $0x14] sm:$0xf]
        %v428 = vld [vmem:[%s1] sm:$0xf]
        %v429 = vld [vmem:[%s1 + $0x4] sm:$0xf]
        %v430 = vld [vmem:[%s1 + $0x8] sm:$0xf]
        %v431 = vld [vmem:[%s1 + $0xc] sm:$0x3]
        %v432 = vld [vmem:[%s2] sm:$0xf]
        %v433 = vld [vmem:[%s2 + $0x4] sm:$0xf]
        %v434 = vld [vmem:[%s2 + $0x8] sm:$0xf]
        %v435 = vld [vmem:[%s2 + $0xc] sm:$0x3]
        %v436 = vld [vmem:[%s420 + $0x18] sm:$0x1]
        %s437 = scalar_lea.vmem %s1, 16
        %v438 = vld [vmem:[%s437] sm:$0xf]
        %v439 = vld [vmem:[%s437 + $0x4] sm:$0xf]
        %v440 = vld [vmem:[%s437 + $0x8] sm:$0xf]
        %v441 = vld [vmem:[%s437 + $0xc] sm:$0x3]
        %v449 = vunpack.c.l.b16 %v422
        %v450 = vunpack.c.l.b16 %v423
        %v451 = vunpack.c.l.b16 %v424
        %v452 = vunpack.c.l.b16 %v425
        %v453 = vunpack.c.l.b16 %v426
        %v454 = vunpack.c.l.b16 %v427
        %v455 = vunpack.c.l.b16 %v436
        %v456 = vpack.c.b16 %v450, %v449
        %v457 = vpack.c.b16 %v452, %v451
        %v458 = vpack.c.b16 %v454, %v453
        %v459 = vpack.c.b16 %v455, %v455
        %vm460 = vsmask.f32 7424
        %v462 = vshrl.u32 %v456, 16
        %v464 = vshll.u32 %v456, 16
        %v466 = vrot.slane %v464, 1
        %v467 = vor.u32 %v462, %v466
        %v469 = vshll.u32 %v457, 16
        %v471 = vrot.slane %v469, 1
        %v472 = vsel %vm460, %v467, %v471
        %v473 = vshrl.u32 %v457, 16
        %v475 = vor.u32 %v473, %v471
        %v477 = vshll.u32 %v458, 16
        %v479 = vrot.slane %v477, 1
        %v480 = vsel %vm460, %v475, %v479
        %v481 = vshrl.u32 %v458, 16
        %v483 = vor.u32 %v481, %v479
        %v485 = vshll.u32 %v459, 16
        %v487 = vrot.slane %v485, 1
        %v488 = vsel %vm460, %v483, %v487
        %v493 = vunpack.c.l.b16 %v438
        %v494 = vunpack.c.l.b16 %v439
        %v495 = vunpack.c.l.b16 %v440
        %v496 = vunpack.c.l.b16 %v441
        %v497 = vpack.c.b16 %v494, %v493
        %v498 = vpack.c.b16 %v496, %v495
        %vm500 = vcmask 228352
        %v502 = vsel %vm500, %v472, 0
        %v505 = vsel %vm500, %v480, 0
        %v508 = vsel %vm500, %v488, 0
        %vm510 = vcmask 1045504
        %v512 = vsel %vm510, %v498, 0
        %514 = vmatprep.subr.bf16.mxu0 0
        %515 = vmatpush1.bf16.msra.mxu0 %v497
        %516 = vmatprep.subr.bf16.mxu0 0
        %517 = vmatpush1.bf16.msra.mxu0 %v512
        %518 = vmatprep.subr.bf16.mxu0 0
        %519 = vmatpush1.bf16.msra.mxu0 0
        %520 = vmatprep.subr.bf16.mxu0 0
        %521 = vmatpush1.bf16.msra.mxu0 0
        %522 = vmatprep.subr.bf16.mxu0 0
        %523 = vmatpush1.bf16.msra.mxu0 0
        %524 = vmatprep.subr.bf16.mxu0 0
        %525 = vmatpush1.bf16.msra.mxu0 0
        %526 = vmatprep.subr.bf16.mxu0 0
        %527 = vmatpush1.bf16.msra.mxu0 0
        %528 = vmatprep.subr.bf16.mxu0 0
        %529 = vmatpush1.bf16.msra.mxu0 0
        %530 = vmatprep.subr.bf16.mxu0 0
        %531 = vmatpush1.bf16.msra.mxu0 0
        %532 = vmatprep.subr.bf16.mxu0 0
        %533 = vmatpush1.bf16.msra.mxu0 0
        %534 = vmatprep.subr.bf16.mxu0 0
        %535 = vmatpush1.bf16.msra.mxu0 0
        %536 = vmatprep.subr.bf16.mxu0 0
        %537 = vmatpush1.bf16.msra.mxu0 0
        %538 = vmatprep.subr.bf16.mxu0 0
        %539 = vmatpush1.bf16.msra.mxu0 0
        %540 = vmatprep.subr.bf16.mxu0 0
        %541 = vmatpush1.bf16.msra.mxu0 0
        %542 = vmatprep.subr.bf16.mxu0 0
        %543 = vmatpush1.bf16.msra.mxu0 0
        %544 = vmatprep.subr.bf16.mxu0 0
        %545 = vmatpush1.bf16.msra.mxu0 0
        %546 = vmatprep.mubr.bf16.mxu0 0
        %547 = vmatmul.mubr.bf16.gmra.mrb[0].mxu0 %v502
        %v548 = vpop.f32.mrb[0].mxu0
        %v549 = vadd.f32 0.0, %v548
        %v550 = vpop.f32.mrb[0].mxu0
        %v551 = vpop.f32.mrb[0].mxu0
        %v552 = vadd.f32 0.0, %v551
        %v553 = vpop.f32.mrb[0].mxu0
        %554 = vmatprep.mubr.bf16.mxu0 0
        %555 = vmatmul.mubr.bf16.gmra.mrb[0].mxu0 %v505
        %v556 = vpop.f32.mrb[0].mxu0
        %v557 = vadd.f32 0.0, %v556
        %v558 = vpop.f32.mrb[0].mxu0
        %v559 = vpop.f32.mrb[0].mxu0
        %v560 = vadd.f32 0.0, %v559
        %v561 = vpop.f32.mrb[0].mxu0
        %562 = vmatprep.mubr.bf16.mxu0 0
        %563 = vmatmul.mubr.bf16.gmra.mrb[0].mxu0 %v508
        %v564 = vpop.f32.mrb[0].mxu0
        %v565 = vadd.f32 0.0, %v564
        %v566 = vpop.f32.mrb[0].mxu0
        %v567 = vpop.f32.mrb[0].mxu0
        %v568 = vadd.f32 0.0, %v567
        %v569 = vpop.f32.mrb[0].mxu0
        %570 = vdwg.mxu0
        %v575 = vunpack.c.l.b16 %v428
        %v576 = vunpack.c.l.b16 %v429
        %v577 = vunpack.c.l.b16 %v430
        %v578 = vunpack.c.l.b16 %v431
        %v579 = vpack.c.b16 %v576, %v575
        %v580 = vpack.c.b16 %v578, %v577
        %v582 = vsel %vm500, %v456, 0
        %v584 = vsel %vm500, %v457, 0
        %v586 = vsel %vm500, %v458, 0
        %v589 = vsel %vm510, %v580, 0
        %591 = vmatprep.subr.bf16.mxu0 0
        %592 = vmatpush1.bf16.msra.mxu0 %v579
        %593 = vmatprep.subr.bf16.mxu0 0
        %594 = vmatpush1.bf16.msra.mxu0 %v589
        %595 = vmatprep.subr.bf16.mxu0 0
        %596 = vmatpush1.bf16.msra.mxu0 0
        %597 = vmatprep.subr.bf16.mxu0 0
        %598 = vmatpush1.bf16.msra.mxu0 0
        %599 = vmatprep.subr.bf16.mxu0 0
        %600 = vmatpush1.bf16.msra.mxu0 0
        %601 = vmatprep.subr.bf16.mxu0 0
        %602 = vmatpush1.bf16.msra.mxu0 0
        %603 = vmatprep.subr.bf16.mxu0 0
        %604 = vmatpush1.bf16.msra.mxu0 0
        %605 = vmatprep.subr.bf16.mxu0 0
        %606 = vmatpush1.bf16.msra.mxu0 0
        %607 = vmatprep.subr.bf16.mxu0 0
        %608 = vmatpush1.bf16.msra.mxu0 0
        %609 = vmatprep.subr.bf16.mxu0 0
        %610 = vmatpush1.bf16.msra.mxu0 0
        %611 = vmatprep.subr.bf16.mxu0 0
        %612 = vmatpush1.bf16.msra.mxu0 0
        %613 = vmatprep.subr.bf16.mxu0 0
        %614 = vmatpush1.bf16.msra.mxu0 0
        %615 = vmatprep.subr.bf16.mxu0 0
        %616 = vmatpush1.bf16.msra.mxu0 0
        %617 = vmatprep.subr.bf16.mxu0 0
        %618 = vmatpush1.bf16.msra.mxu0 0
        %619 = vmatprep.subr.bf16.mxu0 0
        %620 = vmatpush1.bf16.msra.mxu0 0
        %621 = vmatprep.subr.bf16.mxu0 0
        %622 = vmatpush1.bf16.msra.mxu0 0
        %623 = vmatprep.mubr.bf16.mxu0 0
        %624 = vmatmul.mubr.bf16.gmra.mrb[0].mxu0 %v582
        %v625 = vpop.f32.mrb[0].mxu0
        %v626 = vadd.f32 %v549, %v625
        %v627 = vpop.f32.mrb[0].mxu0
        %v628 = vpop.f32.mrb[0].mxu0
        %v629 = vadd.f32 %v552, %v628
        %v630 = vpop.f32.mrb[0].mxu0
        %631 = vmatprep.mubr.bf16.mxu0 0
        %632 = vmatmul.mubr.bf16.gmra.mrb[0].mxu0 %v584
        %v633 = vpop.f32.mrb[0].mxu0
        %v634 = vadd.f32 %v557, %v633
        %v635 = vpop.f32.mrb[0].mxu0
        %v636 = vpop.f32.mrb[0].mxu0
        %v637 = vadd.f32 %v560, %v636
        %v638 = vpop.f32.mrb[0].mxu0
        %639 = vmatprep.mubr.bf16.mxu0 0
        %640 = vmatmul.mubr.bf16.gmra.mrb[0].mxu0 %v586
        %v641 = vpop.f32.mrb[0].mxu0
        %v642 = vadd.f32 %v565, %v641
        %v643 = vpop.f32.mrb[0].mxu0
        %v644 = vpop.f32.mrb[0].mxu0
        %v645 = vadd.f32 %v568, %v644
        %v646 = vpop.f32.mrb[0].mxu0
        %647 = vdwg.mxu0
        %s648 = scalar_lea.vmem %s2, 16
        %v649 = vld [vmem:[%s648] sm:$0xf]
        %v650 = vld [vmem:[%s648 + $0x4] sm:$0xf]
        %v651 = vld [vmem:[%s648 + $0x8] sm:$0xf]
        %v652 = vld [vmem:[%s648 + $0xc] sm:$0x3]
        %v657 = vunpack.c.l.b16 %v649
        %v658 = vunpack.c.l.b16 %v650
        %v659 = vunpack.c.l.b16 %v651
        %v660 = vunpack.c.l.b16 %v652
        %v661 = vpack.c.b16 %v658, %v657
        %v662 = vpack.c.b16 %v660, %v659
        %v665 = vsel %vm510, %v662, 0
        %667 = vmatprep.subr.bf16.mxu0 0
        %668 = vmatpush1.bf16.msra.mxu0 %v661
        %669 = vmatprep.subr.bf16.mxu0 0
        %670 = vmatpush1.bf16.msra.mxu0 %v665
        %671 = vmatprep.subr.bf16.mxu0 0
        %672 = vmatpush1.bf16.msra.mxu0 0
        %673 = vmatprep.subr.bf16.mxu0 0
        %674 = vmatpush1.bf16.msra.mxu0 0
        %675 = vmatprep.subr.bf16.mxu0 0
        %676 = vmatpush1.bf16.msra.mxu0 0
        %677 = vmatprep.subr.bf16.mxu0 0
        %678 = vmatpush1.bf16.msra.mxu0 0
        %679 = vmatprep.subr.bf16.mxu0 0
        %680 = vmatpush1.bf16.msra.mxu0 0
        %681 = vmatprep.subr.bf16.mxu0 0
        %682 = vmatpush1.bf16.msra.mxu0 0
        %683 = vmatprep.subr.bf16.mxu0 0
        %684 = vmatpush1.bf16.msra.mxu0 0
        %685 = vmatprep.subr.bf16.mxu0 0
        %686 = vmatpush1.bf16.msra.mxu0 0
        %687 = vmatprep.subr.bf16.mxu0 0
        %688 = vmatpush1.bf16.msra.mxu0 0
        %689 = vmatprep.subr.bf16.mxu0 0
        %690 = vmatpush1.bf16.msra.mxu0 0
        %691 = vmatprep.subr.bf16.mxu0 0
        %692 = vmatpush1.bf16.msra.mxu0 0
        %693 = vmatprep.subr.bf16.mxu0 0
        %694 = vmatpush1.bf16.msra.mxu0 0
        %695 = vmatprep.subr.bf16.mxu0 0
        %696 = vmatpush1.bf16.msra.mxu0 0
        %697 = vmatprep.subr.bf16.mxu0 0
        %698 = vmatpush1.bf16.msra.mxu0 0
        %699 = vmatprep.mubr.bf16.mxu0 0
        %700 = vmatmul.mubr.bf16.gmra.mrb[0].mxu0 %v502
        %v701 = vpop.f32.mrb[0].mxu0
        %v702 = vadd.f32 0.0, %v701
        %v703 = vpop.f32.mrb[0].mxu0
        %v704 = vpop.f32.mrb[0].mxu0
        %v705 = vadd.f32 0.0, %v704
        %v706 = vpop.f32.mrb[0].mxu0
        %707 = vmatprep.mubr.bf16.mxu0 0
        %708 = vmatmul.mubr.bf16.gmra.mrb[0].mxu0 %v505
        %v709 = vpop.f32.mrb[0].mxu0
        %v710 = vadd.f32 0.0, %v709
        %v711 = vpop.f32.mrb[0].mxu0
        %v712 = vpop.f32.mrb[0].mxu0
        %v713 = vadd.f32 0.0, %v712
        %v714 = vpop.f32.mrb[0].mxu0
        %715 = vmatprep.mubr.bf16.mxu0 0
        %716 = vmatmul.mubr.bf16.gmra.mrb[0].mxu0 %v508
        %v717 = vpop.f32.mrb[0].mxu0
        %v718 = vadd.f32 0.0, %v717
        %v719 = vpop.f32.mrb[0].mxu0
        %v720 = vpop.f32.mrb[0].mxu0
        %v721 = vadd.f32 0.0, %v720
        %v722 = vpop.f32.mrb[0].mxu0
        %723 = vdwg.mxu0
        %v728 = vunpack.c.l.b16 %v432
        %v729 = vunpack.c.l.b16 %v433
        %v730 = vunpack.c.l.b16 %v434
        %v731 = vunpack.c.l.b16 %v435
        %v732 = vpack.c.b16 %v729, %v728
        %v733 = vpack.c.b16 %v731, %v730
        %v736 = vsel %vm510, %v733, 0
        %738 = vmatprep.subr.bf16.mxu0 0
        %739 = vmatpush1.bf16.msra.mxu0 %v732
        %740 = vmatprep.subr.bf16.mxu0 0
        %741 = vmatpush1.bf16.msra.mxu0 %v736
        %742 = vmatprep.subr.bf16.mxu0 0
        %743 = vmatpush1.bf16.msra.mxu0 0
        %744 = vmatprep.subr.bf16.mxu0 0
        %745 = vmatpush1.bf16.msra.mxu0 0
        %746 = vmatprep.subr.bf16.mxu0 0
        %747 = vmatpush1.bf16.msra.mxu0 0
        %748 = vmatprep.subr.bf16.mxu0 0
        %749 = vmatpush1.bf16.msra.mxu0 0
        %750 = vmatprep.subr.bf16.mxu0 0
        %751 = vmatpush1.bf16.msra.mxu0 0
        %752 = vmatprep.subr.bf16.mxu0 0
        %753 = vmatpush1.bf16.msra.mxu0 0
        %754 = vmatprep.subr.bf16.mxu0 0
        %755 = vmatpush1.bf16.msra.mxu0 0
        %756 = vmatprep.subr.bf16.mxu0 0
        %757 = vmatpush1.bf16.msra.mxu0 0
        %758 = vmatprep.subr.bf16.mxu0 0
        %759 = vmatpush1.bf16.msra.mxu0 0
        %760 = vmatprep.subr.bf16.mxu0 0
        %761 = vmatpush1.bf16.msra.mxu0 0
        %762 = vmatprep.subr.bf16.mxu0 0
        %763 = vmatpush1.bf16.msra.mxu0 0
        %764 = vmatprep.subr.bf16.mxu0 0
        %765 = vmatpush1.bf16.msra.mxu0 0
        %766 = vmatprep.subr.bf16.mxu0 0
        %767 = vmatpush1.bf16.msra.mxu0 0
        %768 = vmatprep.subr.bf16.mxu0 0
        %769 = vmatpush1.bf16.msra.mxu0 0
        %770 = vmatprep.mubr.bf16.mxu0 0
        %771 = vmatmul.mubr.bf16.gmra.mrb[0].mxu0 %v582
        %v772 = vpop.f32.mrb[0].mxu0
        %v773 = vadd.f32 %v702, %v772
        %v774 = vpop.f32.mrb[0].mxu0
        %v775 = vpop.f32.mrb[0].mxu0
        %v776 = vadd.f32 %v705, %v775
        %v777 = vpop.f32.mrb[0].mxu0
        %778 = vmatprep.mubr.bf16.mxu0 0
        %779 = vmatmul.mubr.bf16.gmra.mrb[0].mxu0 %v584
        %v780 = vpop.f32.mrb[0].mxu0
        %v781 = vadd.f32 %v710, %v780
        %v782 = vpop.f32.mrb[0].mxu0
        %v783 = vpop.f32.mrb[0].mxu0
        %v784 = vadd.f32 %v713, %v783
        %v785 = vpop.f32.mrb[0].mxu0
        %786 = vmatprep.mubr.bf16.mxu0 0
        %787 = vmatmul.mubr.bf16.gmra.mrb[0].mxu0 %v586
        %v788 = vpop.f32.mrb[0].mxu0
        %v789 = vadd.f32 %v718, %v788
        %v790 = vpop.f32.mrb[0].mxu0
        %v791 = vpop.f32.mrb[0].mxu0
        %v792 = vadd.f32 %v721, %v791
        %v793 = vpop.f32.mrb[0].mxu0
        %794 = vdwg.mxu0
        %v795 = vld [vmem:[%s420] sm:$0xe]
        %s796 = scalar_lea.vmem %s1, 32
        %v797 = vld [vmem:[%s796] sm:$0xf]
        %v798 = vld [vmem:[%s796 + $0x4] sm:$0xf]
        %v799 = vld [vmem:[%s796 + $0x8] sm:$0xf]
        %v800 = vld [vmem:[%s796 + $0xc] sm:$0x3]
        %v802 = vunpack.c.l.b16 %v795
        %v803 = vpack.c.b16 %v450, %v802
        %vm804 = vcmask 1046528
        %v805 = vrot.slane %v803, 1
        %v806 = vrot.slane %v457, 1
        %v807 = vsel %vm804, %v805, %v806
        %v808 = vrot.slane %v458, 1
        %v809 = vsel %vm804, %v806, %v808
        %v810 = vrot.slane %v459, 1
        %v811 = vsel %vm804, %v808, %v810
        %v816 = vunpack.c.l.b16 %v797
        %v817 = vunpack.c.l.b16 %v798
        %v818 = vunpack.c.l.b16 %v799
        %v819 = vunpack.c.l.b16 %v800
        %v820 = vpack.c.b16 %v817, %v816
        %v821 = vpack.c.b16 %v819, %v818
        %v824 = vsel %vm500, %v807, 0
        %v827 = vsel %vm500, %v809, 0
        %v830 = vsel %vm500, %v811, 0
        %v833 = vsel %vm510, %v821, 0
        %835 = vmatprep.subr.bf16.mxu0 0
        %836 = vmatpush1.bf16.msra.mxu0 %v820
        %837 = vmatprep.subr.bf16.mxu0 0
        %838 = vmatpush1.bf16.msra.mxu0 %v833
        %839 = vmatprep.subr.bf16.mxu0 0
        %840 = vmatpush1.bf16.msra.mxu0 0
        %841 = vmatprep.subr.bf16.mxu0 0
        %842 = vmatpush1.bf16.msra.mxu0 0
        %843 = vmatprep.subr.bf16.mxu0 0
        %844 = vmatpush1.bf16.msra.mxu0 0
        %845 = vmatprep.subr.bf16.mxu0 0
        %846 = vmatpush1.bf16.msra.mxu0 0
        %847 = vmatprep.subr.bf16.mxu0 0
        %848 = vmatpush1.bf16.msra.mxu0 0
        %849 = vmatprep.subr.bf16.mxu0 0
        %850 = vmatpush1.bf16.msra.mxu0 0
        %851 = vmatprep.subr.bf16.mxu0 0
        %852 = vmatpush1.bf16.msra.mxu0 0
        %853 = vmatprep.subr.bf16.mxu0 0
        %854 = vmatpush1.bf16.msra.mxu0 0
        %855 = vmatprep.subr.bf16.mxu0 0
        %856 = vmatpush1.bf16.msra.mxu0 0
        %857 = vmatprep.subr.bf16.mxu0 0
        %858 = vmatpush1.bf16.msra.mxu0 0
        %859 = vmatprep.subr.bf16.mxu0 0
        %860 = vmatpush1.bf16.msra.mxu0 0
        %861 = vmatprep.subr.bf16.mxu0 0
        %862 = vmatpush1.bf16.msra.mxu0 0
        %863 = vmatprep.subr.bf16.mxu0 0
        %864 = vmatpush1.bf16.msra.mxu0 0
        %865 = vmatprep.subr.bf16.mxu0 0
        %866 = vmatpush1.bf16.msra.mxu0 0
        %867 = vmatprep.mubr.bf16.mxu0 0
        %868 = vmatmul.mubr.bf16.gmra.mrb[0].mxu0 %v824
        %v869 = vpop.f32.mrb[0].mxu0
        %v870 = vadd.f32 0.0, %v869
        %v871 = vpop.f32.mrb[0].mxu0
        %v872 = vpop.f32.mrb[0].mxu0
        %v873 = vadd.f32 0.0, %v872
        %v874 = vpop.f32.mrb[0].mxu0
        %875 = vmatprep.mubr.bf16.mxu0 0
        %876 = vmatmul.mubr.bf16.gmra.mrb[0].mxu0 %v827
        %v877 = vpop.f32.mrb[0].mxu0
        %v878 = vadd.f32 0.0, %v877
        %v879 = vpop.f32.mrb[0].mxu0
        %v880 = vpop.f32.mrb[0].mxu0
        %v881 = vadd.f32 0.0, %v880
        %v882 = vpop.f32.mrb[0].mxu0
        %883 = vmatprep.mubr.bf16.mxu0 0
        %884 = vmatmul.mubr.bf16.gmra.mrb[0].mxu0 %v830
        %v885 = vpop.f32.mrb[0].mxu0
        %v886 = vadd.f32 0.0, %v885
        %v887 = vpop.f32.mrb[0].mxu0
        %v888 = vpop.f32.mrb[0].mxu0
        %v889 = vadd.f32 0.0, %v888
        %v890 = vpop.f32.mrb[0].mxu0
        %891 = vdwg.mxu0
        %v892 = vadd.f32 %v626, %v870
        %v893 = vadd.f32 %v629, %v873
        %v894 = vadd.f32 %v634, %v878
        %v895 = vadd.f32 %v637, %v881
        %v896 = vadd.f32 %v642, %v886
        %v897 = vadd.f32 %v645, %v889
        %s898 = scalar_lea.vmem %s2, 32
        %v899 = vld [vmem:[%s898] sm:$0xf]
        %v900 = vld [vmem:[%s898 + $0x4] sm:$0xf]
        %v901 = vld [vmem:[%s898 + $0x8] sm:$0xf]
        %v902 = vld [vmem:[%s898 + $0xc] sm:$0x3]
        %v907 = vunpack.c.l.b16 %v899
        %v908 = vunpack.c.l.b16 %v900
        %v909 = vunpack.c.l.b16 %v901
        %v910 = vunpack.c.l.b16 %v902
        %v911 = vpack.c.b16 %v908, %v907
        %v912 = vpack.c.b16 %v910, %v909
        %v915 = vsel %vm510, %v912, 0
        %917 = vmatprep.subr.bf16.mxu0 0
        %918 = vmatpush1.bf16.msra.mxu0 %v911
        %919 = vmatprep.subr.bf16.mxu0 0
        %920 = vmatpush1.bf16.msra.mxu0 %v915
        %921 = vmatprep.subr.bf16.mxu0 0
        %922 = vmatpush1.bf16.msra.mxu0 0
        %923 = vmatprep.subr.bf16.mxu0 0
        %924 = vmatpush1.bf16.msra.mxu0 0
        %925 = vmatprep.subr.bf16.mxu0 0
        %926 = vmatpush1.bf16.msra.mxu0 0
        %927 = vmatprep.subr.bf16.mxu0 0
        %928 = vmatpush1.bf16.msra.mxu0 0
        %929 = vmatprep.subr.bf16.mxu0 0
        %930 = vmatpush1.bf16.msra.mxu0 0
        %931 = vmatprep.subr.bf16.mxu0 0
        %932 = vmatpush1.bf16.msra.mxu0 0
        %933 = vmatprep.subr.bf16.mxu0 0
        %934 = vmatpush1.bf16.msra.mxu0 0
        %935 = vmatprep.subr.bf16.mxu0 0
        %936 = vmatpush1.bf16.msra.mxu0 0
        %937 = vmatprep.subr.bf16.mxu0 0
        %938 = vmatpush1.bf16.msra.mxu0 0
        %939 = vmatprep.subr.bf16.mxu0 0
        %940 = vmatpush1.bf16.msra.mxu0 0
        %941 = vmatprep.subr.bf16.mxu0 0
        %942 = vmatpush1.bf16.msra.mxu0 0
        %943 = vmatprep.subr.bf16.mxu0 0
        %944 = vmatpush1.bf16.msra.mxu0 0
        %945 = vmatprep.subr.bf16.mxu0 0
        %946 = vmatpush1.bf16.msra.mxu0 0
        %947 = vmatprep.subr.bf16.mxu0 0
        %948 = vmatpush1.bf16.msra.mxu0 0
        %949 = vmatprep.mubr.bf16.mxu0 0
        %950 = vmatmul.mubr.bf16.gmra.mrb[0].mxu0 %v824
        %v951 = vpop.f32.mrb[0].mxu0
        %v952 = vadd.f32 0.0, %v951
        %v953 = vpop.f32.mrb[0].mxu0
        %v954 = vpop.f32.mrb[0].mxu0
        %v955 = vadd.f32 0.0, %v954
        %v956 = vpop.f32.mrb[0].mxu0
        %957 = vmatprep.mubr.bf16.mxu0 0
        %958 = vmatmul.mubr.bf16.gmra.mrb[0].mxu0 %v827
        %v959 = vpop.f32.mrb[0].mxu0
        %v960 = vadd.f32 0.0, %v959
        %v961 = vpop.f32.mrb[0].mxu0
        %v962 = vpop.f32.mrb[0].mxu0
        %v963 = vadd.f32 0.0, %v962
        %v964 = vpop.f32.mrb[0].mxu0
        %965 = vmatprep.mubr.bf16.mxu0 0
        %966 = vmatmul.mubr.bf16.gmra.mrb[0].mxu0 %v830
        %v967 = vpop.f32.mrb[0].mxu0
        %v968 = vadd.f32 0.0, %v967
        %v969 = vpop.f32.mrb[0].mxu0
        %v970 = vpop.f32.mrb[0].mxu0
        %v971 = vadd.f32 0.0, %v970
        %v972 = vpop.f32.mrb[0].mxu0
        %973 = vdwg.mxu0
        %v974 = vadd.f32 %v773, %v952
        %v975 = vadd.f32 %v776, %v955
        %v976 = vadd.f32 %v781, %v960
        %v977 = vadd.f32 %v784, %v963
        %v978 = vadd.f32 %v789, %v968
        %v979 = vadd.f32 %v792, %v971
        %v980 = vld [vmem:[%s420 + $0x18] sm:$0x3]
        %s981 = scalar_lea.vmem %s1, 48
        %v982 = vld [vmem:[%s981] sm:$0xf]
        %v983 = vld [vmem:[%s981 + $0x4] sm:$0xf]
        %v984 = vld [vmem:[%s981 + $0x8] sm:$0xf]
        %v985 = vld [vmem:[%s981 + $0xc] sm:$0x3]
        %v987 = vunpack.c.l.b16 %v980
        %v988 = vpack.c.b16 %v987, %v987
        %vm989 = vsmask.f32 6400
        %v991 = vshrl.u32 %v803, 16
        %v993 = vrot.slane %v991, 1
        %v994 = vshll.u32 %v803, 16
        %v996 = vrot.slane %v994, 2
        %v997 = vor.u32 %v993, %v996
        %v998 = vrot.slane %v473, 1
        %v999 = vrot.slane %v469, 2
        %v1000 = vor.u32 %v998, %v999
        %v1001 = vsel %vm989, %v997, %v1000
        %v1002 = vrot.slane %v481, 1
        %v1003 = vrot.slane %v477, 2
        %v1004 = vor.u32 %v1002, %v1003
        %v1005 = vsel %vm989, %v1000, %v1004
        %v1007 = vshrl.u32 %v988, 16
        %v1009 = vrot.slane %v1007, 1
        %v1010 = vshll.u32 %v988, 16
        %v1012 = vrot.slane %v1010, 2
        %v1013 = vor.u32 %v1009, %v1012
        %v1014 = vsel %vm989, %v1004, %v1013
        %v1019 = vunpack.c.l.b16 %v982
        %v1020 = vunpack.c.l.b16 %v983
        %v1021 = vunpack.c.l.b16 %v984
        %v1022 = vunpack.c.l.b16 %v985
        %v1023 = vpack.c.b16 %v1020, %v1019
        %v1024 = vpack.c.b16 %v1022, %v1021
        %v1027 = vsel %vm500, %v1001, 0
        %v1030 = vsel %vm500, %v1005, 0
        %v1033 = vsel %vm500, %v1014, 0
        %v1036 = vsel %vm510, %v1024, 0
        %1038 = vmatprep.subr.bf16.mxu0 0
        %1039 = vmatpush1.bf16.msra.mxu0 %v1023
        %1040 = vmatprep.subr.bf16.mxu0 0
        %1041 = vmatpush1.bf16.msra.mxu0 %v1036
        %1042 = vmatprep.subr.bf16.mxu0 0
        %1043 = vmatpush1.bf16.msra.mxu0 0
        %1044 = vmatprep.subr.bf16.mxu0 0
        %1045 = vmatpush1.bf16.msra.mxu0 0
        %1046 = vmatprep.subr.bf16.mxu0 0
        %1047 = vmatpush1.bf16.msra.mxu0 0
        %1048 = vmatprep.subr.bf16.mxu0 0
        %1049 = vmatpush1.bf16.msra.mxu0 0
        %1050 = vmatprep.subr.bf16.mxu0 0
        %1051 = vmatpush1.bf16.msra.mxu0 0
        %1052 = vmatprep.subr.bf16.mxu0 0
        %1053 = vmatpush1.bf16.msra.mxu0 0
        %1054 = vmatprep.subr.bf16.mxu0 0
        %1055 = vmatpush1.bf16.msra.mxu0 0
        %1056 = vmatprep.subr.bf16.mxu0 0
        %1057 = vmatpush1.bf16.msra.mxu0 0
        %1058 = vmatprep.subr.bf16.mxu0 0
        %1059 = vmatpush1.bf16.msra.mxu0 0
        %1060 = vmatprep.subr.bf16.mxu0 0
        %1061 = vmatpush1.bf16.msra.mxu0 0
        %1062 = vmatprep.subr.bf16.mxu0 0
        %1063 = vmatpush1.bf16.msra.mxu0 0
        %1064 = vmatprep.subr.bf16.mxu0 0
        %1065 = vmatpush1.bf16.msra.mxu0 0
        %1066 = vmatprep.subr.bf16.mxu0 0
        %1067 = vmatpush1.bf16.msra.mxu0 0
        %1068 = vmatprep.subr.bf16.mxu0 0
        %1069 = vmatpush1.bf16.msra.mxu0 0
        %1070 = vmatprep.mubr.bf16.mxu0 0
        %1071 = vmatmul.mubr.bf16.gmra.mrb[0].mxu0 %v1027
        %v1072 = vpop.f32.mrb[0].mxu0
        %v1073 = vadd.f32 0.0, %v1072
        %v1074 = vpop.f32.mrb[0].mxu0
        %v1075 = vpop.f32.mrb[0].mxu0
        %v1076 = vadd.f32 0.0, %v1075
        %v1077 = vpop.f32.mrb[0].mxu0
        %1078 = vmatprep.mubr.bf16.mxu0 0
        %1079 = vmatmul.mubr.bf16.gmra.mrb[0].mxu0 %v1030
        %v1080 = vpop.f32.mrb[0].mxu0
        %v1081 = vadd.f32 0.0, %v1080
        %v1082 = vpop.f32.mrb[0].mxu0
        %v1083 = vpop.f32.mrb[0].mxu0
        %v1084 = vadd.f32 0.0, %v1083
        %v1085 = vpop.f32.mrb[0].mxu0
        %1086 = vmatprep.mubr.bf16.mxu0 0
        %1087 = vmatmul.mubr.bf16.gmra.mrb[0].mxu0 %v1033
        %v1088 = vpop.f32.mrb[0].mxu0
        %v1089 = vadd.f32 0.0, %v1088
        %v1090 = vpop.f32.mrb[0].mxu0
        %v1091 = vpop.f32.mrb[0].mxu0
        %v1092 = vadd.f32 0.0, %v1091
        %v1093 = vpop.f32.mrb[0].mxu0
        %1094 = vdwg.mxu0
        %v1095 = vadd.f32 %v892, %v1073
        %v1096 = vadd.f32 %v893, %v1076
        %v1097 = vadd.f32 %v894, %v1081
        %v1098 = vadd.f32 %v895, %v1084
        %v1099 = vadd.f32 %v896, %v1089
        %v1100 = vadd.f32 %v897, %v1092
        %s1101 = scalar_lea.vmem %s2, 48
        %v1102 = vld [vmem:[%s1101] sm:$0xf]
        %v1103 = vld [vmem:[%s1101 + $0x4] sm:$0xf]
        %v1104 = vld [vmem:[%s1101 + $0x8] sm:$0xf]
        %v1105 = vld [vmem:[%s1101 + $0xc] sm:$0x3]
        %v1110 = vunpack.c.l.b16 %v1102
        %v1111 = vunpack.c.l.b16 %v1103
        %v1112 = vunpack.c.l.b16 %v1104
        %v1113 = vunpack.c.l.b16 %v1105
        %v1114 = vpack.c.b16 %v1111, %v1110
        %v1115 = vpack.c.b16 %v1113, %v1112
        %v1118 = vsel %vm510, %v1115, 0
        %1120 = vmatprep.subr.bf16.mxu0 0
        %1121 = vmatpush1.bf16.msra.mxu0 %v1114
        %1122 = vmatprep.subr.bf16.mxu0 0
        %1123 = vmatpush1.bf16.msra.mxu0 %v1118
        %1124 = vmatprep.subr.bf16.mxu0 0
        %1125 = vmatpush1.bf16.msra.mxu0 0
        %1126 = vmatprep.subr.bf16.mxu0 0
        %1127 = vmatpush1.bf16.msra.mxu0 0
        %1128 = vmatprep.subr.bf16.mxu0 0
        %1129 = vmatpush1.bf16.msra.mxu0 0
        %1130 = vmatprep.subr.bf16.mxu0 0
        %1131 = vmatpush1.bf16.msra.mxu0 0
        %1132 = vmatprep.subr.bf16.mxu0 0
        %1133 = vmatpush1.bf16.msra.mxu0 0
        %1134 = vmatprep.subr.bf16.mxu0 0
        %1135 = vmatpush1.bf16.msra.mxu0 0
        %1136 = vmatprep.subr.bf16.mxu0 0
        %1137 = vmatpush1.bf16.msra.mxu0 0
        %1138 = vmatprep.subr.bf16.mxu0 0
        %1139 = vmatpush1.bf16.msra.mxu0 0
        %1140 = vmatprep.subr.bf16.mxu0 0
        %1141 = vmatpush1.bf16.msra.mxu0 0
        %1142 = vmatprep.subr.bf16.mxu0 0
        %1143 = vmatpush1.bf16.msra.mxu0 0
        %1144 = vmatprep.subr.bf16.mxu0 0
        %1145 = vmatpush1.bf16.msra.mxu0 0
        %1146 = vmatprep.subr.bf16.mxu0 0
        %1147 = vmatpush1.bf16.msra.mxu0 0
        %1148 = vmatprep.subr.bf16.mxu0 0
        %1149 = vmatpush1.bf16.msra.mxu0 0
        %1150 = vmatprep.subr.bf16.mxu0 0
        %1151 = vmatpush1.bf16.msra.mxu0 0
        %1152 = vmatprep.mubr.bf16.mxu0 0
        %1153 = vmatmul.mubr.bf16.gmra.mrb[0].mxu0 %v1027
        %v1154 = vpop.f32.mrb[0].mxu0
        %v1155 = vadd.f32 0.0, %v1154
        %v1156 = vpop.f32.mrb[0].mxu0
        %v1157 = vpop.f32.mrb[0].mxu0
        %v1158 = vadd.f32 0.0, %v1157
        %v1159 = vpop.f32.mrb[0].mxu0
        %1160 = vmatprep.mubr.bf16.mxu0 0
        %1161 = vmatmul.mubr.bf16.gmra.mrb[0].mxu0 %v1030
        %v1162 = vpop.f32.mrb[0].mxu0
        %v1163 = vadd.f32 0.0, %v1162
        %v1164 = vpop.f32.mrb[0].mxu0
        %v1165 = vpop.f32.mrb[0].mxu0
        %v1166 = vadd.f32 0.0, %v1165
        %v1167 = vpop.f32.mrb[0].mxu0
        %1168 = vmatprep.mubr.bf16.mxu0 0
        %1169 = vmatmul.mubr.bf16.gmra.mrb[0].mxu0 %v1033
        %v1170 = vpop.f32.mrb[0].mxu0
        %v1171 = vadd.f32 0.0, %v1170
        %v1172 = vpop.f32.mrb[0].mxu0
        %v1173 = vpop.f32.mrb[0].mxu0
        %v1174 = vadd.f32 0.0, %v1173
        %v1175 = vpop.f32.mrb[0].mxu0
        %1176 = vdwg.mxu0
        %v1177 = vadd.f32 %v974, %v1155
        %v1178 = vadd.f32 %v975, %v1158
        %v1179 = vadd.f32 %v976, %v1163
        %v1180 = vadd.f32 %v977, %v1166
        %v1181 = vadd.f32 %v978, %v1171
        %v1182 = vadd.f32 %v979, %v1174
        %v1183 = vld [vmem:[%s420] sm:$0xc]
        %s1184 = scalar_lea.vmem %s1, 64
        %v1185 = vld [vmem:[%s1184] sm:$0xf]
        %v1186 = vld [vmem:[%s1184 + $0x4] sm:$0xf]
        %v1187 = vld [vmem:[%s1184 + $0x8] sm:$0xf]
        %v1188 = vld [vmem:[%s1184 + $0xc] sm:$0x3]
        %v1190 = vunpack.c.l.b16 %v1183
        %v1191 = vpack.c.b16 %v450, %v1190
        %vm1192 = vcmask 1045504
        %v1193 = vrot.slane %v1191, 2
        %v1194 = vrot.slane %v457, 2
        %v1195 = vsel %vm1192, %v1193, %v1194
        %v1196 = vrot.slane %v458, 2
        %v1197 = vsel %vm1192, %v1194, %v1196
        %v1198 = vrot.slane %v988, 2
        %v1199 = vsel %vm1192, %v1196, %v1198
        %v1204 = vunpack.c.l.b16 %v1185
        %v1205 = vunpack.c.l.b16 %v1186
        %v1206 = vunpack.c.l.b16 %v1187
        %v1207 = vunpack.c.l.b16 %v1188
        %v1208 = vpack.c.b16 %v1205, %v1204
        %v1209 = vpack.c.b16 %v1207, %v1206
        %v1212 = vsel %vm500, %v1195, 0
        %v1215 = vsel %vm500, %v1197, 0
        %v1218 = vsel %vm500, %v1199, 0
        %v1221 = vsel %vm510, %v1209, 0
        %1223 = vmatprep.subr.bf16.mxu0 0
        %1224 = vmatpush1.bf16.msra.mxu0 %v1208
        %1225 = vmatprep.subr.bf16.mxu0 0
        %1226 = vmatpush1.bf16.msra.mxu0 %v1221
        %1227 = vmatprep.subr.bf16.mxu0 0
        %1228 = vmatpush1.bf16.msra.mxu0 0
        %1229 = vmatprep.subr.bf16.mxu0 0
        %1230 = vmatpush1.bf16.msra.mxu0 0
        %1231 = vmatprep.subr.bf16.mxu0 0
        %1232 = vmatpush1.bf16.msra.mxu0 0
        %1233 = vmatprep.subr.bf16.mxu0 0
        %1234 = vmatpush1.bf16.msra.mxu0 0
        %1235 = vmatprep.subr.bf16.mxu0 0
        %1236 = vmatpush1.bf16.msra.mxu0 0
        %1237 = vmatprep.subr.bf16.mxu0 0
        %1238 = vmatpush1.bf16.msra.mxu0 0
        %1239 = vmatprep.subr.bf16.mxu0 0
        %1240 = vmatpush1.bf16.msra.mxu0 0
        %1241 = vmatprep.subr.bf16.mxu0 0
        %1242 = vmatpush1.bf16.msra.mxu0 0
        %1243 = vmatprep.subr.bf16.mxu0 0
        %1244 = vmatpush1.bf16.msra.mxu0 0
        %1245 = vmatprep.subr.bf16.mxu0 0
        %1246 = vmatpush1.bf16.msra.mxu0 0
        %1247 = vmatprep.subr.bf16.mxu0 0
        %1248 = vmatpush1.bf16.msra.mxu0 0
        %1249 = vmatprep.subr.bf16.mxu0 0
        %1250 = vmatpush1.bf16.msra.mxu0 0
        %1251 = vmatprep.subr.bf16.mxu0 0
        %1252 = vmatpush1.bf16.msra.mxu0 0
        %1253 = vmatprep.subr.bf16.mxu0 0
        %1254 = vmatpush1.bf16.msra.mxu0 0
        %1255 = vmatprep.mubr.bf16.mxu0 0
        %1256 = vmatmul.mubr.bf16.gmra.mrb[0].mxu0 %v1212
        %v1257 = vpop.f32.mrb[0].mxu0
        %v1258 = vadd.f32 0.0, %v1257
        %v1259 = vpop.f32.mrb[0].mxu0
        %v1260 = vpop.f32.mrb[0].mxu0
        %v1261 = vadd.f32 0.0, %v1260
        %v1262 = vpop.f32.mrb[0].mxu0
        %1263 = vmatprep.mubr.bf16.mxu0 0
        %1264 = vmatmul.mubr.bf16.gmra.mrb[0].mxu0 %v1215
        %v1265 = vpop.f32.mrb[0].mxu0
        %v1266 = vadd.f32 0.0, %v1265
        %v1267 = vpop.f32.mrb[0].mxu0
        %v1268 = vpop.f32.mrb[0].mxu0
        %v1269 = vadd.f32 0.0, %v1268
        %v1270 = vpop.f32.mrb[0].mxu0
        %1271 = vmatprep.mubr.bf16.mxu0 0
        %1272 = vmatmul.mubr.bf16.gmra.mrb[0].mxu0 %v1218
        %v1273 = vpop.f32.mrb[0].mxu0
        %v1274 = vadd.f32 0.0, %v1273
        %v1275 = vpop.f32.mrb[0].mxu0
        %v1276 = vpop.f32.mrb[0].mxu0
        %v1277 = vadd.f32 0.0, %v1276
        %v1278 = vpop.f32.mrb[0].mxu0
        %1279 = vdwg.mxu0
        %v1280 = vadd.f32 %v1095, %v1258
        %v1281 = vadd.f32 %v1096, %v1261
        %v1282 = vadd.f32 %v1097, %v1266
        %v1283 = vadd.f32 %v1098, %v1269
        %v1284 = vadd.f32 %v1099, %v1274
        %v1285 = vadd.f32 %v1100, %v1277
        %s1286 = scalar_lea.vmem %s2, 64
        %v1287 = vld [vmem:[%s1286] sm:$0xf]
        %v1288 = vld [vmem:[%s1286 + $0x4] sm:$0xf]
        %v1289 = vld [vmem:[%s1286 + $0x8] sm:$0xf]
        %v1290 = vld [vmem:[%s1286 + $0xc] sm:$0x3]
        %v1295 = vunpack.c.l.b16 %v1287
        %v1296 = vunpack.c.l.b16 %v1288
        %v1297 = vunpack.c.l.b16 %v1289
        %v1298 = vunpack.c.l.b16 %v1290
        %v1299 = vpack.c.b16 %v1296, %v1295
        %v1300 = vpack.c.b16 %v1298, %v1297
        %v1303 = vsel %vm510, %v1300, 0
        %1305 = vmatprep.subr.bf16.mxu0 0
        %1306 = vmatpush1.bf16.msra.mxu0 %v1299
        %1307 = vmatprep.subr.bf16.mxu0 0
        %1308 = vmatpush1.bf16.msra.mxu0 %v1303
        %1309 = vmatprep.subr.bf16.mxu0 0
        %1310 = vmatpush1.bf16.msra.mxu0 0
        %1311 = vmatprep.subr.bf16.mxu0 0
        %1312 = vmatpush1.bf16.msra.mxu0 0
        %1313 = vmatprep.subr.bf16.mxu0 0
        %1314 = vmatpush1.bf16.msra.mxu0 0
        %1315 = vmatprep.subr.bf16.mxu0 0
        %1316 = vmatpush1.bf16.msra.mxu0 0
        %1317 = vmatprep.subr.bf16.mxu0 0
        %1318 = vmatpush1.bf16.msra.mxu0 0
        %1319 = vmatprep.subr.bf16.mxu0 0
        %1320 = vmatpush1.bf16.msra.mxu0 0
        %1321 = vmatprep.subr.bf16.mxu0 0
        %1322 = vmatpush1.bf16.msra.mxu0 0
        %1323 = vmatprep.subr.bf16.mxu0 0
        %1324 = vmatpush1.bf16.msra.mxu0 0
        %1325 = vmatprep.subr.bf16.mxu0 0
        %1326 = vmatpush1.bf16.msra.mxu0 0
        %1327 = vmatprep.subr.bf16.mxu0 0
        %1328 = vmatpush1.bf16.msra.mxu0 0
        %1329 = vmatprep.subr.bf16.mxu0 0
        %1330 = vmatpush1.bf16.msra.mxu0 0
        %1331 = vmatprep.subr.bf16.mxu0 0
        %1332 = vmatpush1.bf16.msra.mxu0 0
        %1333 = vmatprep.subr.bf16.mxu0 0
        %1334 = vmatpush1.bf16.msra.mxu0 0
        %1335 = vmatprep.subr.bf16.mxu0 0
        %1336 = vmatpush1.bf16.msra.mxu0 0
        %1337 = vmatprep.mubr.bf16.mxu0 0
        %1338 = vmatmul.mubr.bf16.gmra.mrb[0].mxu0 %v1212
        %v1339 = vpop.f32.mrb[0].mxu0
        %v1340 = vadd.f32 0.0, %v1339
        %v1341 = vpop.f32.mrb[0].mxu0
        %v1342 = vpop.f32.mrb[0].mxu0
        %v1343 = vadd.f32 0.0, %v1342
        %v1344 = vpop.f32.mrb[0].mxu0
        %1345 = vmatprep.mubr.bf16.mxu0 0
        %1346 = vmatmul.mubr.bf16.gmra.mrb[0].mxu0 %v1215
        %v1347 = vpop.f32.mrb[0].mxu0
        %v1348 = vadd.f32 0.0, %v1347
        %v1349 = vpop.f32.mrb[0].mxu0
        %v1350 = vpop.f32.mrb[0].mxu0
        %v1351 = vadd.f32 0.0, %v1350
        %v1352 = vpop.f32.mrb[0].mxu0
        %1353 = vmatprep.mubr.bf16.mxu0 0
        %1354 = vmatmul.mubr.bf16.gmra.mrb[0].mxu0 %v1218
        %v1355 = vpop.f32.mrb[0].mxu0
        %v1356 = vadd.f32 0.0, %v1355
        %v1357 = vpop.f32.mrb[0].mxu0
        %v1358 = vpop.f32.mrb[0].mxu0
        %v1359 = vadd.f32 0.0, %v1358
        %v1360 = vpop.f32.mrb[0].mxu0
        %1361 = vdwg.mxu0
        %v1362 = vadd.f32 %v1177, %v1340
        %v1363 = vadd.f32 %v1178, %v1343
        %v1364 = vadd.f32 %v1179, %v1348
        %v1365 = vadd.f32 %v1180, %v1351
        %v1366 = vadd.f32 %v1181, %v1356
        %v1367 = vadd.f32 %v1182, %v1359
        %v1368 = vmax.f32 %v1280, %v1362
        %v1369 = vmax.f32 %v1281, %v1363
        %v1370 = vmax.f32 %v1282, %v1364
        %v1371 = vmax.f32 %v1283, %v1365
        %v1372 = vmax.f32 %v1284, %v1366
        %v1373 = vmax.f32 %v1285, %v1367
        %vm1374 = vcmask 982016
        %1375 = vst.msk [vmem:[#allocation2] sm:$0xff] %vm1374, %v1368
        %1376 = vst.msk [vmem:[#allocation2 + $0x8] sm:$0xff] %vm1374, %v1369
        %1377 = vst.msk [vmem:[#allocation2 + $0x10] sm:$0xff] %vm1374, %v1370
        %1378 = vst.msk [vmem:[#allocation2 + $0x18] sm:$0xff] %vm1374, %v1371
        %1379 = vst.msk [vmem:[#allocation2 + $0x20] sm:$0xff] %vm1374, %v1372
        %1380 = vst.msk [vmem:[#allocation2 + $0x28] sm:$0xff] %vm1374, %v1373
        %v1381 = vld [vmem:[#allocation2] ss:$2 sm:$0xff]
        %s1382 = scalar_lea.vmem [#allocation2], 16
        %v1383 = vld [vmem:[%s1382] ss:$2 sm:$0xff]
        %s1384 = scalar_lea.vmem [#allocation2], 32
        %v1385 = vld [vmem:[%s1384] ss:$2 sm:$0xff]
        %s1386 = scalar_lea.vmem [#allocation2], 1
        %v1387 = vld [vmem:[%s1386] ss:$2 sm:$0xff]
        %s1388 = scalar_lea.vmem [#allocation2], 17
        %v1389 = vld [vmem:[%s1388] ss:$2 sm:$0xff]
        %s1390 = scalar_lea.vmem [#allocation2], 33
        %v1391 = vld [vmem:[%s1390] ss:$2 sm:$0xff]
        %v1392 = vmax.f32 %v1381, %v1387
        %v1393 = vmax.f32 %v1383, %v1389
        %v1394 = vmax.f32 %v1385, %v1391
        %v1395 = vld [vmem:[%s3] sm:$0x1]
        %v1397 = vlaneseq
        %v1398 = vshrl.u32 %v1397, 7
        %v1399 = vsub.s32 0, %v1398
        %v1400 = vrot.slane %v1395, %v1399
        %v1402 = vadd.f32 %v1392, %v1400
        %v1403 = vadd.f32 %v1393, %v1400
        %v1404 = vadd.f32 %v1394, %v1400
        %v1405 = vmax.f32 %v1402, 0.0
        %v1406 = vmax.f32 %v1403, 0.0
        %v1407 = vmax.f32 %v1404, 0.0
        %1408 = vst.msk [vmem:[#allocation3] sm:$0xff] %vm1374, %v1405
        %1409 = vst.msk [vmem:[#allocation3 + $0x8] sm:$0xff] %vm1374, %v1406
        %1410 = vst.msk [vmem:[#allocation3 + $0x10] sm:$0xff] %vm1374, %v1407
        %v1411 = vld [vmem:[#allocation3] sm:$0xff]
        %v1412 = vld [vmem:[#allocation3 + $0x8] sm:$0xff]
        %v1413 = vpack.c.bf16 %v1412, %v1411
        %v1414 = vld [vmem:[%s4] sm:$0xf]
        %v1415 = vld [vmem:[%s4 + $0x4] sm:$0xf]
        %v1416 = vld [vmem:[%s4 + $0x8] sm:$0xf]
        %v1417 = vld [vmem:[%s4 + $0xc] sm:$0xf]
        %v1418 = vld [vmem:[%s4 + $0x10] sm:$0xf]
        %v1419 = vld [vmem:[%s4 + $0x14] sm:$0xf]
        %v1420 = vld [vmem:[%s4 + $0x18] sm:$0xf]
        %v1421 = vld [vmem:[%s4 + $0x1c] sm:$0xf]
        %v1422 = vld [vmem:[%s4 + $0x20] sm:$0xf]
        %v1423 = vld [vmem:[%s4 + $0x24] sm:$0xf]
        %v1424 = vld [vmem:[%s4 + $0x28] sm:$0xf]
        %v1425 = vld [vmem:[%s4 + $0x2c] sm:$0xf]
        %v1426 = vld [vmem:[%s4 + $0x30] sm:$0xf]
        %v1427 = vld [vmem:[%s4 + $0x34] sm:$0xf]
        %v1428 = vld [vmem:[%s4 + $0x38] sm:$0xf]
        %v1429 = vld [vmem:[%s5] sm:$0xf]
        %v1430 = vld [vmem:[%s5 + $0x4] sm:$0xf]
        %v1431 = vld [vmem:[%s5 + $0x8] sm:$0xf]
        %v1432 = vld [vmem:[%s5 + $0xc] sm:$0xf]
        %v1433 = vld [vmem:[%s5 + $0x10] sm:$0xf]
        %v1434 = vld [vmem:[%s5 + $0x14] sm:$0xf]
        %v1435 = vld [vmem:[%s5 + $0x18] sm:$0xf]
        %v1436 = vld [vmem:[%s5 + $0x1c] sm:$0xf]
        %v1437 = vld [vmem:[%s5 + $0x20] sm:$0xf]
        %v1438 = vld [vmem:[%s5 + $0x24] sm:$0xf]
        %v1439 = vld [vmem:[%s5 + $0x28] sm:$0xf]
        %v1440 = vld [vmem:[%s5 + $0x2c] sm:$0xf]
        %v1441 = vld [vmem:[%s5 + $0x30] sm:$0xf]
        %v1442 = vld [vmem:[%s5 + $0x34] sm:$0xf]
        %v1443 = vld [vmem:[%s5 + $0x38] sm:$0xf]
        %v1444 = vld [vmem:[#allocation3 + $0x1] sm:$0xff]
        %v1445 = vld [vmem:[#allocation3 + $0x9] sm:$0xff]
        %v1446 = vpack.c.bf16 %v1445, %v1444
        %s1447 = scalar_lea.vmem %s4, 60
        %v1448 = vld [vmem:[%s1447] sm:$0xf]
        %v1449 = vld [vmem:[%s1447 + $0x4] sm:$0xf]
        %v1450 = vld [vmem:[%s1447 + $0x8] sm:$0xf]
        %v1451 = vld [vmem:[%s1447 + $0xc] sm:$0xf]
        %v1452 = vld [vmem:[%s1447 + $0x10] sm:$0xf]
        %v1453 = vld [vmem:[%s1447 + $0x14] sm:$0xf]
        %v1454 = vld [vmem:[%s1447 + $0x18] sm:$0xf]
        %v1455 = vld [vmem:[%s1447 + $0x1c] sm:$0xf]
        %v1456 = vld [vmem:[%s1447 + $0x20] sm:$0xf]
        %v1457 = vld [vmem:[%s1447 + $0x24] sm:$0xf]
        %v1458 = vld [vmem:[%s1447 + $0x28] sm:$0xf]
        %v1459 = vld [vmem:[%s1447 + $0x2c] sm:$0xf]
        %v1460 = vld [vmem:[%s1447 + $0x30] sm:$0xf]
        %v1461 = vld [vmem:[%s1447 + $0x34] sm:$0xf]
        %v1462 = vld [vmem:[%s1447 + $0x38] sm:$0xf]
        %v1478 = vunpack.c.l.b16 %v1448
        %v1479 = vunpack.c.l.b16 %v1449
        %v1480 = vunpack.c.l.b16 %v1450
        %v1481 = vunpack.c.l.b16 %v1451
        %v1482 = vunpack.c.l.b16 %v1452
        %v1483 = vunpack.c.l.b16 %v1453
        %v1484 = vunpack.c.l.b16 %v1454
        %v1485 = vunpack.c.l.b16 %v1455
        %v1486 = vunpack.c.l.b16 %v1456
        %v1487 = vunpack.c.l.b16 %v1457
        %v1488 = vunpack.c.l.b16 %v1458
        %v1489 = vunpack.c.l.b16 %v1459
        %v1490 = vunpack.c.l.b16 %v1460
        %v1491 = vunpack.c.l.b16 %v1461
        %v1492 = vunpack.c.l.b16 %v1462
        %v1493 = vpack.c.b16 %v1479, %v1478
        %v1494 = vpack.c.b16 %v1481, %v1480
        %v1495 = vpack.c.b16 %v1483, %v1482
        %v1496 = vpack.c.b16 %v1485, %v1484
        %v1497 = vpack.c.b16 %v1487, %v1486
        %v1498 = vpack.c.b16 %v1489, %v1488
        %v1499 = vpack.c.b16 %v1491, %v1490
        %v1500 = vpack.c.b16 %v1492, %v1492
        %v1509 = vsel %vm1374, %v1446, 0
        %vm1511 = vcmask 1043456
        %v1513 = vsel %vm1511, %v1500, 0
        %1515 = vmatprep.subr.bf16.mxu0 0
        %1516 = vmatpush1.bf16.msra.mxu0 %v1493
        %1517 = vmatprep.subr.bf16.mxu0 0
        %1518 = vmatpush1.bf16.msra.mxu0 %v1494
        %1519 = vmatprep.subr.bf16.mxu0 0
        %1520 = vmatpush1.bf16.msra.mxu0 %v1495
        %1521 = vmatprep.subr.bf16.mxu0 0
        %1522 = vmatpush1.bf16.msra.mxu0 %v1496
        %1523 = vmatprep.subr.bf16.mxu0 0
        %1524 = vmatpush1.bf16.msra.mxu0 %v1497
        %1525 = vmatprep.subr.bf16.mxu0 0
        %1526 = vmatpush1.bf16.msra.mxu0 %v1498
        %1527 = vmatprep.subr.bf16.mxu0 0
        %1528 = vmatpush1.bf16.msra.mxu0 %v1499
        %1529 = vmatprep.subr.bf16.mxu0 0
        %1530 = vmatpush1.bf16.msra.mxu0 %v1513
        %1531 = vmatprep.subr.bf16.mxu0 0
        %1532 = vmatpush1.bf16.msra.mxu0 0
        %1533 = vmatprep.subr.bf16.mxu0 0
        %1534 = vmatpush1.bf16.msra.mxu0 0
        %1535 = vmatprep.subr.bf16.mxu0 0
        %1536 = vmatpush1.bf16.msra.mxu0 0
        %1537 = vmatprep.subr.bf16.mxu0 0
        %1538 = vmatpush1.bf16.msra.mxu0 0
        %1539 = vmatprep.subr.bf16.mxu0 0
        %1540 = vmatpush1.bf16.msra.mxu0 0
        %1541 = vmatprep.subr.bf16.mxu0 0
        %1542 = vmatpush1.bf16.msra.mxu0 0
        %1543 = vmatprep.subr.bf16.mxu0 0
        %1544 = vmatpush1.bf16.msra.mxu0 0
        %1545 = vmatprep.subr.bf16.mxu0 0
        %1546 = vmatpush1.bf16.msra.mxu0 0
        %1547 = vmatprep.mubr.bf16.mxu0 0
        %1548 = vmatmul.mubr.bf16.gmra.mrb[0].mxu0 %v1509
        %v1549 = vpop.f32.mrb[0].mxu0
        %v1550 = vadd.f32 0.0, %v1549
        %v1551 = vpop.f32.mrb[0].mxu0
        %v1552 = vpop.f32.mrb[0].mxu0
        %v1553 = vadd.f32 0.0, %v1552
        %v1554 = vpop.f32.mrb[0].mxu0
        %1555 = vdwg.mxu0
        %v1571 = vunpack.c.l.b16 %v1414
        %v1572 = vunpack.c.l.b16 %v1415
        %v1573 = vunpack.c.l.b16 %v1416
        %v1574 = vunpack.c.l.b16 %v1417
        %v1575 = vunpack.c.l.b16 %v1418
        %v1576 = vunpack.c.l.b16 %v1419
        %v1577 = vunpack.c.l.b16 %v1420
        %v1578 = vunpack.c.l.b16 %v1421
        %v1579 = vunpack.c.l.b16 %v1422
        %v1580 = vunpack.c.l.b16 %v1423
        %v1581 = vunpack.c.l.b16 %v1424
        %v1582 = vunpack.c.l.b16 %v1425
        %v1583 = vunpack.c.l.b16 %v1426
        %v1584 = vunpack.c.l.b16 %v1427
        %v1585 = vunpack.c.l.b16 %v1428
        %v1586 = vpack.c.b16 %v1572, %v1571
        %v1587 = vpack.c.b16 %v1574, %v1573
        %v1588 = vpack.c.b16 %v1576, %v1575
        %v1589 = vpack.c.b16 %v1578, %v1577
        %v1590 = vpack.c.b16 %v1580, %v1579
        %v1591 = vpack.c.b16 %v1582, %v1581
        %v1592 = vpack.c.b16 %v1584, %v1583
        %v1593 = vpack.c.b16 %v1585, %v1585
        %v1602 = vsel %vm1374, %v1413, 0
        %v1605 = vsel %vm1511, %v1593, 0
        %1607 = vmatprep.subr.bf16.mxu0 0
        %1608 = vmatpush1.bf16.msra.mxu0 %v1586
        %1609 = vmatprep.subr.bf16.mxu0 0
        %1610 = vmatpush1.bf16.msra.mxu0 %v1587
        %1611 = vmatprep.subr.bf16.mxu0 0
        %1612 = vmatpush1.bf16.msra.mxu0 %v1588
        %1613 = vmatprep.subr.bf16.mxu0 0
        %1614 = vmatpush1.bf16.msra.mxu0 %v1589
        %1615 = vmatprep.subr.bf16.mxu0 0
        %1616 = vmatpush1.bf16.msra.mxu0 %v1590
        %1617 = vmatprep.subr.bf16.mxu0 0
        %1618 = vmatpush1.bf16.msra.mxu0 %v1591
        %1619 = vmatprep.subr.bf16.mxu0 0
        %1620 = vmatpush1.bf16.msra.mxu0 %v1592
        %1621 = vmatprep.subr.bf16.mxu0 0
        %1622 = vmatpush1.bf16.msra.mxu0 %v1605
        %1623 = vmatprep.subr.bf16.mxu0 0
        %1624 = vmatpush1.bf16.msra.mxu0 0
        %1625 = vmatprep.subr.bf16.mxu0 0
        %1626 = vmatpush1.bf16.msra.mxu0 0
        %1627 = vmatprep.subr.bf16.mxu0 0
        %1628 = vmatpush1.bf16.msra.mxu0 0
        %1629 = vmatprep.subr.bf16.mxu0 0
        %1630 = vmatpush1.bf16.msra.mxu0 0
        %1631 = vmatprep.subr.bf16.mxu0 0
        %1632 = vmatpush1.bf16.msra.mxu0 0
        %1633 = vmatprep.subr.bf16.mxu0 0
        %1634 = vmatpush1.bf16.msra.mxu0 0
        %1635 = vmatprep.subr.bf16.mxu0 0
        %1636 = vmatpush1.bf16.msra.mxu0 0
        %1637 = vmatprep.subr.bf16.mxu0 0
        %1638 = vmatpush1.bf16.msra.mxu0 0
        %1639 = vmatprep.mubr.bf16.mxu0 0
        %1640 = vmatmul.mubr.bf16.gmra.mrb[0].mxu0 %v1602
        %v1641 = vpop.f32.mrb[0].mxu0
        %v1642 = vadd.f32 %v1550, %v1641
        %v1643 = vpop.f32.mrb[0].mxu0
        %v1644 = vpop.f32.mrb[0].mxu0
        %v1645 = vadd.f32 %v1553, %v1644
        %v1646 = vpop.f32.mrb[0].mxu0
        %1647 = vdwg.mxu0
        %s1648 = scalar_lea.vmem %s5, 60
        %v1649 = vld [vmem:[%s1648] sm:$0xf]
        %v1650 = vld [vmem:[%s1648 + $0x4] sm:$0xf]
        %v1651 = vld [vmem:[%s1648 + $0x8] sm:$0xf]
        %v1652 = vld [vmem:[%s1648 + $0xc] sm:$0xf]
        %v1653 = vld [vmem:[%s1648 + $0x10] sm:$0xf]
        %v1654 = vld [vmem:[%s1648 + $0x14] sm:$0xf]
        %v1655 = vld [vmem:[%s1648 + $0x18] sm:$0xf]
        %v1656 = vld [vmem:[%s1648 + $0x1c] sm:$0xf]
        %v1657 = vld [vmem:[%s1648 + $0x20] sm:$0xf]
        %v1658 = vld [vmem:[%s1648 + $0x24] sm:$0xf]
        %v1659 = vld [vmem:[%s1648 + $0x28] sm:$0xf]
        %v1660 = vld [vmem:[%s1648 + $0x2c] sm:$0xf]
        %v1661 = vld [vmem:[%s1648 + $0x30] sm:$0xf]
        %v1662 = vld [vmem:[%s1648 + $0x34] sm:$0xf]
        %v1663 = vld [vmem:[%s1648 + $0x38] sm:$0xf]
        %v1679 = vunpack.c.l.b16 %v1649
        %v1680 = vunpack.c.l.b16 %v1650
        %v1681 = vunpack.c.l.b16 %v1651
        %v1682 = vunpack.c.l.b16 %v1652
        %v1683 = vunpack.c.l.b16 %v1653
        %v1684 = vunpack.c.l.b16 %v1654
        %v1685 = vunpack.c.l.b16 %v1655
        %v1686 = vunpack.c.l.b16 %v1656
        %v1687 = vunpack.c.l.b16 %v1657
        %v1688 = vunpack.c.l.b16 %v1658
        %v1689 = vunpack.c.l.b16 %v1659
        %v1690 = vunpack.c.l.b16 %v1660
        %v1691 = vunpack.c.l.b16 %v1661
        %v1692 = vunpack.c.l.b16 %v1662
        %v1693 = vunpack.c.l.b16 %v1663
        %v1694 = vpack.c.b16 %v1680, %v1679
        %v1695 = vpack.c.b16 %v1682, %v1681
        %v1696 = vpack.c.b16 %v1684, %v1683
        %v1697 = vpack.c.b16 %v1686, %v1685
        %v1698 = vpack.c.b16 %v1688, %v1687
        %v1699 = vpack.c.b16 %v1690, %v1689
        %v1700 = vpack.c.b16 %v1692, %v1691
        %v1701 = vpack.c.b16 %v1693, %v1693
        %v1710 = vsel %vm1511, %v1701, 0
        %1712 = vmatprep.subr.bf16.mxu0 0
        %1713 = vmatpush1.bf16.msra.mxu0 %v1694
        %1714 = vmatprep.subr.bf16.mxu0 0
        %1715 = vmatpush1.bf16.msra.mxu0 %v1695
        %1716 = vmatprep.subr.bf16.mxu0 0
        %1717 = vmatpush1.bf16.msra.mxu0 %v1696
        %1718 = vmatprep.subr.bf16.mxu0 0
        %1719 = vmatpush1.bf16.msra.mxu0 %v1697
        %1720 = vmatprep.subr.bf16.mxu0 0
        %1721 = vmatpush1.bf16.msra.mxu0 %v1698
        %1722 = vmatprep.subr.bf16.mxu0 0
        %1723 = vmatpush1.bf16.msra.mxu0 %v1699
        %1724 = vmatprep.subr.bf16.mxu0 0
        %1725 = vmatpush1.bf16.msra.mxu0 %v1700
        %1726 = vmatprep.subr.bf16.mxu0 0
        %1727 = vmatpush1.bf16.msra.mxu0 %v1710
        %1728 = vmatprep.subr.bf16.mxu0 0
        %1729 = vmatpush1.bf16.msra.mxu0 0
        %1730 = vmatprep.subr.bf16.mxu0 0
        %1731 = vmatpush1.bf16.msra.mxu0 0
        %1732 = vmatprep.subr.bf16.mxu0 0
        %1733 = vmatpush1.bf16.msra.mxu0 0
        %1734 = vmatprep.subr.bf16.mxu0 0
        %1735 = vmatpush1.bf16.msra.mxu0 0
        %1736 = vmatprep.subr.bf16.mxu0 0
        %1737 = vmatpush1.bf16.msra.mxu0 0
        %1738 = vmatprep.subr.bf16.mxu0 0
        %1739 = vmatpush1.bf16.msra.mxu0 0
        %1740 = vmatprep.subr.bf16.mxu0 0
        %1741 = vmatpush1.bf16.msra.mxu0 0
        %1742 = vmatprep.subr.bf16.mxu0 0
        %1743 = vmatpush1.bf16.msra.mxu0 0
        %1744 = vmatprep.mubr.bf16.mxu0 0
        %1745 = vmatmul.mubr.bf16.gmra.mrb[0].mxu0 %v1509
        %v1746 = vpop.f32.mrb[0].mxu0
        %v1747 = vadd.f32 0.0, %v1746
        %v1748 = vpop.f32.mrb[0].mxu0
        %v1749 = vpop.f32.mrb[0].mxu0
        %v1750 = vadd.f32 0.0, %v1749
        %v1751 = vpop.f32.mrb[0].mxu0
        %1752 = vdwg.mxu0
        %v1768 = vunpack.c.l.b16 %v1429
        %v1769 = vunpack.c.l.b16 %v1430
        %v1770 = vunpack.c.l.b16 %v1431
        %v1771 = vunpack.c.l.b16 %v1432
        %v1772 = vunpack.c.l.b16 %v1433
        %v1773 = vunpack.c.l.b16 %v1434
        %v1774 = vunpack.c.l.b16 %v1435
        %v1775 = vunpack.c.l.b16 %v1436
        %v1776 = vunpack.c.l.b16 %v1437
        %v1777 = vunpack.c.l.b16 %v1438
        %v1778 = vunpack.c.l.b16 %v1439
        %v1779 = vunpack.c.l.b16 %v1440
        %v1780 = vunpack.c.l.b16 %v1441
        %v1781 = vunpack.c.l.b16 %v1442
        %v1782 = vunpack.c.l.b16 %v1443
        %v1783 = vpack.c.b16 %v1769, %v1768
        %v1784 = vpack.c.b16 %v1771, %v1770
        %v1785 = vpack.c.b16 %v1773, %v1772
        %v1786 = vpack.c.b16 %v1775, %v1774
        %v1787 = vpack.c.b16 %v1777, %v1776
        %v1788 = vpack.c.b16 %v1779, %v1778
        %v1789 = vpack.c.b16 %v1781, %v1780
        %v1790 = vpack.c.b16 %v1782, %v1782
        %v1799 = vsel %vm1511, %v1790, 0
        %1801 = vmatprep.subr.bf16.mxu0 0
        %1802 = vmatpush1.bf16.msra.mxu0 %v1783
        %1803 = vmatprep.subr.bf16.mxu0 0
        %1804 = vmatpush1.bf16.msra.mxu0 %v1784
        %1805 = vmatprep.subr.bf16.mxu0 0
        %1806 = vmatpush1.bf16.msra.mxu0 %v1785
        %1807 = vmatprep.subr.bf16.mxu0 0
        %1808 = vmatpush1.bf16.msra.mxu0 %v1786
        %1809 = vmatprep.subr.bf16.mxu0 0
        %1810 = vmatpush1.bf16.msra.mxu0 %v1787
        %1811 = vmatprep.subr.bf16.mxu0 0
        %1812 = vmatpush1.bf16.msra.mxu0 %v1788
        %1813 = vmatprep.subr.bf16.mxu0 0
        %1814 = vmatpush1.bf16.msra.mxu0 %v1789
        %1815 = vmatprep.subr.bf16.mxu0 0
        %1816 = vmatpush1.bf16.msra.mxu0 %v1799
        %1817 = vmatprep.subr.bf16.mxu0 0
        %1818 = vmatpush1.bf16.msra.mxu0 0
        %1819 = vmatprep.subr.bf16.mxu0 0
        %1820 = vmatpush1.bf16.msra.mxu0 0
        %1821 = vmatprep.subr.bf16.mxu0 0
        %1822 = vmatpush1.bf16.msra.mxu0 0
        %1823 = vmatprep.subr.bf16.mxu0 0
        %1824 = vmatpush1.bf16.msra.mxu0 0
        %1825 = vmatprep.subr.bf16.mxu0 0
        %1826 = vmatpush1.bf16.msra.mxu0 0
        %1827 = vmatprep.subr.bf16.mxu0 0
        %1828 = vmatpush1.bf16.msra.mxu0 0
        %1829 = vmatprep.subr.bf16.mxu0 0
        %1830 = vmatpush1.bf16.msra.mxu0 0
        %1831 = vmatprep.subr.bf16.mxu0 0
        %1832 = vmatpush1.bf16.msra.mxu0 0
        %1833 = vmatprep.mubr.bf16.mxu0 0
        %1834 = vmatmul.mubr.bf16.gmra.mrb[0].mxu0 %v1602
        %v1835 = vpop.f32.mrb[0].mxu0
        %v1836 = vadd.f32 %v1747, %v1835
        %v1837 = vpop.f32.mrb[0].mxu0
        %v1838 = vpop.f32.mrb[0].mxu0
        %v1839 = vadd.f32 %v1750, %v1838
        %v1840 = vpop.f32.mrb[0].mxu0
        %1841 = vdwg.mxu0
        %v1842 = vld [vmem:[#allocation3 + $0x2] sm:$0xff]
        %v1843 = vld [vmem:[#allocation3 + $0xa] sm:$0xff]
        %v1844 = vpack.c.bf16 %v1843, %v1842
        %s1845 = scalar_lea.vmem %s4, 120
        %v1846 = vld [vmem:[%s1845] sm:$0xf]
        %v1847 = vld [vmem:[%s1845 + $0x4] sm:$0xf]
        %v1848 = vld [vmem:[%s1845 + $0x8] sm:$0xf]
        %v1849 = vld [vmem:[%s1845 + $0xc] sm:$0xf]
        %v1850 = vld [vmem:[%s1845 + $0x10] sm:$0xf]
        %v1851 = vld [vmem:[%s1845 + $0x14] sm:$0xf]
        %v1852 = vld [vmem:[%s1845 + $0x18] sm:$0xf]
        %v1853 = vld [vmem:[%s1845 + $0x1c] sm:$0xf]
        %v1854 = vld [vmem:[%s1845 + $0x20] sm:$0xf]
        %v1855 = vld [vmem:[%s1845 + $0x24] sm:$0xf]
        %v1856 = vld [vmem:[%s1845 + $0x28] sm:$0xf]
        %v1857 = vld [vmem:[%s1845 + $0x2c] sm:$0xf]
        %v1858 = vld [vmem:[%s1845 + $0x30] sm:$0xf]
        %v1859 = vld [vmem:[%s1845 + $0x34] sm:$0xf]
        %v1860 = vld [vmem:[%s1845 + $0x38] sm:$0xf]
        %v1876 = vunpack.c.l.b16 %v1846
        %v1877 = vunpack.c.l.b16 %v1847
        %v1878 = vunpack.c.l.b16 %v1848
        %v1879 = vunpack.c.l.b16 %v1849
        %v1880 = vunpack.c.l.b16 %v1850
        %v1881 = vunpack.c.l.b16 %v1851
        %v1882 = vunpack.c.l.b16 %v1852
        %v1883 = vunpack.c.l.b16 %v1853
        %v1884 = vunpack.c.l.b16 %v1854
        %v1885 = vunpack.c.l.b16 %v1855
        %v1886 = vunpack.c.l.b16 %v1856
        %v1887 = vunpack.c.l.b16 %v1857
        %v1888 = vunpack.c.l.b16 %v1858
        %v1889 = vunpack.c.l.b16 %v1859
        %v1890 = vunpack.c.l.b16 %v1860
        %v1891 = vpack.c.b16 %v1877, %v1876
        %v1892 = vpack.c.b16 %v1879, %v1878
        %v1893 = vpack.c.b16 %v1881, %v1880
        %v1894 = vpack.c.b16 %v1883, %v1882
        %v1895 = vpack.c.b16 %v1885, %v1884
        %v1896 = vpack.c.b16 %v1887, %v1886
        %v1897 = vpack.c.b16 %v1889, %v1888
        %v1898 = vpack.c.b16 %v1890, %v1890
        %v1907 = vsel %vm1374, %v1844, 0
        %v1910 = vsel %vm1511, %v1898, 0
        %1912 = vmatprep.subr.bf16.mxu0 0
        %1913 = vmatpush1.bf16.msra.mxu0 %v1891
        %1914 = vmatprep.subr.bf16.mxu0 0
        %1915 = vmatpush1.bf16.msra.mxu0 %v1892
        %1916 = vmatprep.subr.bf16.mxu0 0
        %1917 = vmatpush1.bf16.msra.mxu0 %v1893
        %1918 = vmatprep.subr.bf16.mxu0 0
        %1919 = vmatpush1.bf16.msra.mxu0 %v1894
        %1920 = vmatprep.subr.bf16.mxu0 0
        %1921 = vmatpush1.bf16.msra.mxu0 %v1895
        %1922 = vmatprep.subr.bf16.mxu0 0
        %1923 = vmatpush1.bf16.msra.mxu0 %v1896
        %1924 = vmatprep.subr.bf16.mxu0 0
        %1925 = vmatpush1.bf16.msra.mxu0 %v1897
        %1926 = vmatprep.subr.bf16.mxu0 0
        %1927 = vmatpush1.bf16.msra.mxu0 %v1910
        %1928 = vmatprep.subr.bf16.mxu0 0
        %1929 = vmatpush1.bf16.msra.mxu0 0
        %1930 = vmatprep.subr.bf16.mxu0 0
        %1931 = vmatpush1.bf16.msra.mxu0 0
        %1932 = vmatprep.subr.bf16.mxu0 0
        %1933 = vmatpush1.bf16.msra.mxu0 0
        %1934 = vmatprep.subr.bf16.mxu0 0
        %1935 = vmatpush1.bf16.msra.mxu0 0
        %1936 = vmatprep.subr.bf16.mxu0 0
        %1937 = vmatpush1.bf16.msra.mxu0 0
        %1938 = vmatprep.subr.bf16.mxu0 0
        %1939 = vmatpush1.bf16.msra.mxu0 0
        %1940 = vmatprep.subr.bf16.mxu0 0
        %1941 = vmatpush1.bf16.msra.mxu0 0
        %1942 = vmatprep.subr.bf16.mxu0 0
        %1943 = vmatpush1.bf16.msra.mxu0 0
        %1944 = vmatprep.mubr.bf16.mxu0 0
        %1945 = vmatmul.mubr.bf16.gmra.mrb[0].mxu0 %v1907
        %v1946 = vpop.f32.mrb[0].mxu0
        %v1947 = vadd.f32 0.0, %v1946
        %v1948 = vpop.f32.mrb[0].mxu0
        %v1949 = vpop.f32.mrb[0].mxu0
        %v1950 = vadd.f32 0.0, %v1949
        %v1951 = vpop.f32.mrb[0].mxu0
        %1952 = vdwg.mxu0
        %v1953 = vadd.f32 %v1642, %v1947
        %v1954 = vadd.f32 %v1645, %v1950
        %s1955 = scalar_lea.vmem %s5, 120
        %v1956 = vld [vmem:[%s1955] sm:$0xf]
        %v1957 = vld [vmem:[%s1955 + $0x4] sm:$0xf]
        %v1958 = vld [vmem:[%s1955 + $0x8] sm:$0xf]
        %v1959 = vld [vmem:[%s1955 + $0xc] sm:$0xf]
        %v1960 = vld [vmem:[%s1955 + $0x10] sm:$0xf]
        %v1961 = vld [vmem:[%s1955 + $0x14] sm:$0xf]
        %v1962 = vld [vmem:[%s1955 + $0x18] sm:$0xf]
        %v1963 = vld [vmem:[%s1955 + $0x1c] sm:$0xf]
        %v1964 = vld [vmem:[%s1955 + $0x20] sm:$0xf]
        %v1965 = vld [vmem:[%s1955 + $0x24] sm:$0xf]
        %v1966 = vld [vmem:[%s1955 + $0x28] sm:$0xf]
        %v1967 = vld [vmem:[%s1955 + $0x2c] sm:$0xf]
        %v1968 = vld [vmem:[%s1955 + $0x30] sm:$0xf]
        %v1969 = vld [vmem:[%s1955 + $0x34] sm:$0xf]
        %v1970 = vld [vmem:[%s1955 + $0x38] sm:$0xf]
        %v1986 = vunpack.c.l.b16 %v1956
        %v1987 = vunpack.c.l.b16 %v1957
        %v1988 = vunpack.c.l.b16 %v1958
        %v1989 = vunpack.c.l.b16 %v1959
        %v1990 = vunpack.c.l.b16 %v1960
        %v1991 = vunpack.c.l.b16 %v1961
        %v1992 = vunpack.c.l.b16 %v1962
        %v1993 = vunpack.c.l.b16 %v1963
        %v1994 = vunpack.c.l.b16 %v1964
        %v1995 = vunpack.c.l.b16 %v1965
        %v1996 = vunpack.c.l.b16 %v1966
        %v1997 = vunpack.c.l.b16 %v1967
        %v1998 = vunpack.c.l.b16 %v1968
        %v1999 = vunpack.c.l.b16 %v1969
        %v2000 = vunpack.c.l.b16 %v1970
        %v2001 = vpack.c.b16 %v1987, %v1986
        %v2002 = vpack.c.b16 %v1989, %v1988
        %v2003 = vpack.c.b16 %v1991, %v1990
        %v2004 = vpack.c.b16 %v1993, %v1992
        %v2005 = vpack.c.b16 %v1995, %v1994
        %v2006 = vpack.c.b16 %v1997, %v1996
        %v2007 = vpack.c.b16 %v1999, %v1998
        %v2008 = vpack.c.b16 %v2000, %v2000
        %v2017 = vsel %vm1511, %v2008, 0
        %2019 = vmatprep.subr.bf16.mxu0 0
        %2020 = vmatpush1.bf16.msra.mxu0 %v2001
        %2021 = vmatprep.subr.bf16.mxu0 0
        %2022 = vmatpush1.bf16.msra.mxu0 %v2002
        %2023 = vmatprep.subr.bf16.mxu0 0
        %2024 = vmatpush1.bf16.msra.mxu0 %v2003
        %2025 = vmatprep.subr.bf16.mxu0 0
        %2026 = vmatpush1.bf16.msra.mxu0 %v2004
        %2027 = vmatprep.subr.bf16.mxu0 0
        %2028 = vmatpush1.bf16.msra.mxu0 %v2005
        %2029 = vmatprep.subr.bf16.mxu0 0
        %2030 = vmatpush1.bf16.msra.mxu0 %v2006
        %2031 = vmatprep.subr.bf16.mxu0 0
        %2032 = vmatpush1.bf16.msra.mxu0 %v2007
        %2033 = vmatprep.subr.bf16.mxu0 0
        %2034 = vmatpush1.bf16.msra.mxu0 %v2017
        %2035 = vmatprep.subr.bf16.mxu0 0
        %2036 = vmatpush1.bf16.msra.mxu0 0
        %2037 = vmatprep.subr.bf16.mxu0 0
        %2038 = vmatpush1.bf16.msra.mxu0 0
        %2039 = vmatprep.subr.bf16.mxu0 0
        %2040 = vmatpush1.bf16.msra.mxu0 0
        %2041 = vmatprep.subr.bf16.mxu0 0
        %2042 = vmatpush1.bf16.msra.mxu0 0
        %2043 = vmatprep.subr.bf16.mxu0 0
        %2044 = vmatpush1.bf16.msra.mxu0 0
        %2045 = vmatprep.subr.bf16.mxu0 0
        %2046 = vmatpush1.bf16.msra.mxu0 0
        %2047 = vmatprep.subr.bf16.mxu0 0
        %2048 = vmatpush1.bf16.msra.mxu0 0
        %2049 = vmatprep.subr.bf16.mxu0 0
        %2050 = vmatpush1.bf16.msra.mxu0 0
        %2051 = vmatprep.mubr.bf16.mxu0 0
        %2052 = vmatmul.mubr.bf16.gmra.mrb[0].mxu0 %v1907
        %v2053 = vpop.f32.mrb[0].mxu0
        %v2054 = vadd.f32 0.0, %v2053
        %v2055 = vpop.f32.mrb[0].mxu0
        %v2056 = vpop.f32.mrb[0].mxu0
        %v2057 = vadd.f32 0.0, %v2056
        %v2058 = vpop.f32.mrb[0].mxu0
        %2059 = vdwg.mxu0
        %v2060 = vadd.f32 %v1836, %v2054
        %v2061 = vadd.f32 %v1839, %v2057
        %v2062 = vld [vmem:[#allocation3 + $0x3] sm:$0xff]
        %v2063 = vld [vmem:[#allocation3 + $0xb] sm:$0xff]
        %v2064 = vpack.c.bf16 %v2063, %v2062
        %s2065 = scalar_lea.vmem %s4, 180
        %v2066 = vld [vmem:[%s2065] sm:$0xf]
        %v2067 = vld [vmem:[%s2065 + $0x4] sm:$0xf]
        %v2068 = vld [vmem:[%s2065 + $0x8] sm:$0xf]
        %v2069 = vld [vmem:[%s2065 + $0xc] sm:$0xf]
        %v2070 = vld [vmem:[%s2065 + $0x10] sm:$0xf]
        %v2071 = vld [vmem:[%s2065 + $0x14] sm:$0xf]
        %v2072 = vld [vmem:[%s2065 + $0x18] sm:$0xf]
        %v2073 = vld [vmem:[%s2065 + $0x1c] sm:$0xf]
        %v2074 = vld [vmem:[%s2065 + $0x20] sm:$0xf]
        %v2075 = vld [vmem:[%s2065 + $0x24] sm:$0xf]
        %v2076 = vld [vmem:[%s2065 + $0x28] sm:$0xf]
        %v2077 = vld [vmem:[%s2065 + $0x2c] sm:$0xf]
        %v2078 = vld [vmem:[%s2065 + $0x30] sm:$0xf]
        %v2079 = vld [vmem:[%s2065 + $0x34] sm:$0xf]
        %v2080 = vld [vmem:[%s2065 + $0x38] sm:$0xf]
        %v2096 = vunpack.c.l.b16 %v2066
        %v2097 = vunpack.c.l.b16 %v2067
        %v2098 = vunpack.c.l.b16 %v2068
        %v2099 = vunpack.c.l.b16 %v2069
        %v2100 = vunpack.c.l.b16 %v2070
        %v2101 = vunpack.c.l.b16 %v2071
        %v2102 = vunpack.c.l.b16 %v2072
        %v2103 = vunpack.c.l.b16 %v2073
        %v2104 = vunpack.c.l.b16 %v2074
        %v2105 = vunpack.c.l.b16 %v2075
        %v2106 = vunpack.c.l.b16 %v2076
        %v2107 = vunpack.c.l.b16 %v2077
        %v2108 = vunpack.c.l.b16 %v2078
        %v2109 = vunpack.c.l.b16 %v2079
        %v2110 = vunpack.c.l.b16 %v2080
        %v2111 = vpack.c.b16 %v2097, %v2096
        %v2112 = vpack.c.b16 %v2099, %v2098
        %v2113 = vpack.c.b16 %v2101, %v2100
        %v2114 = vpack.c.b16 %v2103, %v2102
        %v2115 = vpack.c.b16 %v2105, %v2104
        %v2116 = vpack.c.b16 %v2107, %v2106
        %v2117 = vpack.c.b16 %v2109, %v2108
        %v2118 = vpack.c.b16 %v2110, %v2110
        %v2127 = vsel %vm1374, %v2064, 0
        %v2130 = vsel %vm1511, %v2118, 0
        %2132 = vmatprep.subr.bf16.mxu0 0
        %2133 = vmatpush1.bf16.msra.mxu0 %v2111
        %2134 = vmatprep.subr.bf16.mxu0 0
        %2135 = vmatpush1.bf16.msra.mxu0 %v2112
        %2136 = vmatprep.subr.bf16.mxu0 0
        %2137 = vmatpush1.bf16.msra.mxu0 %v2113
        %2138 = vmatprep.subr.bf16.mxu0 0
        %2139 = vmatpush1.bf16.msra.mxu0 %v2114
        %2140 = vmatprep.subr.bf16.mxu0 0
        %2141 = vmatpush1.bf16.msra.mxu0 %v2115
        %2142 = vmatprep.subr.bf16.mxu0 0
        %2143 = vmatpush1.bf16.msra.mxu0 %v2116
        %2144 = vmatprep.subr.bf16.mxu0 0
        %2145 = vmatpush1.bf16.msra.mxu0 %v2117
        %2146 = vmatprep.subr.bf16.mxu0 0
        %2147 = vmatpush1.bf16.msra.mxu0 %v2130
        %2148 = vmatprep.subr.bf16.mxu0 0
        %2149 = vmatpush1.bf16.msra.mxu0 0
        %2150 = vmatprep.subr.bf16.mxu0 0
        %2151 = vmatpush1.bf16.msra.mxu0 0
        %2152 = vmatprep.subr.bf16.mxu0 0
        %2153 = vmatpush1.bf16.msra.mxu0 0
        %2154 = vmatprep.subr.bf16.mxu0 0
        %2155 = vmatpush1.bf16.msra.mxu0 0
        %2156 = vmatprep.subr.bf16.mxu0 0
        %2157 = vmatpush1.bf16.msra.mxu0 0
        %2158 = vmatprep.subr.bf16.mxu0 0
        %2159 = vmatpush1.bf16.msra.mxu0 0
        %2160 = vmatprep.subr.bf16.mxu0 0
        %2161 = vmatpush1.bf16.msra.mxu0 0
        %2162 = vmatprep.subr.bf16.mxu0 0
        %2163 = vmatpush1.bf16.msra.mxu0 0
        %2164 = vmatprep.mubr.bf16.mxu0 0
        %2165 = vmatmul.mubr.bf16.gmra.mrb[0].mxu0 %v2127
        %v2166 = vpop.f32.mrb[0].mxu0
        %v2167 = vadd.f32 0.0, %v2166
        %v2168 = vpop.f32.mrb[0].mxu0
        %v2169 = vpop.f32.mrb[0].mxu0
        %v2170 = vadd.f32 0.0, %v2169
        %v2171 = vpop.f32.mrb[0].mxu0
        %2172 = vdwg.mxu0
        %v2173 = vadd.f32 %v1953, %v2167
        %v2174 = vadd.f32 %v1954, %v2170
        %s2175 = scalar_lea.vmem %s5, 180
        %v2176 = vld [vmem:[%s2175] sm:$0xf]
        %v2177 = vld [vmem:[%s2175 + $0x4] sm:$0xf]
        %v2178 = vld [vmem:[%s2175 + $0x8] sm:$0xf]
        %v2179 = vld [vmem:[%s2175 + $0xc] sm:$0xf]
        %v2180 = vld [vmem:[%s2175 + $0x10] sm:$0xf]
        %v2181 = vld [vmem:[%s2175 + $0x14] sm:$0xf]
        %v2182 = vld [vmem:[%s2175 + $0x18] sm:$0xf]
        %v2183 = vld [vmem:[%s2175 + $0x1c] sm:$0xf]
        %v2184 = vld [vmem:[%s2175 + $0x20] sm:$0xf]
        %v2185 = vld [vmem:[%s2175 + $0x24] sm:$0xf]
        %v2186 = vld [vmem:[%s2175 + $0x28] sm:$0xf]
        %v2187 = vld [vmem:[%s2175 + $0x2c] sm:$0xf]
        %v2188 = vld [vmem:[%s2175 + $0x30] sm:$0xf]
        %v2189 = vld [vmem:[%s2175 + $0x34] sm:$0xf]
        %v2190 = vld [vmem:[%s2175 + $0x38] sm:$0xf]
        %v2206 = vunpack.c.l.b16 %v2176
        %v2207 = vunpack.c.l.b16 %v2177
        %v2208 = vunpack.c.l.b16 %v2178
        %v2209 = vunpack.c.l.b16 %v2179
        %v2210 = vunpack.c.l.b16 %v2180
        %v2211 = vunpack.c.l.b16 %v2181
        %v2212 = vunpack.c.l.b16 %v2182
        %v2213 = vunpack.c.l.b16 %v2183
        %v2214 = vunpack.c.l.b16 %v2184
        %v2215 = vunpack.c.l.b16 %v2185
        %v2216 = vunpack.c.l.b16 %v2186
        %v2217 = vunpack.c.l.b16 %v2187
        %v2218 = vunpack.c.l.b16 %v2188
        %v2219 = vunpack.c.l.b16 %v2189
        %v2220 = vunpack.c.l.b16 %v2190
        %v2221 = vpack.c.b16 %v2207, %v2206
        %v2222 = vpack.c.b16 %v2209, %v2208
        %v2223 = vpack.c.b16 %v2211, %v2210
        %v2224 = vpack.c.b16 %v2213, %v2212
        %v2225 = vpack.c.b16 %v2215, %v2214
        %v2226 = vpack.c.b16 %v2217, %v2216
        %v2227 = vpack.c.b16 %v2219, %v2218
        %v2228 = vpack.c.b16 %v2220, %v2220
        %v2237 = vsel %vm1511, %v2228, 0
        %2239 = vmatprep.subr.bf16.mxu0 0
        %2240 = vmatpush1.bf16.msra.mxu0 %v2221
        %2241 = vmatprep.subr.bf16.mxu0 0
        %2242 = vmatpush1.bf16.msra.mxu0 %v2222
        %2243 = vmatprep.subr.bf16.mxu0 0
        %2244 = vmatpush1.bf16.msra.mxu0 %v2223
        %2245 = vmatprep.subr.bf16.mxu0 0
        %2246 = vmatpush1.bf16.msra.mxu0 %v2224
        %2247 = vmatprep.subr.bf16.mxu0 0
        %2248 = vmatpush1.bf16.msra.mxu0 %v2225
        %2249 = vmatprep.subr.bf16.mxu0 0
        %2250 = vmatpush1.bf16.msra.mxu0 %v2226
        %2251 = vmatprep.subr.bf16.mxu0 0
        %2252 = vmatpush1.bf16.msra.mxu0 %v2227
        %2253 = vmatprep.subr.bf16.mxu0 0
        %2254 = vmatpush1.bf16.msra.mxu0 %v2237
        %2255 = vmatprep.subr.bf16.mxu0 0
        %2256 = vmatpush1.bf16.msra.mxu0 0
        %2257 = vmatprep.subr.bf16.mxu0 0
        %2258 = vmatpush1.bf16.msra.mxu0 0
        %2259 = vmatprep.subr.bf16.mxu0 0
        %2260 = vmatpush1.bf16.msra.mxu0 0
        %2261 = vmatprep.subr.bf16.mxu0 0
        %2262 = vmatpush1.bf16.msra.mxu0 0
        %2263 = vmatprep.subr.bf16.mxu0 0
        %2264 = vmatpush1.bf16.msra.mxu0 0
        %2265 = vmatprep.subr.bf16.mxu0 0
        %2266 = vmatpush1.bf16.msra.mxu0 0
        %2267 = vmatprep.subr.bf16.mxu0 0
        %2268 = vmatpush1.bf16.msra.mxu0 0
        %2269 = vmatprep.subr.bf16.mxu0 0
        %2270 = vmatpush1.bf16.msra.mxu0 0
        %2271 = vmatprep.mubr.bf16.mxu0 0
        %2272 = vmatmul.mubr.bf16.gmra.mrb[0].mxu0 %v2127
        %v2273 = vpop.f32.mrb[0].mxu0
        %v2274 = vadd.f32 0.0, %v2273
        %v2275 = vpop.f32.mrb[0].mxu0
        %v2276 = vpop.f32.mrb[0].mxu0
        %v2277 = vadd.f32 0.0, %v2276
        %v2278 = vpop.f32.mrb[0].mxu0
        %2279 = vdwg.mxu0
        %v2280 = vadd.f32 %v2060, %v2274
        %v2281 = vadd.f32 %v2061, %v2277
        %v2282 = vld [vmem:[#allocation3 + $0x4] sm:$0xff]
        %v2283 = vld [vmem:[#allocation3 + $0xc] sm:$0xff]
        %v2284 = vpack.c.bf16 %v2283, %v2282
        %s2285 = scalar_lea.vmem %s4, 240
        %v2286 = vld [vmem:[%s2285] sm:$0xf]
        %v2287 = vld [vmem:[%s2285 + $0x4] sm:$0xf]
        %v2288 = vld [vmem:[%s2285 + $0x8] sm:$0xf]
        %v2289 = vld [vmem:[%s2285 + $0xc] sm:$0xf]
        %v2290 = vld [vmem:[%s2285 + $0x10] sm:$0xf]
        %v2291 = vld [vmem:[%s2285 + $0x14] sm:$0xf]
        %v2292 = vld [vmem:[%s2285 + $0x18] sm:$0xf]
        %v2293 = vld [vmem:[%s2285 + $0x1c] sm:$0xf]
        %v2294 = vld [vmem:[%s2285 + $0x20] sm:$0xf]
        %v2295 = vld [vmem:[%s2285 + $0x24] sm:$0xf]
        %v2296 = vld [vmem:[%s2285 + $0x28] sm:$0xf]
        %v2297 = vld [vmem:[%s2285 + $0x2c] sm:$0xf]
        %v2298 = vld [vmem:[%s2285 + $0x30] sm:$0xf]
        %v2299 = vld [vmem:[%s2285 + $0x34] sm:$0xf]
        %v2300 = vld [vmem:[%s2285 + $0x38] sm:$0xf]
        %v2316 = vunpack.c.l.b16 %v2286
        %v2317 = vunpack.c.l.b16 %v2287
        %v2318 = vunpack.c.l.b16 %v2288
        %v2319 = vunpack.c.l.b16 %v2289
        %v2320 = vunpack.c.l.b16 %v2290
        %v2321 = vunpack.c.l.b16 %v2291
        %v2322 = vunpack.c.l.b16 %v2292
        %v2323 = vunpack.c.l.b16 %v2293
        %v2324 = vunpack.c.l.b16 %v2294
        %v2325 = vunpack.c.l.b16 %v2295
        %v2326 = vunpack.c.l.b16 %v2296
        %v2327 = vunpack.c.l.b16 %v2297
        %v2328 = vunpack.c.l.b16 %v2298
        %v2329 = vunpack.c.l.b16 %v2299
        %v2330 = vunpack.c.l.b16 %v2300
        %v2331 = vpack.c.b16 %v2317, %v2316
        %v2332 = vpack.c.b16 %v2319, %v2318
        %v2333 = vpack.c.b16 %v2321, %v2320
        %v2334 = vpack.c.b16 %v2323, %v2322
        %v2335 = vpack.c.b16 %v2325, %v2324
        %v2336 = vpack.c.b16 %v2327, %v2326
        %v2337 = vpack.c.b16 %v2329, %v2328
        %v2338 = vpack.c.b16 %v2330, %v2330
        %v2347 = vsel %vm1374, %v2284, 0
        %v2350 = vsel %vm1511, %v2338, 0
        %2352 = vmatprep.subr.bf16.mxu0 0
        %2353 = vmatpush1.bf16.msra.mxu0 %v2331
        %2354 = vmatprep.subr.bf16.mxu0 0
        %2355 = vmatpush1.bf16.msra.mxu0 %v2332
        %2356 = vmatprep.subr.bf16.mxu0 0
        %2357 = vmatpush1.bf16.msra.mxu0 %v2333
        %2358 = vmatprep.subr.bf16.mxu0 0
        %2359 = vmatpush1.bf16.msra.mxu0 %v2334
        %2360 = vmatprep.subr.bf16.mxu0 0
        %2361 = vmatpush1.bf16.msra.mxu0 %v2335
        %2362 = vmatprep.subr.bf16.mxu0 0
        %2363 = vmatpush1.bf16.msra.mxu0 %v2336
        %2364 = vmatprep.subr.bf16.mxu0 0
        %2365 = vmatpush1.bf16.msra.mxu0 %v2337
        %2366 = vmatprep.subr.bf16.mxu0 0
        %2367 = vmatpush1.bf16.msra.mxu0 %v2350
        %2368 = vmatprep.subr.bf16.mxu0 0
        %2369 = vmatpush1.bf16.msra.mxu0 0
        %2370 = vmatprep.subr.bf16.mxu0 0
        %2371 = vmatpush1.bf16.msra.mxu0 0
        %2372 = vmatprep.subr.bf16.mxu0 0
        %2373 = vmatpush1.bf16.msra.mxu0 0
        %2374 = vmatprep.subr.bf16.mxu0 0
        %2375 = vmatpush1.bf16.msra.mxu0 0
        %2376 = vmatprep.subr.bf16.mxu0 0
        %2377 = vmatpush1.bf16.msra.mxu0 0
        %2378 = vmatprep.subr.bf16.mxu0 0
        %2379 = vmatpush1.bf16.msra.mxu0 0
        %2380 = vmatprep.subr.bf16.mxu0 0
        %2381 = vmatpush1.bf16.msra.mxu0 0
        %2382 = vmatprep.subr.bf16.mxu0 0
        %2383 = vmatpush1.bf16.msra.mxu0 0
        %2384 = vmatprep.mubr.bf16.mxu0 0
        %2385 = vmatmul.mubr.bf16.gmra.mrb[0].mxu0 %v2347
        %v2386 = vpop.f32.mrb[0].mxu0
        %v2387 = vadd.f32 0.0, %v2386
        %v2388 = vpop.f32.mrb[0].mxu0
        %v2389 = vpop.f32.mrb[0].mxu0
        %v2390 = vadd.f32 0.0, %v2389
        %v2391 = vpop.f32.mrb[0].mxu0
        %2392 = vdwg.mxu0
        %v2393 = vadd.f32 %v2173, %v2387
        %v2394 = vadd.f32 %v2174, %v2390
        %s2395 = scalar_lea.vmem %s5, 240
        %v2396 = vld [vmem:[%s2395] sm:$0xf]
        %v2397 = vld [vmem:[%s2395 + $0x4] sm:$0xf]
        %v2398 = vld [vmem:[%s2395 + $0x8] sm:$0xf]
        %v2399 = vld [vmem:[%s2395 + $0xc] sm:$0xf]
        %v2400 = vld [vmem:[%s2395 + $0x10] sm:$0xf]
        %v2401 = vld [vmem:[%s2395 + $0x14] sm:$0xf]
        %v2402 = vld [vmem:[%s2395 + $0x18] sm:$0xf]
        %v2403 = vld [vmem:[%s2395 + $0x1c] sm:$0xf]
        %v2404 = vld [vmem:[%s2395 + $0x20] sm:$0xf]
        %v2405 = vld [vmem:[%s2395 + $0x24] sm:$0xf]
        %v2406 = vld [vmem:[%s2395 + $0x28] sm:$0xf]
        %v2407 = vld [vmem:[%s2395 + $0x2c] sm:$0xf]
        %v2408 = vld [vmem:[%s2395 + $0x30] sm:$0xf]
        %v2409 = vld [vmem:[%s2395 + $0x34] sm:$0xf]
        %v2410 = vld [vmem:[%s2395 + $0x38] sm:$0xf]
        %v2426 = vunpack.c.l.b16 %v2396
        %v2427 = vunpack.c.l.b16 %v2397
        %v2428 = vunpack.c.l.b16 %v2398
        %v2429 = vunpack.c.l.b16 %v2399
        %v2430 = vunpack.c.l.b16 %v2400
        %v2431 = vunpack.c.l.b16 %v2401
        %v2432 = vunpack.c.l.b16 %v2402
        %v2433 = vunpack.c.l.b16 %v2403
        %v2434 = vunpack.c.l.b16 %v2404
        %v2435 = vunpack.c.l.b16 %v2405
        %v2436 = vunpack.c.l.b16 %v2406
        %v2437 = vunpack.c.l.b16 %v2407
        %v2438 = vunpack.c.l.b16 %v2408
        %v2439 = vunpack.c.l.b16 %v2409
        %v2440 = vunpack.c.l.b16 %v2410
        %v2441 = vpack.c.b16 %v2427, %v2426
        %v2442 = vpack.c.b16 %v2429, %v2428
        %v2443 = vpack.c.b16 %v2431, %v2430
        %v2444 = vpack.c.b16 %v2433, %v2432
        %v2445 = vpack.c.b16 %v2435, %v2434
        %v2446 = vpack.c.b16 %v2437, %v2436
        %v2447 = vpack.c.b16 %v2439, %v2438
        %v2448 = vpack.c.b16 %v2440, %v2440
        %v2457 = vsel %vm1511, %v2448, 0
        %2459 = vmatprep.subr.bf16.mxu0 0
        %2460 = vmatpush1.bf16.msra.mxu0 %v2441
        %2461 = vmatprep.subr.bf16.mxu0 0
        %2462 = vmatpush1.bf16.msra.mxu0 %v2442
        %2463 = vmatprep.subr.bf16.mxu0 0
        %2464 = vmatpush1.bf16.msra.mxu0 %v2443
        %2465 = vmatprep.subr.bf16.mxu0 0
        %2466 = vmatpush1.bf16.msra.mxu0 %v2444
        %2467 = vmatprep.subr.bf16.mxu0 0
        %2468 = vmatpush1.bf16.msra.mxu0 %v2445
        %2469 = vmatprep.subr.bf16.mxu0 0
        %2470 = vmatpush1.bf16.msra.mxu0 %v2446
        %2471 = vmatprep.subr.bf16.mxu0 0
        %2472 = vmatpush1.bf16.msra.mxu0 %v2447
        %2473 = vmatprep.subr.bf16.mxu0 0
        %2474 = vmatpush1.bf16.msra.mxu0 %v2457
        %2475 = vmatprep.subr.bf16.mxu0 0
        %2476 = vmatpush1.bf16.msra.mxu0 0
        %2477 = vmatprep.subr.bf16.mxu0 0
        %2478 = vmatpush1.bf16.msra.mxu0 0
        %2479 = vmatprep.subr.bf16.mxu0 0
        %2480 = vmatpush1.bf16.msra.mxu0 0
        %2481 = vmatprep.subr.bf16.mxu0 0
        %2482 = vmatpush1.bf16.msra.mxu0 0
        %2483 = vmatprep.subr.bf16.mxu0 0
        %2484 = vmatpush1.bf16.msra.mxu0 0
        %2485 = vmatprep.subr.bf16.mxu0 0
        %2486 = vmatpush1.bf16.msra.mxu0 0
        %2487 = vmatprep.subr.bf16.mxu0 0
        %2488 = vmatpush1.bf16.msra.mxu0 0
        %2489 = vmatprep.subr.bf16.mxu0 0
        %2490 = vmatpush1.bf16.msra.mxu0 0
        %2491 = vmatprep.mubr.bf16.mxu0 0
        %2492 = vmatmul.mubr.bf16.gmra.mrb[0].mxu0 %v2347
        %v2493 = vpop.f32.mrb[0].mxu0
        %v2494 = vadd.f32 0.0, %v2493
        %v2495 = vpop.f32.mrb[0].mxu0
        %v2496 = vpop.f32.mrb[0].mxu0
        %v2497 = vadd.f32 0.0, %v2496
        %v2498 = vpop.f32.mrb[0].mxu0
        %2499 = vdwg.mxu0
        %v2500 = vadd.f32 %v2280, %v2494
        %v2501 = vadd.f32 %v2281, %v2497
        %v2502 = vmax.f32 %v2393, %v2500
        %v2503 = vmax.f32 %v2394, %v2501
        %vm2504 = vcmask 261120
        %2505 = vst.msk [vmem:[#allocation4] sm:$0xff] %vm2504, %v2502
        %2506 = vst.msk [vmem:[#allocation4 + $0x8] sm:$0xff] %vm2504, %v2503
        %v2507 = vld [vmem:[#allocation4] ss:$2 sm:$0xff]
        %s2508 = scalar_lea.vmem [#allocation4], 1
        %v2509 = vld [vmem:[%s2508] ss:$2 sm:$0xff]
        %v2510 = vmax.f32 %v2507, %v2509
        %v2511 = vld [vmem:[%s6] sm:$0x1]
        %v2513 = vlaneseq
        %v2514 = vshrl.u32 %v2513, 7
        %v2515 = vsub.s32 0, %v2514
        %v2516 = vrot.slane %v2511, %v2515
        %v2518 = vadd.f32 %v2510, %v2516
        %v2519 = vmax.f32 %v2518, 0.0
        %2520 = vst.msk [vmem:[#allocation5] sm:$0xff] %vm2504, %v2519
        %v2521 = vld [vmem:[#allocation5] sm:$0x1]
        %v2522 = vpack.c.bf16 %v2521, %v2521
        %v2523 = vld [vmem:[%s7] sm:$0xf]
        %v2524 = vld [vmem:[%s7 + $0x4] sm:$0xf]
        %v2525 = vld [vmem:[%s7 + $0x8] sm:$0xf]
        %v2526 = vld [vmem:[%s7 + $0xc] sm:$0xf]
        %v2527 = vld [vmem:[#allocation5 + $0x1] sm:$0x1]
        %v2528 = vpack.c.bf16 %v2527, %v2527
        %s2529 = scalar_lea.vmem %s7, 16
        %v2530 = vld [vmem:[%s2529] sm:$0xf]
        %v2531 = vld [vmem:[%s2529 + $0x4] sm:$0xf]
        %v2532 = vld [vmem:[%s2529 + $0x8] sm:$0xf]
        %v2533 = vld [vmem:[%s2529 + $0xc] sm:$0xf]
        %v2538 = vunpack.c.l.b16 %v2530
        %v2539 = vunpack.c.l.b16 %v2531
        %v2540 = vunpack.c.l.b16 %v2532
        %v2541 = vunpack.c.l.b16 %v2533
        %v2542 = vpack.c.b16 %v2539, %v2538
        %v2543 = vpack.c.b16 %v2541, %v2540
        %v2547 = vsel %vm2504, %v2528, 0
        %2549 = vmatprep.subr.bf16.mxu0 0
        %2550 = vmatpush1.bf16.msra.mxu0 %v2542
        %2551 = vmatprep.subr.bf16.mxu0 0
        %2552 = vmatpush1.bf16.msra.mxu0 %v2543
        %2553 = vmatprep.subr.bf16.mxu0 0
        %2554 = vmatpush1.bf16.msra.mxu0 0
        %2555 = vmatprep.subr.bf16.mxu0 0
        %2556 = vmatpush1.bf16.msra.mxu0 0
        %2557 = vmatprep.subr.bf16.mxu0 0
        %2558 = vmatpush1.bf16.msra.mxu0 0
        %2559 = vmatprep.subr.bf16.mxu0 0
        %2560 = vmatpush1.bf16.msra.mxu0 0
        %2561 = vmatprep.subr.bf16.mxu0 0
        %2562 = vmatpush1.bf16.msra.mxu0 0
        %2563 = vmatprep.subr.bf16.mxu0 0
        %2564 = vmatpush1.bf16.msra.mxu0 0
        %2565 = vmatprep.subr.bf16.mxu0 0
        %2566 = vmatpush1.bf16.msra.mxu0 0
        %2567 = vmatprep.subr.bf16.mxu0 0
        %2568 = vmatpush1.bf16.msra.mxu0 0
        %2569 = vmatprep.subr.bf16.mxu0 0
        %2570 = vmatpush1.bf16.msra.mxu0 0
        %2571 = vmatprep.subr.bf16.mxu0 0
        %2572 = vmatpush1.bf16.msra.mxu0 0
        %2573 = vmatprep.subr.bf16.mxu0 0
        %2574 = vmatpush1.bf16.msra.mxu0 0
        %2575 = vmatprep.subr.bf16.mxu0 0
        %2576 = vmatpush1.bf16.msra.mxu0 0
        %2577 = vmatprep.subr.bf16.mxu0 0
        %2578 = vmatpush1.bf16.msra.mxu0 0
        %2579 = vmatprep.subr.bf16.mxu0 0
        %2580 = vmatpush1.bf16.msra.mxu0 0
        %2581 = vmatprep.mubr.bf16.mxu0 0
        %2582 = vmatmul.mubr.bf16.gmra.mrb[0].mxu0 %v2547
        %v2583 = vpop.f32.mrb[0].mxu0
        %v2584 = vadd.f32 0.0, %v2583
        %v2585 = vpop.f32.mrb[0].mxu0
        %v2586 = vpop.f32.mrb[0].mxu0
        %v2587 = vpop.f32.mrb[0].mxu0
        %2588 = vdwg.mxu0
        %v2593 = vunpack.c.l.b16 %v2523
        %v2594 = vunpack.c.l.b16 %v2524
        %v2595 = vunpack.c.l.b16 %v2525
        %v2596 = vunpack.c.l.b16 %v2526
        %v2597 = vpack.c.b16 %v2594, %v2593
        %v2598 = vpack.c.b16 %v2596, %v2595
        %v2602 = vsel %vm2504, %v2522, 0
        %2604 = vmatprep.subr.bf16.mxu0 0
        %2605 = vmatpush1.bf16.msra.mxu0 %v2597
        %2606 = vmatprep.subr.bf16.mxu0 0
        %2607 = vmatpush1.bf16.msra.mxu0 %v2598
        %2608 = vmatprep.subr.bf16.mxu0 0
        %2609 = vmatpush1.bf16.msra.mxu0 0
        %2610 = vmatprep.subr.bf16.mxu0 0
        %2611 = vmatpush1.bf16.msra.mxu0 0
        %2612 = vmatprep.subr.bf16.mxu0 0
        %2613 = vmatpush1.bf16.msra.mxu0 0
        %2614 = vmatprep.subr.bf16.mxu0 0
        %2615 = vmatpush1.bf16.msra.mxu0 0
        %2616 = vmatprep.subr.bf16.mxu0 0
        %2617 = vmatpush1.bf16.msra.mxu0 0
        %2618 = vmatprep.subr.bf16.mxu0 0
        %2619 = vmatpush1.bf16.msra.mxu0 0
        %2620 = vmatprep.subr.bf16.mxu0 0
        %2621 = vmatpush1.bf16.msra.mxu0 0
        %2622 = vmatprep.subr.bf16.mxu0 0
        %2623 = vmatpush1.bf16.msra.mxu0 0
        %2624 = vmatprep.subr.bf16.mxu0 0
        %2625 = vmatpush1.bf16.msra.mxu0 0
        %2626 = vmatprep.subr.bf16.mxu0 0
        %2627 = vmatpush1.bf16.msra.mxu0 0
        %2628 = vmatprep.subr.bf16.mxu0 0
        %2629 = vmatpush1.bf16.msra.mxu0 0
        %2630 = vmatprep.subr.bf16.mxu0 0
        %2631 = vmatpush1.bf16.msra.mxu0 0
        %2632 = vmatprep.subr.bf16.mxu0 0
        %2633 = vmatpush1.bf16.msra.mxu0 0
        %2634 = vmatprep.subr.bf16.mxu0 0
        %2635 = vmatpush1.bf16.msra.mxu0 0
        %2636 = vmatprep.mubr.bf16.mxu0 0
        %2637 = vmatmul.mubr.bf16.gmra.mrb[0].mxu0 %v2602
        %v2638 = vpop.f32.mrb[0].mxu0
        %v2639 = vadd.f32 %v2584, %v2638
        %v2640 = vpop.f32.mrb[0].mxu0
        %v2641 = vpop.f32.mrb[0].mxu0
        %v2642 = vpop.f32.mrb[0].mxu0
        %2643 = vdwg.mxu0
        %v2644 = vld [vmem:[#allocation5 + $0x2] sm:$0x1]
        %v2645 = vpack.c.bf16 %v2644, %v2644
        %s2646 = scalar_lea.vmem %s7, 32
        %v2647 = vld [vmem:[%s2646] sm:$0xf]
        %v2648 = vld [vmem:[%s2646 + $0x4] sm:$0xf]
        %v2649 = vld [vmem:[%s2646 + $0x8] sm:$0xf]
        %v2650 = vld [vmem:[%s2646 + $0xc] sm:$0xf]
        %v2655 = vunpack.c.l.b16 %v2647
        %v2656 = vunpack.c.l.b16 %v2648
        %v2657 = vunpack.c.l.b16 %v2649
        %v2658 = vunpack.c.l.b16 %v2650
        %v2659 = vpack.c.b16 %v2656, %v2655
        %v2660 = vpack.c.b16 %v2658, %v2657
        %v2664 = vsel %vm2504, %v2645, 0
        %2666 = vmatprep.subr.bf16.mxu0 0
        %2667 = vmatpush1.bf16.msra.mxu0 %v2659
        %2668 = vmatprep.subr.bf16.mxu0 0
        %2669 = vmatpush1.bf16.msra.mxu0 %v2660
        %2670 = vmatprep.subr.bf16.mxu0 0
        %2671 = vmatpush1.bf16.msra.mxu0 0
        %2672 = vmatprep.subr.bf16.mxu0 0
        %2673 = vmatpush1.bf16.msra.mxu0 0
        %2674 = vmatprep.subr.bf16.mxu0 0
        %2675 = vmatpush1.bf16.msra.mxu0 0
        %2676 = vmatprep.subr.bf16.mxu0 0
        %2677 = vmatpush1.bf16.msra.mxu0 0
        %2678 = vmatprep.subr.bf16.mxu0 0
        %2679 = vmatpush1.bf16.msra.mxu0 0
        %2680 = vmatprep.subr.bf16.mxu0 0
        %2681 = vmatpush1.bf16.msra.mxu0 0
        %2682 = vmatprep.subr.bf16.mxu0 0
        %2683 = vmatpush1.bf16.msra.mxu0 0
        %2684 = vmatprep.subr.bf16.mxu0 0
        %2685 = vmatpush1.bf16.msra.mxu0 0
        %2686 = vmatprep.subr.bf16.mxu0 0
        %2687 = vmatpush1.bf16.msra.mxu0 0
        %2688 = vmatprep.subr.bf16.mxu0 0
        %2689 = vmatpush1.bf16.msra.mxu0 0
        %2690 = vmatprep.subr.bf16.mxu0 0
        %2691 = vmatpush1.bf16.msra.mxu0 0
        %2692 = vmatprep.subr.bf16.mxu0 0
        %2693 = vmatpush1.bf16.msra.mxu0 0
        %2694 = vmatprep.subr.bf16.mxu0 0
        %2695 = vmatpush1.bf16.msra.mxu0 0
        %2696 = vmatprep.subr.bf16.mxu0 0
        %2697 = vmatpush1.bf16.msra.mxu0 0
        %2698 = vmatprep.mubr.bf16.mxu0 0
        %2699 = vmatmul.mubr.bf16.gmra.mrb[0].mxu0 %v2664
        %v2700 = vpop.f32.mrb[0].mxu0
        %v2701 = vadd.f32 0.0, %v2700
        %v2702 = vpop.f32.mrb[0].mxu0
        %v2703 = vpop.f32.mrb[0].mxu0
        %v2704 = vpop.f32.mrb[0].mxu0
        %2705 = vdwg.mxu0
        %v2706 = vadd.f32 %v2639, %v2701
        %v2707 = vld [vmem:[#allocation5 + $0x3] sm:$0x1]
        %v2708 = vpack.c.bf16 %v2707, %v2707
        %s2709 = scalar_lea.vmem %s7, 48
        %v2710 = vld [vmem:[%s2709] sm:$0xf]
        %v2711 = vld [vmem:[%s2709 + $0x4] sm:$0xf]
        %v2712 = vld [vmem:[%s2709 + $0x8] sm:$0xf]
        %v2713 = vld [vmem:[%s2709 + $0xc] sm:$0xf]
        %v2718 = vunpack.c.l.b16 %v2710
        %v2719 = vunpack.c.l.b16 %v2711
        %v2720 = vunpack.c.l.b16 %v2712
        %v2721 = vunpack.c.l.b16 %v2713
        %v2722 = vpack.c.b16 %v2719, %v2718
        %v2723 = vpack.c.b16 %v2721, %v2720
        %v2727 = vsel %vm2504, %v2708, 0
        %2729 = vmatprep.subr.bf16.mxu0 0
        %2730 = vmatpush1.bf16.msra.mxu0 %v2722
        %2731 = vmatprep.subr.bf16.mxu0 0
        %2732 = vmatpush1.bf16.msra.mxu0 %v2723
        %2733 = vmatprep.subr.bf16.mxu0 0
        %2734 = vmatpush1.bf16.msra.mxu0 0
        %2735 = vmatprep.subr.bf16.mxu0 0
        %2736 = vmatpush1.bf16.msra.mxu0 0
        %2737 = vmatprep.subr.bf16.mxu0 0
        %2738 = vmatpush1.bf16.msra.mxu0 0
        %2739 = vmatprep.subr.bf16.mxu0 0
        %2740 = vmatpush1.bf16.msra.mxu0 0
        %2741 = vmatprep.subr.bf16.mxu0 0
        %2742 = vmatpush1.bf16.msra.mxu0 0
        %2743 = vmatprep.subr.bf16.mxu0 0
        %2744 = vmatpush1.bf16.msra.mxu0 0
        %2745 = vmatprep.subr.bf16.mxu0 0
        %2746 = vmatpush1.bf16.msra.mxu0 0
        %2747 = vmatprep.subr.bf16.mxu0 0
        %2748 = vmatpush1.bf16.msra.mxu0 0
        %2749 = vmatprep.subr.bf16.mxu0 0
        %2750 = vmatpush1.bf16.msra.mxu0 0
        %2751 = vmatprep.subr.bf16.mxu0 0
        %2752 = vmatpush1.bf16.msra.mxu0 0
        %2753 = vmatprep.subr.bf16.mxu0 0
        %2754 = vmatpush1.bf16.msra.mxu0 0
        %2755 = vmatprep.subr.bf16.mxu0 0
        %2756 = vmatpush1.bf16.msra.mxu0 0
        %2757 = vmatprep.subr.bf16.mxu0 0
        %2758 = vmatpush1.bf16.msra.mxu0 0
        %2759 = vmatprep.subr.bf16.mxu0 0
        %2760 = vmatpush1.bf16.msra.mxu0 0
        %2761 = vmatprep.mubr.bf16.mxu0 0
        %2762 = vmatmul.mubr.bf16.gmra.mrb[0].mxu0 %v2727
        %v2763 = vpop.f32.mrb[0].mxu0
        %v2764 = vadd.f32 0.0, %v2763
        %v2765 = vpop.f32.mrb[0].mxu0
        %v2766 = vpop.f32.mrb[0].mxu0
        %v2767 = vpop.f32.mrb[0].mxu0
        %2768 = vdwg.mxu0
        %v2769 = vadd.f32 %v2706, %v2764
        %v2770 = vld [vmem:[%s8] sm:$0x1]
        %v2771 = vadd.f32 %v2769, %v2770
        %v2772 = vmax.f32 %v2771, 0.0
        %vm2773 = vcmask 401408
        %2774 = vst.msk [vmem:[%s415] sm:$0x1] %vm2773, %v2772
        %v2775 = vpack.c.bf16 %v2772, %v2772
        %v2776 = vld [vmem:[%s9] sm:$0xf]
        %v2777 = vld [vmem:[%s9 + $0x4] sm:$0xf]
        %v2778 = vld [vmem:[%s9 + $0x8] sm:$0xf]
        %v2779 = vld [vmem:[%s9 + $0xc] sm:$0xf]
        %v2780 = vld [vmem:[%s9 + $0x10] sm:$0xf]
        %v2781 = vld [vmem:[%s9 + $0x14] sm:$0xf]
        %v2782 = vld [vmem:[%s9 + $0x18] sm:$0x1]
        %v2783 = vld [vmem:[%s10] sm:$0x1]
        %v2791 = vunpack.c.l.b16 %v2776
        %v2792 = vunpack.c.l.b16 %v2777
        %v2793 = vunpack.c.l.b16 %v2778
        %v2794 = vunpack.c.l.b16 %v2779
        %v2795 = vunpack.c.l.b16 %v2780
        %v2796 = vunpack.c.l.b16 %v2781
        %v2797 = vunpack.c.l.b16 %v2782
        %v2798 = vpack.c.b16 %v2792, %v2791
        %v2799 = vpack.c.b16 %v2794, %v2793
        %v2800 = vpack.c.b16 %v2796, %v2795
        %v2801 = vpack.c.b16 %v2797, %v2797
        %vm2805 = vcmask 408576
        %v2807 = vsel %vm2805, %v2775, 0
        %vm2809 = vcmask 1040384
        %v2811 = vsel %vm2809, %v2801, 0
        %2813 = vmatprep.subr.bf16.mxu0 0
        %2814 = vmatpush1.bf16.msra.mxu0 %v2798
        %2815 = vmatprep.subr.bf16.mxu0 0
        %2816 = vmatpush1.bf16.msra.mxu0 %v2799
        %2817 = vmatprep.subr.bf16.mxu0 0
        %2818 = vmatpush1.bf16.msra.mxu0 %v2800
        %2819 = vmatprep.subr.bf16.mxu0 0
        %2820 = vmatpush1.bf16.msra.mxu0 %v2811
        %2821 = vmatprep.subr.bf16.mxu0 0
        %2822 = vmatpush1.bf16.msra.mxu0 0
        %2823 = vmatprep.subr.bf16.mxu0 0
        %2824 = vmatpush1.bf16.msra.mxu0 0
        %2825 = vmatprep.subr.bf16.mxu0 0
        %2826 = vmatpush1.bf16.msra.mxu0 0
        %2827 = vmatprep.subr.bf16.mxu0 0
        %2828 = vmatpush1.bf16.msra.mxu0 0
        %2829 = vmatprep.subr.bf16.mxu0 0
        %2830 = vmatpush1.bf16.msra.mxu0 0
        %2831 = vmatprep.subr.bf16.mxu0 0
        %2832 = vmatpush1.bf16.msra.mxu0 0
        %2833 = vmatprep.subr.bf16.mxu0 0
        %2834 = vmatpush1.bf16.msra.mxu0 0
        %2835 = vmatprep.subr.bf16.mxu0 0
        %2836 = vmatpush1.bf16.msra.mxu0 0
        %2837 = vmatprep.subr.bf16.mxu0 0
        %2838 = vmatpush1.bf16.msra.mxu0 0
        %2839 = vmatprep.subr.bf16.mxu0 0
        %2840 = vmatpush1.bf16.msra.mxu0 0
        %2841 = vmatprep.subr.bf16.mxu0 0
        %2842 = vmatpush1.bf16.msra.mxu0 0
        %2843 = vmatprep.subr.bf16.mxu0 0
        %2844 = vmatpush1.bf16.msra.mxu0 0
        %2845 = vmatprep.mubr.bf16.mxu0 0
        %2846 = vmatmul.mubr.bf16.gmra.mrb[0].mxu0 %v2807
        %v2847 = vpop.f32.mrb[0].mxu0
        %v2848 = vadd.f32 %v2783, %v2847
        %v2849 = vpop.f32.mrb[0].mxu0
        %v2850 = vpop.f32.mrb[0].mxu0
        %v2851 = vpop.f32.mrb[0].mxu0
        %2852 = vdwg.mxu0
        %vm2853 = vcmask 73728
        %v2854 = vsel %vm2853, %v2848, -inf
        %2855 = vmax.xlane.f32.xlu0 %v2854
        %v2856 = vpop.xlane.xlu0 %2855
        %v2857 = vsub.f32 %v2848, %v2856
        %v2858 = vmul.f32 %v2857, 1.442695
        %v2859 = vpow.pop %v2858
        %v2860 = vsel %vm2853, %v2859, 0.0
        %2861 = vadd.xlane.f32.xlu0 %v2860
        %v2862 = vpop.xlane.xlu0 %2861
        %v2863 = vlog2.pop %v2862
        %v2864 = vmul.f32 %v2863, 0.6931472
        %v2865 = vsub.f32 %v2857, %v2864
        %2866 = vst.msk [vmem:[%s409] sm:$0x1] %vm2853, %v2865
        %s2867 = sand.u32 %s274, 1
        %s2868 = scalar_lea.sflag [#allocation7], %s2867
        %s2869 = sand.u32 %s274, 1
        %s2870 = scalar_lea.vmem [#allocation6], %s2869
        %s2871 = sand.u32 %s300, 1
        %s2872 = scalar_lea.sflag [#allocation9], %s2871
        %s2873 = sand.u32 %s300, 1
        %s2874 = scalar_lea.vmem [#allocation8], %s2873
        // Predicated region
        $region65: #{cnn_mnist_forward.1} parent=63 // pred_check
          %p2875 = pneg %p284
        $region66: #{cnn_mnist_forward.1} parent=63 // pred_check_branch
          %2877 = sbr.rel (%p2875) target = $region68
        $region67: #{cnn_mnist_forward.1} parent=63 // pred_region
          %s2879 = ssub.s32 16, 16
          %2880 = vsyncadd %s2868, %s2879
          %s2881 = smul.addr %s30, 16
          %s2882 = scalar_lea.hbm %s11, %s2881
          %s2884 = sshll.u32 %s2870, 4
          %s2885 = int_to_ptr.vmem [resolvable:$true] %s2884
          %2887 = dma.vmem_to_hbm [thread:$0]  %s2885, 16, %s2882, %s2868
        $region68: #{cnn_mnist_forward.1} parent=63 // pred_fallthru
          _
        // Predicated region
        $region69: #{cnn_mnist_forward.1} parent=63 // pred_check
          %p2888 = pneg %p310
        $region70: #{cnn_mnist_forward.1} parent=63 // pred_check_branch
          %2890 = sbr.rel (%p2888) target = $region72
        $region71: #{cnn_mnist_forward.1} parent=63 // pred_region
          %s2892 = ssub.s32 16, 16
          %2893 = vsyncadd %s2872, %s2892
          %s2894 = smul.addr %s30, 16
          %s2895 = scalar_lea.hbm %s12, %s2894
          %s2897 = sshll.u32 %s2874, 4
          %s2898 = int_to_ptr.vmem [resolvable:$true] %s2897
          %2900 = dma.vmem_to_hbm [thread:$0]  %s2898, 16, %s2895, %s2872
        $region72: #{cnn_mnist_forward.1} parent=63 // pred_fallthru
          _
      $region64: #{cnn_mnist_forward.1} parent=5 // pred_fallthru
        _
      %p2901 = scmp.le.s32.totalorder 2, %s25
      // Predicated region
      $region73: #{cnn_mnist_forward.1} parent=5 // pred_check
        %p2902 = pneg %p2901
      $region74: #{cnn_mnist_forward.1} parent=5 // pred_check_branch
        %2904 = sbr.rel (%p2902) target = $region76
      $region75: #{cnn_mnist_forward.1} parent=5 // pred_region
        %s2905 = ssub.s32 %s25, 2
        // Predicated region
        $region77: #{cnn_mnist_forward.1} parent=75 // pred_check
          %p2906 = pneg %p290
        $region78: #{cnn_mnist_forward.1} parent=75 // pred_check_branch
          %2908 = sbr.rel (%p2906) target = $region80
        $region79: #{cnn_mnist_forward.1} parent=75 // pred_region
          %s2909 = sand.u32 %s275, 1
          %s2910 = scalar_lea.sflag [#allocation7], %s2909
          %s2911 = sand.u32 %s275, 1
          %s2912 = scalar_lea.vmem [#allocation6], %s2911
          %2913 = dma.done %s2910, 16
        $region80: #{cnn_mnist_forward.1} parent=75 // pred_fallthru
          _
        // Predicated region
        $region81: #{cnn_mnist_forward.1} parent=75 // pred_check
          %p2914 = pneg %p316
        $region82: #{cnn_mnist_forward.1} parent=75 // pred_check_branch
          %2916 = sbr.rel (%p2914) target = $region84
        $region83: #{cnn_mnist_forward.1} parent=75 // pred_region
          %s2917 = sand.u32 %s301, 1
          %s2918 = scalar_lea.sflag [#allocation9], %s2917
          %s2919 = sand.u32 %s301, 1
          %s2920 = scalar_lea.vmem [#allocation8], %s2919
          %2921 = dma.done %s2918, 16
        $region84: #{cnn_mnist_forward.1} parent=75 // pred_fallthru
          _
      $region76: #{cnn_mnist_forward.1} parent=5 // pred_fallthru
        _
    $region6: #{cnn_mnist_forward.1} parent=1 // loop_footer
      %s29 = sadd.s32 1, %s25
    $region7: #{cnn_mnist_forward.1} parent=1 // loop_footer_branch
      %24 = sbr.rel target = $region3
    $region8: #{cnn_mnist_forward.1} parent=1 // loop_exit
      _
    %2922 = vsyncpa [#allocation7], 1
    %s2923 = scalar_lea.sflag [#allocation7], 1
    %2924 = vsyncpa %s2923, 1
    %2925 = vsyncpa [#allocation9], 1
    %s2926 = scalar_lea.sflag [#allocation9], 1
    %2927 = vsyncpa %s2926, 1

</llo_original>
